<compile_context>
chip_gen: v5e
topology: v5e:2x2
jax: 0.10.0
libtpu: 0.0.40
codegen_flags: <defaults>
</compile_context>

<pallas_src>
import functools

import numpy as np
import jax
import jax.numpy as jnp
from jax.experimental import pallas as pl
from jax.experimental.pallas import tpu as pltpu

_BN_EPS = 1e-5


def _inverted_residual_kernel(
    x_ref, w_pw_ref, s1_ref, c1_ref, w_dw_ref, s2_ref, c2_ref,
    w_ser_ref, b_ser_ref, w_see_ref, b_see_ref,
    w_pwl_ref, s3_ref, c3_ref, cmask_ref, pmask_ref,
    o_ref, pad_buf,
    *, Bt, W, HW_pad, PADW, inv_hw, has_residual, use_pad_mask):
    # Only the halo columns of the depthwise scratch need to be zero; the
    # interior is fully rewritten for every image in the tile.
    halo = jnp.zeros((pad_buf.shape[0], PADW), dtype=pad_buf.dtype)
    pad_buf[:, :PADW] = halo
    pad_buf[:, PADW + HW_pad:] = halo

    # Small, tile-invariant parameters: load once per grid step.
    w_pw = w_pw_ref[...]
    s1 = s1_ref[...]; c1 = c1_ref[...]
    s2 = s2_ref[...]; c2 = c2_ref[...]
    s3 = s3_ref[...]; c3 = c3_ref[...]
    w_ser = w_ser_ref[...]; b_ser = b_ser_ref[...]
    w_see = w_see_ref[...]; b_see = b_see_ref[...]
    w_pwl = w_pwl_ref[...]
    pmask = pmask_ref[...] if use_pad_mask else None        # (1, HW_pad)
    taps = [w_dw_ref[:, k:k + 1] for k in range(9)]          # (C_mid, 1) each
    cmasks = [cmask_ref[k:k + 1, :] for k in range(3)]       # (1, HW_pad) each

    for b in range(Bt):   # static unroll over the batch tile
        # Matmuls accumulate in f32 regardless of the input dtype (MXU path);
        # only one cast back to the output dtype happens at the final store.
        xb = x_ref[b].astype(jnp.float32)                    # (C_in, HW_pad)

        # 1x1 expand conv + folded BN1 + ReLU (lane-dense MXU matmul).
        h = jnp.dot(w_pw, xb, preferred_element_type=jnp.float32)
        h = jnp.maximum(h * s1 + c1, 0.0)                    # (C_mid, HW_pad)
        if use_pad_mask:
            h = h * pmask                                    # keep pad cols 0

        # 3x3 depthwise conv (stride 1, pad 1) on the flattened spatial axis:
        # zero-haloed scratch + 9 statically shifted windows; the column mask
        # removes W wrap-around, the halo zeros handle H boundaries.
        pad_buf[:, PADW:PADW + HW_pad] = h
        acc = jnp.zeros_like(h)
        for dy in (-1, 0, 1):
            for dx in (-1, 0, 1):
                k = (dy + 1) * 3 + (dx + 1)
                shift = dy * W + dx
                win = pad_buf[:, PADW + shift:PADW + shift + HW_pad]
                if dx == 0 and not use_pad_mask:
                    acc = acc + taps[k] * win                # mask is all-ones
                else:
                    acc = acc + taps[k] * (win * cmasks[dx + 1])
        h = jnp.maximum(acc * s2 + c2, 0.0)                  # folded BN2 + ReLU
        if use_pad_mask:
            h = h * pmask                                    # protect SE mean

        # Squeeze-excite on the pooled (C_mid, 1) vector (tiny matvecs).
        pooled = jnp.sum(h, axis=-1, keepdims=True) * inv_hw
        se = jnp.dot(w_ser, pooled, preferred_element_type=jnp.float32) + b_ser
        se = jnp.maximum(se, 0.0)
        se = jnp.dot(w_see, se, preferred_element_type=jnp.float32) + b_see
        h = h * jax.nn.sigmoid(se)                           # channel gate

        # 1x1 linear projection + folded BN3, then residual add.
        y = jnp.dot(w_pwl, h, preferred_element_type=jnp.float32)
        y = y * s3 + c3
        if has_residual:
            y = y + xb
        o_ref[b] = y.astype(o_ref.dtype)


def inverted_residual_pallas(x, p, *, vmem_budget_bytes=24 * 2**20):
    """x: (B, C_in, H, W) NCHW; p: parameter dict (see __main__)."""
    B, C_in, H, W = x.shape
    C_mid = p["w_pw"].shape[0]
    C_out = p["w_pwl"].shape[0]
    Cr = p["w_se_red"].shape[0]
    HW = H * W
    HW_pad = ((HW + 127) // 128) * 128            # lane-dense spatial axis
    PADW = ((W + 1 + 127) // 128) * 128           # lane-aligned halo (>= W+1)
    has_residual = (C_in == C_out)                # stride == 1 in this kernel
    use_pad_mask = (HW_pad != HW)                 # statically skip all-ones masks

    # Fold eval-mode BatchNorm into per-channel scale / bias.
    def fold_bn(g, b, m, v):
        s = g / jnp.sqrt(v + _BN_EPS)
        return (s.reshape(-1, 1).astype(jnp.float32),
                (b - m * s).reshape(-1, 1).astype(jnp.float32))

    s1, c1 = fold_bn(p["bn1_g"], p["bn1_b"], p["bn1_m"], p["bn1_v"])
    s2, c2 = fold_bn(p["bn2_g"], p["bn2_b"], p["bn2_m"], p["bn2_v"])
    s3, c3 = fold_bn(p["bn3_g"], p["bn3_b"], p["bn3_m"], p["bn3_v"])

    w_pw = p["w_pw"].astype(jnp.float32)                       # (C_mid, C_in)
    w_dw = p["w_dw"].reshape(C_mid, 9).astype(jnp.float32)     # (C_mid, 9)
    w_ser = p["w_se_red"].astype(jnp.float32)                  # (Cr, C_mid)
    b_ser = p["b_se_red"].reshape(Cr, 1).astype(jnp.float32)
    w_see = p["w_se_exp"].astype(jnp.float32)                  # (C_mid, Cr)
    b_see = p["b_se_exp"].reshape(C_mid, 1).astype(jnp.float32)
    w_pwl = p["w_pwl"].astype(jnp.float32)                     # (C_out, C_mid)

    # Wrapper-side constant masks: per-dx column validity for the flattened
    # depthwise shifts, plus a pad-column mask so HW padding never leaks into
    # the SE pooled statistics or the depthwise halo.
    pos = np.arange(HW_pad)
    wcol = pos % W
    col_mask = np.stack(
        [((wcol + d) >= 0) & ((wcol + d) < W) & (pos < HW) for d in (-1, 0, 1)],
        axis=0).astype(np.float32)
    pad_mask = (pos < HW).astype(np.float32)[None, :]
    col_mask = jnp.asarray(col_mask)
    pad_mask = jnp.asarray(pad_mask)

    x_flat = x.reshape(B, C_in, HW)
    if HW_pad != HW:
        x_flat = jnp.pad(x_flat, ((0, 0), (0, 0), (0, HW_pad - HW)))

    # Batch-tile size: biggest divisor of B whose double-buffered in+out blocks
    # fit the budget, but keep >= 2 grid steps when B allows it so both v7x
    # TensorCores get work (with so few steps, per-step overhead is negligible).
    io_bytes_per_b = 2 * (C_in + C_out) * HW_pad * x.dtype.itemsize
    bt_cap = max(1, int(vmem_budget_bytes // max(io_bytes_per_b, 1)))
    divisors = [d for d in range(1, B + 1) if B % d == 0]
    fitting = [d for d in divisors if d <= bt_cap] or [1]
    Bt = max(fitting)
    if B >= 2:
        two_step = [d for d in fitting if B // d >= 2]
        if two_step:
            Bt = max(two_step)
    grid = (B // Bt,)

    # Explicit scoped-VMEM sizing (re-derived from the actual block sizes).
    block_bytes = Bt * (C_in + C_out) * HW_pad * x.dtype.itemsize
    scratch_bytes = C_mid * (HW_pad + 2 * PADW) * 4
    const_bytes = sum(int(np.prod(a.shape)) * 4 for a in
                      (w_pw, s1, c1, w_dw, s2, c2, w_ser, b_ser, w_see, b_see,
                       w_pwl, s3, c3, col_mask, pad_mask))
    vmem_limit = int(min(64 * 2**20,
                         max(16 * 2**20,
                             4 * block_bytes + 2 * const_bytes
                             + scratch_bytes + (4 << 20))))

    kernel = functools.partial(
        _inverted_residual_kernel,
        Bt=Bt, W=W, HW_pad=HW_pad, PADW=PADW, inv_hw=1.0 / HW,
        has_residual=has_residual, use_pad_mask=use_pad_mask)

    def full2d(a):
        return pl.BlockSpec(a.shape, lambda i: (0, 0))

    out_flat = pl.pallas_call(
        kernel,
        out_shape=jax.ShapeDtypeStruct((B, C_out, HW_pad), x.dtype),
        grid_spec=pltpu.PrefetchScalarGridSpec(
            num_scalar_prefetch=0,
            grid=grid,
            in_specs=[
                pl.BlockSpec((Bt, C_in, HW_pad), lambda i: (i, 0, 0)),
                full2d(w_pw), full2d(s1), full2d(c1),
                full2d(w_dw), full2d(s2), full2d(c2),
                full2d(w_ser), full2d(b_ser), full2d(w_see), full2d(b_see),
                full2d(w_pwl), full2d(s3), full2d(c3),
                full2d(col_mask), full2d(pad_mask),
            ],
            out_specs=pl.BlockSpec((Bt, C_out, HW_pad), lambda i: (i, 0, 0)),
            scratch_shapes=[pltpu.VMEM((C_mid, HW_pad + 2 * PADW), jnp.float32)],
        ),
        compiler_params=pltpu.CompilerParams(
            dimension_semantics=("parallel",),
            vmem_limit_bytes=vmem_limit),
    )(x_flat, w_pw, s1, c1, w_dw, s2, c2, w_ser, b_ser, w_see, b_see,
      w_pwl, s3, c3, col_mask, pad_mask)

    return out_flat[:, :, :HW].reshape(B, C_out, H, W)


def _reference(x, p):
    """Pure-JAX (XLA) reference of the eval-mode InvertedResidual forward."""
    hi = jax.lax.Precision.HIGHEST

    def bn(y, g, b, m, v):
        s = (g / jnp.sqrt(v + _BN_EPS))[None, :, None, None]
        return (y - m[None, :, None, None]) * s + b[None, :, None, None]

    relu = lambda t: jnp.maximum(t, 0.0)

    y = jax.lax.conv_general_dilated(
        x, p["w_pw"][:, :, None, None], (1, 1), "VALID",
        dimension_numbers=("NCHW", "OIHW", "NCHW"), precision=hi)
    y = relu(bn(y, p["bn1_g"], p["bn1_b"], p["bn1_m"], p["bn1_v"]))

    y = jax.lax.conv_general_dilated(
        y, p["w_dw"][:, None, :, :], (1, 1), ((1, 1), (1, 1)),
        dimension_numbers=("NCHW", "OIHW", "NCHW"),
        feature_group_count=y.shape[1], precision=hi)
    y = relu(bn(y, p["bn2_g"], p["bn2_b"], p["bn2_m"], p["bn2_v"]))

    pooled = jnp.mean(y, axis=(2, 3))                                # (B, C_mid)
    s = relu(jnp.dot(pooled, p["w_se_red"].T, precision=hi) + p["b_se_red"])
    s = jnp.dot(s, p["w_se_exp"].T, precision=hi) + p["b_se_exp"]
    y = y * jax.nn.sigmoid(s)[:, :, None, None]

    y = jax.lax.conv_general_dilated(
        y, p["w_pwl"][:, :, None, None], (1, 1), "VALID",
        dimension_numbers=("NCHW", "OIHW", "NCHW"), precision=hi)
    y = bn(y, p["bn3_g"], p["bn3_b"], p["bn3_m"], p["bn3_v"])
    return y + x


if __name__ == "__main__":
    # Small MBConv config: in=out=8, exp_ratio=4 -> mid=32, se_ratio=0.25 -> Cr=2,
    # 3x3 depthwise stride 1  => residual path is active.
    B, C_in, H, W = 4, 8, 16, 16
    C_mid = C_in * 4
    C_out = C_in
    Cr = max(1, int(C_in * 0.25))

    key = jax.random.PRNGKey(0)
    ks = jax.random.split(key, 20)

    def normal(k, shape, scale=1.0):
        return scale * jax.random.normal(k, shape, dtype=jnp.float32)

    x = jax.random.normal(ks[0], (B, C_in, H, W), dtype=jnp.float32)
    p = dict(
        w_pw=normal(ks[1], (C_mid, C_in), 0.25),
        bn1_g=1.0 + normal(ks[2], (C_mid,), 0.1),
        bn1_b=normal(ks[3], (C_mid,), 0.1),
        bn1_m=normal(ks[4], (C_mid,), 0.1),
        bn1_v=1.0 + 0.2 * jax.random.uniform(ks[5], (C_mid,), dtype=jnp.float32),
        w_dw=normal(ks[6], (C_mid, 3, 3), 0.25),
        bn2_g=1.0 + normal(ks[7], (C_mid,), 0.1),
        bn2_b=normal(ks[8], (C_mid,), 0.1),
        bn2_m=normal(ks[9], (C_mid,), 0.1),
        bn2_v=1.0 + 0.2 * jax.random.uniform(ks[10], (C_mid,), dtype=jnp.float32),
        w_se_red=normal(ks[11], (Cr, C_mid), 0.25),
        b_se_red=normal(ks[12], (Cr,), 0.1),
        w_se_exp=normal(ks[13], (C_mid, Cr), 0.25),
        b_se_exp=normal(ks[14], (C_mid,), 0.1),
        w_pwl=normal(ks[15], (C_out, C_mid), 0.25),
        bn3_g=1.0 + normal(ks[16], (C_out,), 0.1),
        bn3_b=normal(ks[17], (C_out,), 0.1),
        bn3_m=normal(ks[18], (C_out,), 0.1),
        bn3_v=1.0 + 0.2 * jax.random.uniform(ks[19], (C_out,), dtype=jnp.float32),
    )

    out = inverted_residual_pallas(x, p)
    out = jax.block_until_ready(out)

    ref = _reference(x, p)
    assert out.shape == (B, C_out, H, W)
    err = float(jnp.max(jnp.abs(out - ref)))
    assert jnp.allclose(out, ref, atol=1e-3, rtol=1e-3), f"max abs err {err}"

    print("KERNEL_OK")
</pallas_src>

<mosaic_0001>
module attributes {stable_mosaic.version = 11 : i64} {
  func.func @_inverted_residual_kernel(%arg0: i32, %arg1: memref<2x8x256xf32, #tpu.memory_space<vmem>>, %arg2: memref<32x8xf32, #tpu.memory_space<vmem>>, %arg3: memref<32x1xf32, #tpu.memory_space<vmem>>, %arg4: memref<32x1xf32, #tpu.memory_space<vmem>>, %arg5: memref<32x9xf32, #tpu.memory_space<vmem>>, %arg6: memref<32x1xf32, #tpu.memory_space<vmem>>, %arg7: memref<32x1xf32, #tpu.memory_space<vmem>>, %arg8: memref<2x32xf32, #tpu.memory_space<vmem>>, %arg9: memref<2x1xf32, #tpu.memory_space<vmem>>, %arg10: memref<32x2xf32, #tpu.memory_space<vmem>>, %arg11: memref<32x1xf32, #tpu.memory_space<vmem>>, %arg12: memref<8x32xf32, #tpu.memory_space<vmem>>, %arg13: memref<8x1xf32, #tpu.memory_space<vmem>>, %arg14: memref<8x1xf32, #tpu.memory_space<vmem>>, %arg15: memref<3x256xf32, #tpu.memory_space<vmem>>, %arg16: memref<1x256xf32, #tpu.memory_space<vmem>>, %arg17: memref<2x8x256xf32, #tpu.memory_space<vmem>>, %arg18: memref<32x512xf32, #tpu.memory_space<vmem>>) attributes {dimension_semantics = [#tpu.dimension_semantics<parallel>], iteration_bounds = array<i64: 2>, scalar_prefetch = 0 : i64, scratch_operands = 1 : i64, tpu.core_type = #tpu.core_type<tc>, window_params = [{transform_indices = @transform_0, window_bounds = array<i64: 2, 8, 256>}, {pipeline_mode = #tpu.pipeline_mode<synchronous>, transform_indices = @transform_1, window_bounds = array<i64: 32, 8>}, {pipeline_mode = #tpu.pipeline_mode<synchronous>, transform_indices = @transform_2, window_bounds = array<i64: 32, 1>}, {pipeline_mode = #tpu.pipeline_mode<synchronous>, transform_indices = @transform_3, window_bounds = array<i64: 32, 1>}, {pipeline_mode = #tpu.pipeline_mode<synchronous>, transform_indices = @transform_4, window_bounds = array<i64: 32, 9>}, {pipeline_mode = #tpu.pipeline_mode<synchronous>, transform_indices = @transform_5, window_bounds = array<i64: 32, 1>}, {pipeline_mode = #tpu.pipeline_mode<synchronous>, transform_indices = @transform_6, window_bounds = array<i64: 32, 1>}, {pipeline_mode = #tpu.pipeline_mode<synchronous>, transform_indices = @transform_7, window_bounds = array<i64: 2, 32>}, {pipeline_mode = #tpu.pipeline_mode<synchronous>, transform_indices = @transform_8, window_bounds = array<i64: 2, 1>}, {pipeline_mode = #tpu.pipeline_mode<synchronous>, transform_indices = @transform_9, window_bounds = array<i64: 32, 2>}, {pipeline_mode = #tpu.pipeline_mode<synchronous>, transform_indices = @transform_10, window_bounds = array<i64: 32, 1>}, {pipeline_mode = #tpu.pipeline_mode<synchronous>, transform_indices = @transform_11, window_bounds = array<i64: 8, 32>}, {pipeline_mode = #tpu.pipeline_mode<synchronous>, transform_indices = @transform_12, window_bounds = array<i64: 8, 1>}, {pipeline_mode = #tpu.pipeline_mode<synchronous>, transform_indices = @transform_13, window_bounds = array<i64: 8, 1>}, {pipeline_mode = #tpu.pipeline_mode<synchronous>, transform_indices = @transform_14, window_bounds = array<i64: 3, 256>}, {pipeline_mode = #tpu.pipeline_mode<synchronous>, transform_indices = @transform_15, window_bounds = array<i64: 1, 256>}, {transform_indices = @transform_16, window_bounds = array<i64: 2, 8, 256>}]} {
    %cst = arith.constant 0.000000e+00 : f32
    %0 = vector.broadcast %cst : f32 to vector<32x128xf32>
    %c0 = arith.constant 0 : index
    %c0_0 = arith.constant 0 : index
    %1 = vector.load %arg18[%c0, %c0_0] : memref<32x512xf32, #tpu.memory_space<vmem>>, vector<32x128xf32>
    tpu.vector_store %arg18[%c0, %c0_0], %0 {strides = array<i32>} : memref<32x512xf32, #tpu.memory_space<vmem>>, vector<32x128xf32>,
    %c0_1 = arith.constant 0 : index
    %c384 = arith.constant 384 : index
    %2 = vector.load %arg18[%c0_1, %c384] : memref<32x512xf32, #tpu.memory_space<vmem>>, vector<32x128xf32>
    tpu.vector_store %arg18[%c0_1, %c384], %0 {strides = array<i32>} : memref<32x512xf32, #tpu.memory_space<vmem>>, vector<32x128xf32>,
    %c0_2 = arith.constant 0 : index
    %c0_3 = arith.constant 0 : index
    %3 = vector.load %arg2[%c0_2, %c0_3] : memref<32x8xf32, #tpu.memory_space<vmem>>, vector<32x8xf32>
    %c0_4 = arith.constant 0 : index
    %c0_5 = arith.constant 0 : index
    %4 = vector.load %arg3[%c0_4, %c0_5] : memref<32x1xf32, #tpu.memory_space<vmem>>, vector<32x1xf32>
    %c0_6 = arith.constant 0 : index
    %c0_7 = arith.constant 0 : index
    %5 = vector.load %arg4[%c0_6, %c0_7] : memref<32x1xf32, #tpu.memory_space<vmem>>, vector<32x1xf32>
    %c0_8 = arith.constant 0 : index
    %c0_9 = arith.constant 0 : index
    %6 = vector.load %arg6[%c0_8, %c0_9] : memref<32x1xf32, #tpu.memory_space<vmem>>, vector<32x1xf32>
    %c0_10 = arith.constant 0 : index
    %c0_11 = arith.constant 0 : index
    %7 = vector.load %arg7[%c0_10, %c0_11] : memref<32x1xf32, #tpu.memory_space<vmem>>, vector<32x1xf32>
    %c0_12 = arith.constant 0 : index
    %c0_13 = arith.constant 0 : index
    %8 = vector.load %arg13[%c0_12, %c0_13] : memref<8x1xf32, #tpu.memory_space<vmem>>, vector<8x1xf32>
    %c0_14 = arith.constant 0 : index
    %c0_15 = arith.constant 0 : index
    %9 = vector.load %arg14[%c0_14, %c0_15] : memref<8x1xf32, #tpu.memory_space<vmem>>, vector<8x1xf32>
    %c0_16 = arith.constant 0 : index
    %c0_17 = arith.constant 0 : index
    %10 = vector.load %arg8[%c0_16, %c0_17] : memref<2x32xf32, #tpu.memory_space<vmem>>, vector<2x32xf32>
    %c0_18 = arith.constant 0 : index
    %c0_19 = arith.constant 0 : index
    %11 = vector.load %arg9[%c0_18, %c0_19] : memref<2x1xf32, #tpu.memory_space<vmem>>, vector<2x1xf32>
    %c0_20 = arith.constant 0 : index
    %c0_21 = arith.constant 0 : index
    %12 = vector.load %arg10[%c0_20, %c0_21] : memref<32x2xf32, #tpu.memory_space<vmem>>, vector<32x2xf32>
    %c0_22 = arith.constant 0 : index
    %c0_23 = arith.constant 0 : index
    %13 = vector.load %arg11[%c0_22, %c0_23] : memref<32x1xf32, #tpu.memory_space<vmem>>, vector<32x1xf32>
    %c0_24 = arith.constant 0 : index
    %c0_25 = arith.constant 0 : index
    %14 = vector.load %arg12[%c0_24, %c0_25] : memref<8x32xf32, #tpu.memory_space<vmem>>, vector<8x32xf32>
    %c0_26 = arith.constant 0 : index
    %c0_27 = arith.constant 0 : index
    %15 = vector.load %arg5[%c0_26, %c0_27] : memref<32x9xf32, #tpu.memory_space<vmem>>, vector<32x1xf32>
    %c0_28 = arith.constant 0 : index
    %c1 = arith.constant 1 : index
    %16 = vector.load %arg5[%c0_28, %c1] : memref<32x9xf32, #tpu.memory_space<vmem>>, vector<32x1xf32>
    %c0_29 = arith.constant 0 : index
    %c2 = arith.constant 2 : index
    %17 = vector.load %arg5[%c0_29, %c2] : memref<32x9xf32, #tpu.memory_space<vmem>>, vector<32x1xf32>
    %c0_30 = arith.constant 0 : index
    %c3 = arith.constant 3 : index
    %18 = vector.load %arg5[%c0_30, %c3] : memref<32x9xf32, #tpu.memory_space<vmem>>, vector<32x1xf32>
    %c0_31 = arith.constant 0 : index
    %c4 = arith.constant 4 : index
    %19 = vector.load %arg5[%c0_31, %c4] : memref<32x9xf32, #tpu.memory_space<vmem>>, vector<32x1xf32>
    %c0_32 = arith.constant 0 : index
    %c5 = arith.constant 5 : index
    %20 = vector.load %arg5[%c0_32, %c5] : memref<32x9xf32, #tpu.memory_space<vmem>>, vector<32x1xf32>
    %c0_33 = arith.constant 0 : index
    %c6 = arith.constant 6 : index
    %21 = vector.load %arg5[%c0_33, %c6] : memref<32x9xf32, #tpu.memory_space<vmem>>, vector<32x1xf32>
    %c0_34 = arith.constant 0 : index
    %c7 = arith.constant 7 : index
    %22 = vector.load %arg5[%c0_34, %c7] : memref<32x9xf32, #tpu.memory_space<vmem>>, vector<32x1xf32>
    %c0_35 = arith.constant 0 : index
    %c8 = arith.constant 8 : index
    %23 = vector.load %arg5[%c0_35, %c8] : memref<32x9xf32, #tpu.memory_space<vmem>>, vector<32x1xf32>
    %c0_36 = arith.constant 0 : index
    %c0_37 = arith.constant 0 : index
    %24 = vector.load %arg15[%c0_36, %c0_37] : memref<3x256xf32, #tpu.memory_space<vmem>>, vector<1x256xf32>
    %c2_38 = arith.constant 2 : index
    %c0_39 = arith.constant 0 : index
    %25 = vector.load %arg15[%c2_38, %c0_39] : memref<3x256xf32, #tpu.memory_space<vmem>>, vector<1x256xf32>
    %c0_40 = arith.constant 0 : index
    %c0_41 = arith.constant 0 : index
    %c0_42 = arith.constant 0 : index
    %26 = vector.load %arg1[%c0_40, %c0_41, %c0_42] : memref<2x8x256xf32, #tpu.memory_space<vmem>>, vector<1x8x256xf32>
    %27 = vector.shape_cast %26 : vector<1x8x256xf32> to vector<8x256xf32>
    %cst_43 = arith.constant dense<0.000000e+00> : vector<32x256xf32>
    %28 = tpu.matmul %3, %27, %cst_43 {dimension_numbers = #tpu.dot_dimension_numbers<[1], [0], [0], [1], [0, 0, 1, 1], [], []>} : vector<32x8xf32>, vector<8x256xf32>, vector<32x256xf32> -> vector<32x256xf32>
    %29 = vector.broadcast %4 : vector<32x1xf32> to vector<32x256xf32>
    %30 = arith.mulf %28, %29 : vector<32x256xf32>
    %31 = vector.broadcast %5 : vector<32x1xf32> to vector<32x256xf32>
    %32 = arith.addf %30, %31 : vector<32x256xf32>
    %cst_44 = arith.constant 0.000000e+00 : f32
    %33 = vector.broadcast %cst_44 : f32 to vector<32x256xf32>
    %34 = arith.maximumf %32, %33 : vector<32x256xf32>
    %c0_45 = arith.constant 0 : index
    %c128 = arith.constant 128 : index
    %35 = vector.load %arg18[%c0_45, %c128] : memref<32x512xf32, #tpu.memory_space<vmem>>, vector<32x256xf32>
    tpu.vector_store %arg18[%c0_45, %c128], %34 {strides = array<i32>} : memref<32x512xf32, #tpu.memory_space<vmem>>, vector<32x256xf32>,
    %cst_46 = arith.constant 0.000000e+00 : f32
    %36 = vector.broadcast %cst_46 : f32 to vector<32x256xf32>
    %c0_47 = arith.constant 0 : index
    %c111 = arith.constant 111 : index
    %37 = vector.load %arg18[%c0_47, %c111] : memref<32x512xf32, #tpu.memory_space<vmem>>, vector<32x256xf32>
    %38 = vector.broadcast %24 : vector<1x256xf32> to vector<32x256xf32>
    %39 = arith.mulf %37, %38 : vector<32x256xf32>
    %40 = vector.broadcast %15 : vector<32x1xf32> to vector<32x256xf32>
    %41 = arith.mulf %40, %39 : vector<32x256xf32>
    %42 = arith.addf %36, %41 : vector<32x256xf32>
    %c0_48 = arith.constant 0 : index
    %c112 = arith.constant 112 : index
    %43 = vector.load %arg18[%c0_48, %c112] : memref<32x512xf32, #tpu.memory_space<vmem>>, vector<32x256xf32>
    %44 = vector.broadcast %16 : vector<32x1xf32> to vector<32x256xf32>
    %45 = arith.mulf %44, %43 : vector<32x256xf32>
    %46 = arith.addf %42, %45 : vector<32x256xf32>
    %c0_49 = arith.constant 0 : index
    %c113 = arith.constant 113 : index
    %47 = vector.load %arg18[%c0_49, %c113] : memref<32x512xf32, #tpu.memory_space<vmem>>, vector<32x256xf32>
    %48 = vector.broadcast %25 : vector<1x256xf32> to vector<32x256xf32>
    %49 = arith.mulf %47, %48 : vector<32x256xf32>
    %50 = vector.broadcast %17 : vector<32x1xf32> to vector<32x256xf32>
    %51 = arith.mulf %50, %49 : vector<32x256xf32>
    %52 = arith.addf %46, %51 : vector<32x256xf32>
    %c0_50 = arith.constant 0 : index
    %c127 = arith.constant 127 : index
    %53 = vector.load %arg18[%c0_50, %c127] : memref<32x512xf32, #tpu.memory_space<vmem>>, vector<32x256xf32>
    %54 = vector.broadcast %24 : vector<1x256xf32> to vector<32x256xf32>
    %55 = arith.mulf %53, %54 : vector<32x256xf32>
    %56 = vector.broadcast %18 : vector<32x1xf32> to vector<32x256xf32>
    %57 = arith.mulf %56, %55 : vector<32x256xf32>
    %58 = arith.addf %52, %57 : vector<32x256xf32>
    %c0_51 = arith.constant 0 : index
    %c128_52 = arith.constant 128 : index
    %59 = vector.load %arg18[%c0_51, %c128_52] : memref<32x512xf32, #tpu.memory_space<vmem>>, vector<32x256xf32>
    %60 = vector.broadcast %19 : vector<32x1xf32> to vector<32x256xf32>
    %61 = arith.mulf %60, %59 : vector<32x256xf32>
    %62 = arith.addf %58, %61 : vector<32x256xf32>
    %c0_53 = arith.constant 0 : index
    %c129 = arith.constant 129 : index
    %63 = vector.load %arg18[%c0_53, %c129] : memref<32x512xf32, #tpu.memory_space<vmem>>, vector<32x256xf32>
    %64 = vector.broadcast %25 : vector<1x256xf32> to vector<32x256xf32>
    %65 = arith.mulf %63, %64 : vector<32x256xf32>
    %66 = vector.broadcast %20 : vector<32x1xf32> to vector<32x256xf32>
    %67 = arith.mulf %66, %65 : vector<32x256xf32>
    %68 = arith.addf %62, %67 : vector<32x256xf32>
    %c0_54 = arith.constant 0 : index
    %c143 = arith.constant 143 : index
    %69 = vector.load %arg18[%c0_54, %c143] : memref<32x512xf32, #tpu.memory_space<vmem>>, vector<32x256xf32>
    %70 = vector.broadcast %24 : vector<1x256xf32> to vector<32x256xf32>
    %71 = arith.mulf %69, %70 : vector<32x256xf32>
    %72 = vector.broadcast %21 : vector<32x1xf32> to vector<32x256xf32>
    %73 = arith.mulf %72, %71 : vector<32x256xf32>
    %74 = arith.addf %68, %73 : vector<32x256xf32>
    %c0_55 = arith.constant 0 : index
    %c144 = arith.constant 144 : index
    %75 = vector.load %arg18[%c0_55, %c144] : memref<32x512xf32, #tpu.memory_space<vmem>>, vector<32x256xf32>
    %76 = vector.broadcast %22 : vector<32x1xf32> to vector<32x256xf32>
    %77 = arith.mulf %76, %75 : vector<32x256xf32>
    %78 = arith.addf %74, %77 : vector<32x256xf32>
    %c0_56 = arith.constant 0 : index
    %c145 = arith.constant 145 : index
    %79 = vector.load %arg18[%c0_56, %c145] : memref<32x512xf32, #tpu.memory_space<vmem>>, vector<32x256xf32>
    %80 = vector.broadcast %25 : vector<1x256xf32> to vector<32x256xf32>
    %81 = arith.mulf %79, %80 : vector<32x256xf32>
    %82 = vector.broadcast %23 : vector<32x1xf32> to vector<32x256xf32>
    %83 = arith.mulf %82, %81 : vector<32x256xf32>
    %84 = arith.addf %78, %83 : vector<32x256xf32>
    %85 = vector.broadcast %6 : vector<32x1xf32> to vector<32x256xf32>
    %86 = arith.mulf %84, %85 : vector<32x256xf32>
    %87 = vector.broadcast %7 : vector<32x1xf32> to vector<32x256xf32>
    %88 = arith.addf %86, %87 : vector<32x256xf32>
    %cst_57 = arith.constant 0.000000e+00 : f32
    %89 = vector.broadcast %cst_57 : f32 to vector<32x256xf32>
    %90 = arith.maximumf %88, %89 : vector<32x256xf32>
    %cst_58 = arith.constant dense<0.000000e+00> : vector<32xf32>
    %91 = vector.multi_reduction <add>, %90, %cst_58 [1] : vector<32x256xf32> to vector<32xf32>
    %92 = vector.shape_cast %91 : vector<32xf32> to vector<32x1xf32>
    %cst_59 = arith.constant 3.906250e-03 : f32
    %93 = vector.broadcast %cst_59 : f32 to vector<32x1xf32>
    %94 = arith.mulf %92, %93 : vector<32x1xf32>
    %cst_60 = arith.constant dense<0.000000e+00> : vector<2x1xf32>
    %95 = tpu.matmul %10, %94, %cst_60 {dimension_numbers = #tpu.dot_dimension_numbers<[1], [0], [0], [1], [0, 0, 1, 1], [], []>} : vector<2x32xf32>, vector<32x1xf32>, vector<2x1xf32> -> vector<2x1xf32>
    %96 = arith.addf %95, %11 : vector<2x1xf32>
    %cst_61 = arith.constant 0.000000e+00 : f32
    %97 = vector.broadcast %cst_61 : f32 to vector<2x1xf32>
    %98 = arith.maximumf %96, %97 : vector<2x1xf32>
    %cst_62 = arith.constant dense<0.000000e+00> : vector<32x1xf32>
    %99 = tpu.matmul %12, %98, %cst_62 {dimension_numbers = #tpu.dot_dimension_numbers<[1], [0], [0], [1], [0, 0, 1, 1], [], []>} : vector<32x2xf32>, vector<2x1xf32>, vector<32x1xf32> -> vector<32x1xf32>
    %100 = arith.addf %99, %13 : vector<32x1xf32>
    %101 = arith.negf %100 : vector<32x1xf32>
    %102 = math.exp %101 : vector<32x1xf32>
    %cst_63 = arith.constant 1.000000e+00 : f32
    %103 = vector.broadcast %cst_63 : f32 to vector<32x1xf32>
    %104 = arith.addf %103, %102 : vector<32x1xf32>
    %105 = arith.divf %103, %104 : vector<32x1xf32>
    %106 = vector.broadcast %105 : vector<32x1xf32> to vector<32x256xf32>
    %107 = arith.mulf %90, %106 : vector<32x256xf32>
    %cst_64 = arith.constant dense<0.000000e+00> : vector<8x256xf32>
    %108 = tpu.matmul %14, %107, %cst_64 {dimension_numbers = #tpu.dot_dimension_numbers<[1], [0], [0], [1], [0, 0, 1, 1], [], []>} : vector<8x32xf32>, vector<32x256xf32>, vector<8x256xf32> -> vector<8x256xf32>
    %109 = vector.broadcast %8 : vector<8x1xf32> to vector<8x256xf32>
    %110 = arith.mulf %108, %109 : vector<8x256xf32>
    %111 = vector.broadcast %9 : vector<8x1xf32> to vector<8x256xf32>
    %112 = arith.addf %110, %111 : vector<8x256xf32>
    %113 = arith.addf %112, %27 : vector<8x256xf32>
    %c0_65 = arith.constant 0 : index
    %c0_66 = arith.constant 0 : index
    %c0_67 = arith.constant 0 : index
    %114 = vector.load %arg17[%c0_65, %c0_66, %c0_67] : memref<2x8x256xf32, #tpu.memory_space<vmem>>, vector<1x8x256xf32>
    %115 = vector.shape_cast %114 : vector<1x8x256xf32> to vector<8x256xf32>
    %116 = vector.shape_cast %113 : vector<8x256xf32> to vector<1x8x256xf32>
    tpu.vector_store %arg17[%c0_65, %c0_66, %c0_67], %116 {strides = array<i32>} : memref<2x8x256xf32, #tpu.memory_space<vmem>>, vector<1x8x256xf32>,
    %c1_68 = arith.constant 1 : index
    %c0_69 = arith.constant 0 : index
    %c0_70 = arith.constant 0 : index
    %117 = vector.load %arg1[%c1_68, %c0_69, %c0_70] : memref<2x8x256xf32, #tpu.memory_space<vmem>>, vector<1x8x256xf32>
    %118 = vector.shape_cast %117 : vector<1x8x256xf32> to vector<8x256xf32>
    %cst_71 = arith.constant dense<0.000000e+00> : vector<32x256xf32>
    %119 = tpu.matmul %3, %118, %cst_71 {dimension_numbers = #tpu.dot_dimension_numbers<[1], [0], [0], [1], [0, 0, 1, 1], [], []>} : vector<32x8xf32>, vector<8x256xf32>, vector<32x256xf32> -> vector<32x256xf32>
    %120 = vector.broadcast %4 : vector<32x1xf32> to vector<32x256xf32>
    %121 = arith.mulf %119, %120 : vector<32x256xf32>
    %122 = vector.broadcast %5 : vector<32x1xf32> to vector<32x256xf32>
    %123 = arith.addf %121, %122 : vector<32x256xf32>
    %cst_72 = arith.constant 0.000000e+00 : f32
    %124 = vector.broadcast %cst_72 : f32 to vector<32x256xf32>
    %125 = arith.maximumf %123, %124 : vector<32x256xf32>
    %c0_73 = arith.constant 0 : index
    %c128_74 = arith.constant 128 : index
    %126 = vector.load %arg18[%c0_73, %c128_74] : memref<32x512xf32, #tpu.memory_space<vmem>>, vector<32x256xf32>
    tpu.vector_store %arg18[%c0_73, %c128_74], %125 {strides = array<i32>} : memref<32x512xf32, #tpu.memory_space<vmem>>, vector<32x256xf32>,
    %cst_75 = arith.constant 0.000000e+00 : f32
    %127 = vector.broadcast %cst_75 : f32 to vector<32x256xf32>
    %c0_76 = arith.constant 0 : index
    %c111_77 = arith.constant 111 : index
    %128 = vector.load %arg18[%c0_76, %c111_77] : memref<32x512xf32, #tpu.memory_space<vmem>>, vector<32x256xf32>
    %129 = vector.broadcast %24 : vector<1x256xf32> to vector<32x256xf32>
    %130 = arith.mulf %128, %129 : vector<32x256xf32>
    %131 = vector.broadcast %15 : vector<32x1xf32> to vector<32x256xf32>
    %132 = arith.mulf %131, %130 : vector<32x256xf32>
    %133 = arith.addf %127, %132 : vector<32x256xf32>
    %c0_78 = arith.constant 0 : index
    %c112_79 = arith.constant 112 : index
    %134 = vector.load %arg18[%c0_78, %c112_79] : memref<32x512xf32, #tpu.memory_space<vmem>>, vector<32x256xf32>
    %135 = vector.broadcast %16 : vector<32x1xf32> to vector<32x256xf32>
    %136 = arith.mulf %135, %134 : vector<32x256xf32>
    %137 = arith.addf %133, %136 : vector<32x256xf32>
    %c0_80 = arith.constant 0 : index
    %c113_81 = arith.constant 113 : index
    %138 = vector.load %arg18[%c0_80, %c113_81] : memref<32x512xf32, #tpu.memory_space<vmem>>, vector<32x256xf32>
    %139 = vector.broadcast %25 : vector<1x256xf32> to vector<32x256xf32>
    %140 = arith.mulf %138, %139 : vector<32x256xf32>
    %141 = vector.broadcast %17 : vector<32x1xf32> to vector<32x256xf32>
    %142 = arith.mulf %141, %140 : vector<32x256xf32>
    %143 = arith.addf %137, %142 : vector<32x256xf32>
    %c0_82 = arith.constant 0 : index
    %c127_83 = arith.constant 127 : index
    %144 = vector.load %arg18[%c0_82, %c127_83] : memref<32x512xf32, #tpu.memory_space<vmem>>, vector<32x256xf32>
    %145 = vector.broadcast %24 : vector<1x256xf32> to vector<32x256xf32>
    %146 = arith.mulf %144, %145 : vector<32x256xf32>
    %147 = vector.broadcast %18 : vector<32x1xf32> to vector<32x256xf32>
    %148 = arith.mulf %147, %146 : vector<32x256xf32>
    %149 = arith.addf %143, %148 : vector<32x256xf32>
    %c0_84 = arith.constant 0 : index
    %c128_85 = arith.constant 128 : index
    %150 = vector.load %arg18[%c0_84, %c128_85] : memref<32x512xf32, #tpu.memory_space<vmem>>, vector<32x256xf32>
    %151 = vector.broadcast %19 : vector<32x1xf32> to vector<32x256xf32>
    %152 = arith.mulf %151, %150 : vector<32x256xf32>
    %153 = arith.addf %149, %152 : vector<32x256xf32>
    %c0_86 = arith.constant 0 : index
    %c129_87 = arith.constant 129 : index
    %154 = vector.load %arg18[%c0_86, %c129_87] : memref<32x512xf32, #tpu.memory_space<vmem>>, vector<32x256xf32>
    %155 = vector.broadcast %25 : vector<1x256xf32> to vector<32x256xf32>
    %156 = arith.mulf %154, %155 : vector<32x256xf32>
    %157 = vector.broadcast %20 : vector<32x1xf32> to vector<32x256xf32>
    %158 = arith.mulf %157, %156 : vector<32x256xf32>
    %159 = arith.addf %153, %158 : vector<32x256xf32>
    %c0_88 = arith.constant 0 : index
    %c143_89 = arith.constant 143 : index
    %160 = vector.load %arg18[%c0_88, %c143_89] : memref<32x512xf32, #tpu.memory_space<vmem>>, vector<32x256xf32>
    %161 = vector.broadcast %24 : vector<1x256xf32> to vector<32x256xf32>
    %162 = arith.mulf %160, %161 : vector<32x256xf32>
    %163 = vector.broadcast %21 : vector<32x1xf32> to vector<32x256xf32>
    %164 = arith.mulf %163, %162 : vector<32x256xf32>
    %165 = arith.addf %159, %164 : vector<32x256xf32>
    %c0_90 = arith.constant 0 : index
    %c144_91 = arith.constant 144 : index
    %166 = vector.load %arg18[%c0_90, %c144_91] : memref<32x512xf32, #tpu.memory_space<vmem>>, vector<32x256xf32>
    %167 = vector.broadcast %22 : vector<32x1xf32> to vector<32x256xf32>
    %168 = arith.mulf %167, %166 : vector<32x256xf32>
    %169 = arith.addf %165, %168 : vector<32x256xf32>
    %c0_92 = arith.constant 0 : index
    %c145_93 = arith.constant 145 : index
    %170 = vector.load %arg18[%c0_92, %c145_93] : memref<32x512xf32, #tpu.memory_space<vmem>>, vector<32x256xf32>
    %171 = vector.broadcast %25 : vector<1x256xf32> to vector<32x256xf32>
    %172 = arith.mulf %170, %171 : vector<32x256xf32>
    %173 = vector.broadcast %23 : vector<32x1xf32> to vector<32x256xf32>
    %174 = arith.mulf %173, %172 : vector<32x256xf32>
    %175 = arith.addf %169, %174 : vector<32x256xf32>
    %176 = vector.broadcast %6 : vector<32x1xf32> to vector<32x256xf32>
    %177 = arith.mulf %175, %176 : vector<32x256xf32>
    %178 = vector.broadcast %7 : vector<32x1xf32> to vector<32x256xf32>
    %179 = arith.addf %177, %178 : vector<32x256xf32>
    %cst_94 = arith.constant 0.000000e+00 : f32
    %180 = vector.broadcast %cst_94 : f32 to vector<32x256xf32>
    %181 = arith.maximumf %179, %180 : vector<32x256xf32>
    %cst_95 = arith.constant dense<0.000000e+00> : vector<32xf32>
    %182 = vector.multi_reduction <add>, %181, %cst_95 [1] : vector<32x256xf32> to vector<32xf32>
    %183 = vector.shape_cast %182 : vector<32xf32> to vector<32x1xf32>
    %cst_96 = arith.constant 3.906250e-03 : f32
    %184 = vector.broadcast %cst_96 : f32 to vector<32x1xf32>
    %185 = arith.mulf %183, %184 : vector<32x1xf32>
    %cst_97 = arith.constant dense<0.000000e+00> : vector<2x1xf32>
    %186 = tpu.matmul %10, %185, %cst_97 {dimension_numbers = #tpu.dot_dimension_numbers<[1], [0], [0], [1], [0, 0, 1, 1], [], []>} : vector<2x32xf32>, vector<32x1xf32>, vector<2x1xf32> -> vector<2x1xf32>
    %187 = arith.addf %186, %11 : vector<2x1xf32>
    %cst_98 = arith.constant 0.000000e+00 : f32
    %188 = vector.broadcast %cst_98 : f32 to vector<2x1xf32>
    %189 = arith.maximumf %187, %188 : vector<2x1xf32>
    %cst_99 = arith.constant dense<0.000000e+00> : vector<32x1xf32>
    %190 = tpu.matmul %12, %189, %cst_99 {dimension_numbers = #tpu.dot_dimension_numbers<[1], [0], [0], [1], [0, 0, 1, 1], [], []>} : vector<32x2xf32>, vector<2x1xf32>, vector<32x1xf32> -> vector<32x1xf32>
    %191 = arith.addf %190, %13 : vector<32x1xf32>
    %192 = arith.negf %191 : vector<32x1xf32>
    %193 = math.exp %192 : vector<32x1xf32>
    %cst_100 = arith.constant 1.000000e+00 : f32
    %194 = vector.broadcast %cst_100 : f32 to vector<32x1xf32>
    %195 = arith.addf %194, %193 : vector<32x1xf32>
    %196 = arith.divf %194, %195 : vector<32x1xf32>
    %197 = vector.broadcast %196 : vector<32x1xf32> to vector<32x256xf32>
    %198 = arith.mulf %181, %197 : vector<32x256xf32>
    %cst_101 = arith.constant dense<0.000000e+00> : vector<8x256xf32>
    %199 = tpu.matmul %14, %198, %cst_101 {dimension_numbers = #tpu.dot_dimension_numbers<[1], [0], [0], [1], [0, 0, 1, 1], [], []>} : vector<8x32xf32>, vector<32x256xf32>, vector<8x256xf32> -> vector<8x256xf32>
    %200 = vector.broadcast %8 : vector<8x1xf32> to vector<8x256xf32>
    %201 = arith.mulf %199, %200 : vector<8x256xf32>
    %202 = vector.broadcast %9 : vector<8x1xf32> to vector<8x256xf32>
    %203 = arith.addf %201, %202 : vector<8x256xf32>
    %204 = arith.addf %203, %118 : vector<8x256xf32>
    %c1_102 = arith.constant 1 : index
    %c0_103 = arith.constant 0 : index
    %c0_104 = arith.constant 0 : index
    %205 = vector.load %arg17[%c1_102, %c0_103, %c0_104] : memref<2x8x256xf32, #tpu.memory_space<vmem>>, vector<1x8x256xf32>
    %206 = vector.shape_cast %205 : vector<1x8x256xf32> to vector<8x256xf32>
    %207 = vector.shape_cast %204 : vector<8x256xf32> to vector<1x8x256xf32>
    tpu.vector_store %arg17[%c1_102, %c0_103, %c0_104], %207 {strides = array<i32>} : memref<2x8x256xf32, #tpu.memory_space<vmem>>, vector<1x8x256xf32>,
    return
  }
  func.func @transform_0(%arg0: i32) -> (i32, i32, i32) {
    %c0_i32 = arith.constant 0 : i32
    %c0_i32_0 = arith.constant 0 : i32
    %c0_i32_1 = arith.constant 0 : i32
    return %arg0, %c0_i32, %c0_i32_0 : i32, i32, i32
  }
  func.func @transform_1(%arg0: i32) -> (i32, i32) {
    %c0_i32 = arith.constant 0 : i32
    %c0_i32_0 = arith.constant 0 : i32
    %c0_i32_1 = arith.constant 0 : i32
    return %c0_i32, %c0_i32_0 : i32, i32
  }
  func.func @transform_2(%arg0: i32) -> (i32, i32) {
    %c0_i32 = arith.constant 0 : i32
    %c0_i32_0 = arith.constant 0 : i32
    %c0_i32_1 = arith.constant 0 : i32
    return %c0_i32, %c0_i32_0 : i32, i32
  }
  func.func @transform_3(%arg0: i32) -> (i32, i32) {
    %c0_i32 = arith.constant 0 : i32
    %c0_i32_0 = arith.constant 0 : i32
    %c0_i32_1 = arith.constant 0 : i32
    return %c0_i32, %c0_i32_0 : i32, i32
  }
  func.func @transform_4(%arg0: i32) -> (i32, i32) {
    %c0_i32 = arith.constant 0 : i32
    %c0_i32_0 = arith.constant 0 : i32
    %c0_i32_1 = arith.constant 0 : i32
    return %c0_i32, %c0_i32_0 : i32, i32
  }
  func.func @transform_5(%arg0: i32) -> (i32, i32) {
    %c0_i32 = arith.constant 0 : i32
    %c0_i32_0 = arith.constant 0 : i32
    %c0_i32_1 = arith.constant 0 : i32
    return %c0_i32, %c0_i32_0 : i32, i32
  }
  func.func @transform_6(%arg0: i32) -> (i32, i32) {
    %c0_i32 = arith.constant 0 : i32
    %c0_i32_0 = arith.constant 0 : i32
    %c0_i32_1 = arith.constant 0 : i32
    return %c0_i32, %c0_i32_0 : i32, i32
  }
  func.func @transform_7(%arg0: i32) -> (i32, i32) {
    %c0_i32 = arith.constant 0 : i32
    %c0_i32_0 = arith.constant 0 : i32
    %c0_i32_1 = arith.constant 0 : i32
    return %c0_i32, %c0_i32_0 : i32, i32
  }
  func.func @transform_8(%arg0: i32) -> (i32, i32) {
    %c0_i32 = arith.constant 0 : i32
    %c0_i32_0 = arith.constant 0 : i32
    %c0_i32_1 = arith.constant 0 : i32
    return %c0_i32, %c0_i32_0 : i32, i32
  }
  func.func @transform_9(%arg0: i32) -> (i32, i32) {
    %c0_i32 = arith.constant 0 : i32
    %c0_i32_0 = arith.constant 0 : i32
    %c0_i32_1 = arith.constant 0 : i32
    return %c0_i32, %c0_i32_0 : i32, i32
  }
  func.func @transform_10(%arg0: i32) -> (i32, i32) {
    %c0_i32 = arith.constant 0 : i32
    %c0_i32_0 = arith.constant 0 : i32
    %c0_i32_1 = arith.constant 0 : i32
    return %c0_i32, %c0_i32_0 : i32, i32
  }
  func.func @transform_11(%arg0: i32) -> (i32, i32) {
    %c0_i32 = arith.constant 0 : i32
    %c0_i32_0 = arith.constant 0 : i32
    %c0_i32_1 = arith.constant 0 : i32
    return %c0_i32, %c0_i32_0 : i32, i32
  }
  func.func @transform_12(%arg0: i32) -> (i32, i32) {
    %c0_i32 = arith.constant 0 : i32
    %c0_i32_0 = arith.constant 0 : i32
    %c0_i32_1 = arith.constant 0 : i32
    return %c0_i32, %c0_i32_0 : i32, i32
  }
  func.func @transform_13(%arg0: i32) -> (i32, i32) {
    %c0_i32 = arith.constant 0 : i32
    %c0_i32_0 = arith.constant 0 : i32
    %c0_i32_1 = arith.constant 0 : i32
    return %c0_i32, %c0_i32_0 : i32, i32
  }
  func.func @transform_14(%arg0: i32) -> (i32, i32) {
    %c0_i32 = arith.constant 0 : i32
    %c0_i32_0 = arith.constant 0 : i32
    %c0_i32_1 = arith.constant 0 : i32
    return %c0_i32, %c0_i32_0 : i32, i32
  }
  func.func @transform_15(%arg0: i32) -> (i32, i32) {
    %c0_i32 = arith.constant 0 : i32
    %c0_i32_0 = arith.constant 0 : i32
    %c0_i32_1 = arith.constant 0 : i32
    return %c0_i32, %c0_i32_0 : i32, i32
  }
  func.func @transform_16(%arg0: i32) -> (i32, i32, i32) {
    %c0_i32 = arith.constant 0 : i32
    %c0_i32_0 = arith.constant 0 : i32
    %c0_i32_1 = arith.constant 0 : i32
    return %arg0, %c0_i32, %c0_i32_0 : i32, i32, i32
  }
}

</mosaic_0001>

<llo_original>
// kernel: tpu_custom_call.1
$region0: #{tpu_custom_call.1}
  #allocation0 [shape = 'u32[]', space=smem, size = 0x4, offset = 0x4, fixed_abs, tag = 'smem constant byte address 0x4 - core index']
  #allocation1 [shape = 'u32[72,128]{1,0:T(1,128)}', space=vmem, size = 0x9000, scoped, tag = 'internal scratch']
  #allocation2 [shape = 'f32[32,512]{1,0:T(8,128)}', space=vmem, size = 0x10000, scoped, tag = 'scratch operand']
  %s0 = inlined_call_operand.vmem [shape: f32[4,8,256], index: 0, kind: input, shape index: {}]
  %s1 = inlined_call_operand.vmem [shape: f32[32,8], index: 1, kind: input, shape index: {}]
  %s2 = inlined_call_operand.vmem [shape: f32[32,1], index: 2, kind: input, shape index: {}]
  %s3 = inlined_call_operand.vmem [shape: f32[32,1], index: 3, kind: input, shape index: {}]
  %s4 = inlined_call_operand.vmem [shape: f32[32,9], index: 4, kind: input, shape index: {}]
  %s5 = inlined_call_operand.vmem [shape: f32[32,1], index: 5, kind: input, shape index: {}]
  %s6 = inlined_call_operand.vmem [shape: f32[32,1], index: 6, kind: input, shape index: {}]
  %s7 = inlined_call_operand.vmem [shape: f32[2,32], index: 7, kind: input, shape index: {}]
  %s8 = inlined_call_operand.vmem [shape: f32[2,1], index: 8, kind: input, shape index: {}]
  %s9 = inlined_call_operand.vmem [shape: f32[32,2], index: 9, kind: input, shape index: {}]
  %s10 = inlined_call_operand.vmem [shape: f32[32,1], index: 10, kind: input, shape index: {}]
  %s11 = inlined_call_operand.vmem [shape: f32[8,32], index: 11, kind: input, shape index: {}]
  %s12 = inlined_call_operand.vmem [shape: f32[8,1], index: 12, kind: input, shape index: {}]
  %s13 = inlined_call_operand.vmem [shape: f32[8,1], index: 13, kind: input, shape index: {}]
  %s14 = inlined_call_operand.vmem [shape: f32[3,256], index: 14, kind: input, shape index: {}]
  %s15 = inlined_call_operand.vmem [shape: f32[1,256], index: 15, kind: input, shape index: {}]
  %s16 = inlined_call_operand.hbm [shape: f32[4,8,256], index: 16, kind: output, shape index: {}]
  %s17 = sld [smem:[#allocation0]]
  $region97: #{tpu_custom_call.1} parent=0
    _
  %s19 = ssub.s32 1, %s17
  %s20 = scalar_select 0, %s19, %s17
  $region1: #{tpu_custom_call.1} parent=0
    #allocation3 [shape = 'u8[32768]{0}', space=vmem, size = 0x8000, scoped, tag = 'output window, operand 0']
    #allocation4 [shape = 's32[2]{0}', space=sflag, size = 0x8, scoped, tag = 'scoped memory for tpu_custom_call.1']
    %21 = vsyncpa [#allocation4], 0
    %s22 = scalar_lea.sflag [#allocation4], 1
    %23 = vsyncpa %s22, 0
    loop: start=0, step=1, limit=4
    $region2: #{tpu_custom_call.1} parent=1 // loop_pre_header
      _
    $region3: #{tpu_custom_call.1} parent=1 // loop_header
      %s25 = sphi 0, %s29
      %p26 = scmp.ge.s32.totalorder %s25, 4
      %s35 = sphi 0, %s37
      %s38 = sphi 0, %s35
      %s39 = sphi 0, %s38
      %s55 = sphi 0, %s39
      %s59 = sphi 0, %s59
      %s61 = sphi 0, %s59
      %s62 = sphi 0, %s61
      %s76 = sphi 0, %s62
      %s80 = sphi 0, %s80
      %s82 = sphi 0, %s80
      %s83 = sphi 0, %s82
      %s97 = sphi 0, %s83
      %s101 = sphi 0, %s101
      %s103 = sphi 0, %s101
      %s104 = sphi 0, %s103
      %s118 = sphi 0, %s104
      %s122 = sphi 0, %s122
      %s124 = sphi 0, %s122
      %s125 = sphi 0, %s124
      %s139 = sphi 0, %s125
      %s143 = sphi 0, %s143
      %s145 = sphi 0, %s143
      %s146 = sphi 0, %s145
      %s160 = sphi 0, %s146
      %s164 = sphi 0, %s164
      %s166 = sphi 0, %s164
      %s167 = sphi 0, %s166
      %s181 = sphi 0, %s167
      %s185 = sphi 0, %s185
      %s187 = sphi 0, %s185
      %s188 = sphi 0, %s187
      %s202 = sphi 0, %s188
      %s206 = sphi 0, %s206
      %s208 = sphi 0, %s206
      %s209 = sphi 0, %s208
      %s223 = sphi 0, %s209
      %s227 = sphi 0, %s227
      %s229 = sphi 0, %s227
      %s230 = sphi 0, %s229
      %s244 = sphi 0, %s230
      %s248 = sphi 0, %s248
      %s250 = sphi 0, %s248
      %s251 = sphi 0, %s250
      %s265 = sphi 0, %s251
      %s269 = sphi 0, %s269
      %s271 = sphi 0, %s269
      %s272 = sphi 0, %s271
      %s286 = sphi 0, %s272
      %s290 = sphi 0, %s290
      %s292 = sphi 0, %s290
      %s293 = sphi 0, %s292
      %s307 = sphi 0, %s293
      %s311 = sphi 0, %s311
      %s313 = sphi 0, %s311
      %s314 = sphi 0, %s313
      %s328 = sphi 0, %s314
      %s332 = sphi 0, %s332
      %s334 = sphi 0, %s332
      %s335 = sphi 0, %s334
      %s349 = sphi 0, %s335
      %s353 = sphi 0, %s353
      %s355 = sphi 0, %s353
      %s356 = sphi 0, %s355
      %s370 = sphi 0, %s356
      %s376 = sphi 0, %s378
      %s379 = sphi 0, %s376
      %s380 = sphi 0, %s379
      %s396 = sphi 0, %s380
    $region4: #{tpu_custom_call.1} parent=1 // loop_header_branch
      %28 = sbr.rel (%p26) target = $region8
    $region5: #{tpu_custom_call.1} parent=1 // loop_body
      %s30 = ssub.s32 %s25, 1
      %s31 = ssub.s32 %s25, 2
      %s32 = sadd.s32 %s25, 1
      %s33 = ssub.s32 %s25, %s32
      %p34 = scmp.eq.s32.totalorder %s33, 0
      %s36 = sadd.s32 %s35, 1
      %s37 = scalar_select %p34, %s35, %s36
      %p40 = pneg %p34
      %p41 = scmp.eq.s32.totalorder %s25, 1
      %p42 = por %p40, %p41
      %p43 = scmp.ne.s32.totalorder %s35, %s38
      %p44 = scmp.eq.s32.totalorder %s25, 0
      %p45 = por %p43, %p44
      %p46 = scmp.ne.s32.totalorder %s35, %s38
      %p47 = scmp.eq.s32.totalorder %s30, 1
      %p48 = por %p46, %p47
      %p49 = scmp.ne.s32.totalorder %s38, %s39
      %p50 = scmp.eq.s32.totalorder %s30, 0
      %p51 = por %p49, %p50
      %p52 = scmp.ne.s32.totalorder %s38, %s39
      %p53 = scmp.eq.s32.totalorder %s31, 1
      %p54 = por %p52, %p53
      %p56 = scmp.ne.s32.totalorder %s39, %s55
      %p57 = scmp.eq.s32.totalorder %s31, 0
      %p58 = por %p56, %p57
      %s60 = sadd.s32 %s59, 1
      %p63 = scmp.eq.s32.totalorder %s25, 1
      %p64 = scmp.ne.s32.totalorder %s59, %s61
      %p65 = scmp.eq.s32.totalorder %s25, 0
      %p66 = por %p64, %p65
      %p67 = scmp.ne.s32.totalorder %s59, %s61
      %p68 = scmp.eq.s32.totalorder %s30, 1
      %p69 = por %p67, %p68
      %p70 = scmp.ne.s32.totalorder %s61, %s62
      %p71 = scmp.eq.s32.totalorder %s30, 0
      %p72 = por %p70, %p71
      %p73 = scmp.ne.s32.totalorder %s61, %s62
      %p74 = scmp.eq.s32.totalorder %s31, 1
      %p75 = por %p73, %p74
      %p77 = scmp.ne.s32.totalorder %s62, %s76
      %p78 = scmp.eq.s32.totalorder %s31, 0
      %p79 = por %p77, %p78
      %s81 = sadd.s32 %s80, 1
      %p84 = scmp.eq.s32.totalorder %s25, 1
      %p85 = scmp.ne.s32.totalorder %s80, %s82
      %p86 = scmp.eq.s32.totalorder %s25, 0
      %p87 = por %p85, %p86
      %p88 = scmp.ne.s32.totalorder %s80, %s82
      %p89 = scmp.eq.s32.totalorder %s30, 1
      %p90 = por %p88, %p89
      %p91 = scmp.ne.s32.totalorder %s82, %s83
      %p92 = scmp.eq.s32.totalorder %s30, 0
      %p93 = por %p91, %p92
      %p94 = scmp.ne.s32.totalorder %s82, %s83
      %p95 = scmp.eq.s32.totalorder %s31, 1
      %p96 = por %p94, %p95
      %p98 = scmp.ne.s32.totalorder %s83, %s97
      %p99 = scmp.eq.s32.totalorder %s31, 0
      %p100 = por %p98, %p99
      %s102 = sadd.s32 %s101, 1
      %p105 = scmp.eq.s32.totalorder %s25, 1
      %p106 = scmp.ne.s32.totalorder %s101, %s103
      %p107 = scmp.eq.s32.totalorder %s25, 0
      %p108 = por %p106, %p107
      %p109 = scmp.ne.s32.totalorder %s101, %s103
      %p110 = scmp.eq.s32.totalorder %s30, 1
      %p111 = por %p109, %p110
      %p112 = scmp.ne.s32.totalorder %s103, %s104
      %p113 = scmp.eq.s32.totalorder %s30, 0
      %p114 = por %p112, %p113
      %p115 = scmp.ne.s32.totalorder %s103, %s104
      %p116 = scmp.eq.s32.totalorder %s31, 1
      %p117 = por %p115, %p116
      %p119 = scmp.ne.s32.totalorder %s104, %s118
      %p120 = scmp.eq.s32.totalorder %s31, 0
      %p121 = por %p119, %p120
      %s123 = sadd.s32 %s122, 1
      %p126 = scmp.eq.s32.totalorder %s25, 1
      %p127 = scmp.ne.s32.totalorder %s122, %s124
      %p128 = scmp.eq.s32.totalorder %s25, 0
      %p129 = por %p127, %p128
      %p130 = scmp.ne.s32.totalorder %s122, %s124
      %p131 = scmp.eq.s32.totalorder %s30, 1
      %p132 = por %p130, %p131
      %p133 = scmp.ne.s32.totalorder %s124, %s125
      %p134 = scmp.eq.s32.totalorder %s30, 0
      %p135 = por %p133, %p134
      %p136 = scmp.ne.s32.totalorder %s124, %s125
      %p137 = scmp.eq.s32.totalorder %s31, 1
      %p138 = por %p136, %p137
      %p140 = scmp.ne.s32.totalorder %s125, %s139
      %p141 = scmp.eq.s32.totalorder %s31, 0
      %p142 = por %p140, %p141
      %s144 = sadd.s32 %s143, 1
      %p147 = scmp.eq.s32.totalorder %s25, 1
      %p148 = scmp.ne.s32.totalorder %s143, %s145
      %p149 = scmp.eq.s32.totalorder %s25, 0
      %p150 = por %p148, %p149
      %p151 = scmp.ne.s32.totalorder %s143, %s145
      %p152 = scmp.eq.s32.totalorder %s30, 1
      %p153 = por %p151, %p152
      %p154 = scmp.ne.s32.totalorder %s145, %s146
      %p155 = scmp.eq.s32.totalorder %s30, 0
      %p156 = por %p154, %p155
      %p157 = scmp.ne.s32.totalorder %s145, %s146
      %p158 = scmp.eq.s32.totalorder %s31, 1
      %p159 = por %p157, %p158
      %p161 = scmp.ne.s32.totalorder %s146, %s160
      %p162 = scmp.eq.s32.totalorder %s31, 0
      %p163 = por %p161, %p162
      %s165 = sadd.s32 %s164, 1
      %p168 = scmp.eq.s32.totalorder %s25, 1
      %p169 = scmp.ne.s32.totalorder %s164, %s166
      %p170 = scmp.eq.s32.totalorder %s25, 0
      %p171 = por %p169, %p170
      %p172 = scmp.ne.s32.totalorder %s164, %s166
      %p173 = scmp.eq.s32.totalorder %s30, 1
      %p174 = por %p172, %p173
      %p175 = scmp.ne.s32.totalorder %s166, %s167
      %p176 = scmp.eq.s32.totalorder %s30, 0
      %p177 = por %p175, %p176
      %p178 = scmp.ne.s32.totalorder %s166, %s167
      %p179 = scmp.eq.s32.totalorder %s31, 1
      %p180 = por %p178, %p179
      %p182 = scmp.ne.s32.totalorder %s167, %s181
      %p183 = scmp.eq.s32.totalorder %s31, 0
      %p184 = por %p182, %p183
      %s186 = sadd.s32 %s185, 1
      %p189 = scmp.eq.s32.totalorder %s25, 1
      %p190 = scmp.ne.s32.totalorder %s185, %s187
      %p191 = scmp.eq.s32.totalorder %s25, 0
      %p192 = por %p190, %p191
      %p193 = scmp.ne.s32.totalorder %s185, %s187
      %p194 = scmp.eq.s32.totalorder %s30, 1
      %p195 = por %p193, %p194
      %p196 = scmp.ne.s32.totalorder %s187, %s188
      %p197 = scmp.eq.s32.totalorder %s30, 0
      %p198 = por %p196, %p197
      %p199 = scmp.ne.s32.totalorder %s187, %s188
      %p200 = scmp.eq.s32.totalorder %s31, 1
      %p201 = por %p199, %p200
      %p203 = scmp.ne.s32.totalorder %s188, %s202
      %p204 = scmp.eq.s32.totalorder %s31, 0
      %p205 = por %p203, %p204
      %s207 = sadd.s32 %s206, 1
      %p210 = scmp.eq.s32.totalorder %s25, 1
      %p211 = scmp.ne.s32.totalorder %s206, %s208
      %p212 = scmp.eq.s32.totalorder %s25, 0
      %p213 = por %p211, %p212
      %p214 = scmp.ne.s32.totalorder %s206, %s208
      %p215 = scmp.eq.s32.totalorder %s30, 1
      %p216 = por %p214, %p215
      %p217 = scmp.ne.s32.totalorder %s208, %s209
      %p218 = scmp.eq.s32.totalorder %s30, 0
      %p219 = por %p217, %p218
      %p220 = scmp.ne.s32.totalorder %s208, %s209
      %p221 = scmp.eq.s32.totalorder %s31, 1
      %p222 = por %p220, %p221
      %p224 = scmp.ne.s32.totalorder %s209, %s223
      %p225 = scmp.eq.s32.totalorder %s31, 0
      %p226 = por %p224, %p225
      %s228 = sadd.s32 %s227, 1
      %p231 = scmp.eq.s32.totalorder %s25, 1
      %p232 = scmp.ne.s32.totalorder %s227, %s229
      %p233 = scmp.eq.s32.totalorder %s25, 0
      %p234 = por %p232, %p233
      %p235 = scmp.ne.s32.totalorder %s227, %s229
      %p236 = scmp.eq.s32.totalorder %s30, 1
      %p237 = por %p235, %p236
      %p238 = scmp.ne.s32.totalorder %s229, %s230
      %p239 = scmp.eq.s32.totalorder %s30, 0
      %p240 = por %p238, %p239
      %p241 = scmp.ne.s32.totalorder %s229, %s230
      %p242 = scmp.eq.s32.totalorder %s31, 1
      %p243 = por %p241, %p242
      %p245 = scmp.ne.s32.totalorder %s230, %s244
      %p246 = scmp.eq.s32.totalorder %s31, 0
      %p247 = por %p245, %p246
      %s249 = sadd.s32 %s248, 1
      %p252 = scmp.eq.s32.totalorder %s25, 1
      %p253 = scmp.ne.s32.totalorder %s248, %s250
      %p254 = scmp.eq.s32.totalorder %s25, 0
      %p255 = por %p253, %p254
      %p256 = scmp.ne.s32.totalorder %s248, %s250
      %p257 = scmp.eq.s32.totalorder %s30, 1
      %p258 = por %p256, %p257
      %p259 = scmp.ne.s32.totalorder %s250, %s251
      %p260 = scmp.eq.s32.totalorder %s30, 0
      %p261 = por %p259, %p260
      %p262 = scmp.ne.s32.totalorder %s250, %s251
      %p263 = scmp.eq.s32.totalorder %s31, 1
      %p264 = por %p262, %p263
      %p266 = scmp.ne.s32.totalorder %s251, %s265
      %p267 = scmp.eq.s32.totalorder %s31, 0
      %p268 = por %p266, %p267
      %s270 = sadd.s32 %s269, 1
      %p273 = scmp.eq.s32.totalorder %s25, 1
      %p274 = scmp.ne.s32.totalorder %s269, %s271
      %p275 = scmp.eq.s32.totalorder %s25, 0
      %p276 = por %p274, %p275
      %p277 = scmp.ne.s32.totalorder %s269, %s271
      %p278 = scmp.eq.s32.totalorder %s30, 1
      %p279 = por %p277, %p278
      %p280 = scmp.ne.s32.totalorder %s271, %s272
      %p281 = scmp.eq.s32.totalorder %s30, 0
      %p282 = por %p280, %p281
      %p283 = scmp.ne.s32.totalorder %s271, %s272
      %p284 = scmp.eq.s32.totalorder %s31, 1
      %p285 = por %p283, %p284
      %p287 = scmp.ne.s32.totalorder %s272, %s286
      %p288 = scmp.eq.s32.totalorder %s31, 0
      %p289 = por %p287, %p288
      %s291 = sadd.s32 %s290, 1
      %p294 = scmp.eq.s32.totalorder %s25, 1
      %p295 = scmp.ne.s32.totalorder %s290, %s292
      %p296 = scmp.eq.s32.totalorder %s25, 0
      %p297 = por %p295, %p296
      %p298 = scmp.ne.s32.totalorder %s290, %s292
      %p299 = scmp.eq.s32.totalorder %s30, 1
      %p300 = por %p298, %p299
      %p301 = scmp.ne.s32.totalorder %s292, %s293
      %p302 = scmp.eq.s32.totalorder %s30, 0
      %p303 = por %p301, %p302
      %p304 = scmp.ne.s32.totalorder %s292, %s293
      %p305 = scmp.eq.s32.totalorder %s31, 1
      %p306 = por %p304, %p305
      %p308 = scmp.ne.s32.totalorder %s293, %s307
      %p309 = scmp.eq.s32.totalorder %s31, 0
      %p310 = por %p308, %p309
      %s312 = sadd.s32 %s311, 1
      %p315 = scmp.eq.s32.totalorder %s25, 1
      %p316 = scmp.ne.s32.totalorder %s311, %s313
      %p317 = scmp.eq.s32.totalorder %s25, 0
      %p318 = por %p316, %p317
      %p319 = scmp.ne.s32.totalorder %s311, %s313
      %p320 = scmp.eq.s32.totalorder %s30, 1
      %p321 = por %p319, %p320
      %p322 = scmp.ne.s32.totalorder %s313, %s314
      %p323 = scmp.eq.s32.totalorder %s30, 0
      %p324 = por %p322, %p323
      %p325 = scmp.ne.s32.totalorder %s313, %s314
      %p326 = scmp.eq.s32.totalorder %s31, 1
      %p327 = por %p325, %p326
      %p329 = scmp.ne.s32.totalorder %s314, %s328
      %p330 = scmp.eq.s32.totalorder %s31, 0
      %p331 = por %p329, %p330
      %s333 = sadd.s32 %s332, 1
      %p336 = scmp.eq.s32.totalorder %s25, 1
      %p337 = scmp.ne.s32.totalorder %s332, %s334
      %p338 = scmp.eq.s32.totalorder %s25, 0
      %p339 = por %p337, %p338
      %p340 = scmp.ne.s32.totalorder %s332, %s334
      %p341 = scmp.eq.s32.totalorder %s30, 1
      %p342 = por %p340, %p341
      %p343 = scmp.ne.s32.totalorder %s334, %s335
      %p344 = scmp.eq.s32.totalorder %s30, 0
      %p345 = por %p343, %p344
      %p346 = scmp.ne.s32.totalorder %s334, %s335
      %p347 = scmp.eq.s32.totalorder %s31, 1
      %p348 = por %p346, %p347
      %p350 = scmp.ne.s32.totalorder %s335, %s349
      %p351 = scmp.eq.s32.totalorder %s31, 0
      %p352 = por %p350, %p351
      %s354 = sadd.s32 %s353, 1
      %p357 = scmp.eq.s32.totalorder %s25, 1
      %p358 = scmp.ne.s32.totalorder %s353, %s355
      %p359 = scmp.eq.s32.totalorder %s25, 0
      %p360 = por %p358, %p359
      %p361 = scmp.ne.s32.totalorder %s353, %s355
      %p362 = scmp.eq.s32.totalorder %s30, 1
      %p363 = por %p361, %p362
      %p364 = scmp.ne.s32.totalorder %s355, %s356
      %p365 = scmp.eq.s32.totalorder %s30, 0
      %p366 = por %p364, %p365
      %p367 = scmp.ne.s32.totalorder %s355, %s356
      %p368 = scmp.eq.s32.totalorder %s31, 1
      %p369 = por %p367, %p368
      %p371 = scmp.ne.s32.totalorder %s356, %s370
      %p372 = scmp.eq.s32.totalorder %s31, 0
      %p373 = por %p371, %p372
      %s374 = ssub.s32 %s25, %s32
      %p375 = scmp.eq.s32.totalorder %s374, 0
      %s377 = sadd.s32 %s376, 1
      %s378 = scalar_select %p375, %s376, %s377
      %p381 = pneg %p375
      %p382 = scmp.eq.s32.totalorder %s25, 1
      %p383 = por %p381, %p382
      %p384 = scmp.ne.s32.totalorder %s376, %s379
      %p385 = scmp.eq.s32.totalorder %s25, 0
      %p386 = por %p384, %p385
      %p387 = scmp.ne.s32.totalorder %s376, %s379
      %p388 = scmp.eq.s32.totalorder %s30, 1
      %p389 = por %p387, %p388
      %p390 = scmp.ne.s32.totalorder %s379, %s380
      %p391 = scmp.eq.s32.totalorder %s30, 0
      %p392 = por %p390, %p391
      %p393 = scmp.ne.s32.totalorder %s379, %s380
      %p394 = scmp.eq.s32.totalorder %s31, 1
      %p395 = por %p393, %p394
      %p397 = scmp.ne.s32.totalorder %s380, %s396
      %p398 = scmp.eq.s32.totalorder %s31, 0
      %p399 = por %p397, %p398
      %p400 = scmp.le.s32.totalorder 1, %s25
      %p401 = scmp.lt.s32.totalorder %s25, 3
      %p402 = pnand %p400, %p401
      %p403 = pneg %p402
      // Predicated region
      $region9: #{tpu_custom_call.1} parent=5 // pred_check
        _
      $region10: #{tpu_custom_call.1} parent=5 // pred_check_branch
        %405 = sbr.rel (%p402) target = $region12
      $region11: #{tpu_custom_call.1} parent=5 // pred_region
        %s406 = ssub.s32 %s25, 1
        // Predicated region
        $region13: #{tpu_custom_call.1} parent=11 // pred_check
          %p407 = pneg %p72
        $region14: #{tpu_custom_call.1} parent=11 // pred_check_branch
          %409 = sbr.rel (%p407) target = $region16
        $region15: #{tpu_custom_call.1} parent=11 // pred_region
          _
        $region16: #{tpu_custom_call.1} parent=11 // pred_fallthru
          _
        // Predicated region
        $region17: #{tpu_custom_call.1} parent=11 // pred_check
          %p410 = pneg %p93
        $region18: #{tpu_custom_call.1} parent=11 // pred_check_branch
          %412 = sbr.rel (%p410) target = $region20
        $region19: #{tpu_custom_call.1} parent=11 // pred_region
          _
        $region20: #{tpu_custom_call.1} parent=11 // pred_fallthru
          _
        // Predicated region
        $region21: #{tpu_custom_call.1} parent=11 // pred_check
          %p413 = pneg %p114
        $region22: #{tpu_custom_call.1} parent=11 // pred_check_branch
          %415 = sbr.rel (%p413) target = $region24
        $region23: #{tpu_custom_call.1} parent=11 // pred_region
          _
        $region24: #{tpu_custom_call.1} parent=11 // pred_fallthru
          _
        // Predicated region
        $region25: #{tpu_custom_call.1} parent=11 // pred_check
          %p416 = pneg %p135
        $region26: #{tpu_custom_call.1} parent=11 // pred_check_branch
          %418 = sbr.rel (%p416) target = $region28
        $region27: #{tpu_custom_call.1} parent=11 // pred_region
          _
        $region28: #{tpu_custom_call.1} parent=11 // pred_fallthru
          _
        // Predicated region
        $region29: #{tpu_custom_call.1} parent=11 // pred_check
          %p419 = pneg %p156
        $region30: #{tpu_custom_call.1} parent=11 // pred_check_branch
          %421 = sbr.rel (%p419) target = $region32
        $region31: #{tpu_custom_call.1} parent=11 // pred_region
          _
        $region32: #{tpu_custom_call.1} parent=11 // pred_fallthru
          _
        // Predicated region
        $region33: #{tpu_custom_call.1} parent=11 // pred_check
          %p422 = pneg %p177
        $region34: #{tpu_custom_call.1} parent=11 // pred_check_branch
          %424 = sbr.rel (%p422) target = $region36
        $region35: #{tpu_custom_call.1} parent=11 // pred_region
          _
        $region36: #{tpu_custom_call.1} parent=11 // pred_fallthru
          _
        // Predicated region
        $region37: #{tpu_custom_call.1} parent=11 // pred_check
          %p425 = pneg %p198
        $region38: #{tpu_custom_call.1} parent=11 // pred_check_branch
          %427 = sbr.rel (%p425) target = $region40
        $region39: #{tpu_custom_call.1} parent=11 // pred_region
          _
        $region40: #{tpu_custom_call.1} parent=11 // pred_fallthru
          _
        // Predicated region
        $region41: #{tpu_custom_call.1} parent=11 // pred_check
          %p428 = pneg %p219
        $region42: #{tpu_custom_call.1} parent=11 // pred_check_branch
          %430 = sbr.rel (%p428) target = $region44
        $region43: #{tpu_custom_call.1} parent=11 // pred_region
          _
        $region44: #{tpu_custom_call.1} parent=11 // pred_fallthru
          _
        // Predicated region
        $region45: #{tpu_custom_call.1} parent=11 // pred_check
          %p431 = pneg %p240
        $region46: #{tpu_custom_call.1} parent=11 // pred_check_branch
          %433 = sbr.rel (%p431) target = $region48
        $region47: #{tpu_custom_call.1} parent=11 // pred_region
          _
        $region48: #{tpu_custom_call.1} parent=11 // pred_fallthru
          _
        // Predicated region
        $region49: #{tpu_custom_call.1} parent=11 // pred_check
          %p434 = pneg %p261
        $region50: #{tpu_custom_call.1} parent=11 // pred_check_branch
          %436 = sbr.rel (%p434) target = $region52
        $region51: #{tpu_custom_call.1} parent=11 // pred_region
          _
        $region52: #{tpu_custom_call.1} parent=11 // pred_fallthru
          _
        // Predicated region
        $region53: #{tpu_custom_call.1} parent=11 // pred_check
          %p437 = pneg %p282
        $region54: #{tpu_custom_call.1} parent=11 // pred_check_branch
          %439 = sbr.rel (%p437) target = $region56
        $region55: #{tpu_custom_call.1} parent=11 // pred_region
          _
        $region56: #{tpu_custom_call.1} parent=11 // pred_fallthru
          _
        // Predicated region
        $region57: #{tpu_custom_call.1} parent=11 // pred_check
          %p440 = pneg %p303
        $region58: #{tpu_custom_call.1} parent=11 // pred_check_branch
          %442 = sbr.rel (%p440) target = $region60
        $region59: #{tpu_custom_call.1} parent=11 // pred_region
          _
        $region60: #{tpu_custom_call.1} parent=11 // pred_fallthru
          _
        // Predicated region
        $region61: #{tpu_custom_call.1} parent=11 // pred_check
          %p443 = pneg %p324
        $region62: #{tpu_custom_call.1} parent=11 // pred_check_branch
          %445 = sbr.rel (%p443) target = $region64
        $region63: #{tpu_custom_call.1} parent=11 // pred_region
          _
        $region64: #{tpu_custom_call.1} parent=11 // pred_fallthru
          _
        // Predicated region
        $region65: #{tpu_custom_call.1} parent=11 // pred_check
          %p446 = pneg %p345
        $region66: #{tpu_custom_call.1} parent=11 // pred_check_branch
          %448 = sbr.rel (%p446) target = $region68
        $region67: #{tpu_custom_call.1} parent=11 // pred_region
          _
        $region68: #{tpu_custom_call.1} parent=11 // pred_fallthru
          _
        // Predicated region
        $region69: #{tpu_custom_call.1} parent=11 // pred_check
          %p449 = pneg %p366
        $region70: #{tpu_custom_call.1} parent=11 // pred_check_branch
          %451 = sbr.rel (%p449) target = $region72
        $region71: #{tpu_custom_call.1} parent=11 // pred_region
          _
        $region72: #{tpu_custom_call.1} parent=11 // pred_fallthru
          _
      $region12: #{tpu_custom_call.1} parent=5 // pred_fallthru
        _
      %p452 = scmp.lt.s32.totalorder %s25, 2
      // Predicated region
      $region73: #{tpu_custom_call.1} parent=5 // pred_check
        %p453 = pneg %p452
      $region74: #{tpu_custom_call.1} parent=5 // pred_check_branch
        %455 = sbr.rel (%p453) target = $region76
      $region75: #{tpu_custom_call.1} parent=5 // pred_region
        // Predicated region
        $region77: #{tpu_custom_call.1} parent=75 // pred_check
          %p456 = pneg %p45
        $region78: #{tpu_custom_call.1} parent=75 // pred_check_branch
          %458 = sbr.rel (%p456) target = $region80
        $region79: #{tpu_custom_call.1} parent=75 // pred_region
          %s459 = smul.u32 2, %s25
          %p460 = scmp.lt.s32.totalorder %s459, 3
          %s461 = scalar_select %p460, %s459, 3
          %s462 = smul.addr %s461, 2
          %s463 = smul.addr %s462, 8
          %s464 = scalar_lea.vmem %s0, %s463
          %s465 = smul.u32 2, %s25
        $region80: #{tpu_custom_call.1} parent=75 // pred_fallthru
          _
      $region76: #{tpu_custom_call.1} parent=5 // pred_fallthru
        _
      %p466 = scmp.le.s32.totalorder 1, %s25
      %p467 = scmp.lt.s32.totalorder %s25, 3
      %p468 = pnand %p466, %p467
      %p469 = pneg %p468
      // Predicated region
      $region81: #{tpu_custom_call.1} parent=5 // pred_check
        _
      $region82: #{tpu_custom_call.1} parent=5 // pred_check_branch
        %471 = sbr.rel (%p468) target = $region84
      $region83: #{tpu_custom_call.1} parent=5 // pred_region
        %s472 = ssub.s32 %s25, 1
        %s473 = smul.u32 2, %s30
        %p474 = scmp.lt.s32.totalorder %s473, 3
        %s475 = scalar_select %p474, %s473, 3
        %s476 = smul.addr %s475, 2
        %s477 = smul.addr %s476, 8
        %s478 = scalar_lea.vmem %s0, %s477
        %p479 = pneg %p51
        %p480 = pneg %p48
        %p481 = pneg %p72
        %p482 = pneg %p69
        %p483 = pneg %p93
        %p484 = pneg %p90
        %p485 = pneg %p114
        %p486 = pneg %p111
        %p487 = pneg %p135
        %p488 = pneg %p132
        %p489 = pneg %p156
        %p490 = pneg %p153
        %p491 = pneg %p177
        %p492 = pneg %p174
        %p493 = pneg %p198
        %p494 = pneg %p195
        %p495 = pneg %p219
        %p496 = pneg %p216
        %p497 = pneg %p240
        %p498 = pneg %p237
        %p499 = pneg %p261
        %p500 = pneg %p258
        %p501 = pneg %p282
        %p502 = pneg %p279
        %p503 = pneg %p303
        %p504 = pneg %p300
        %p505 = pneg %p324
        %p506 = pneg %p321
        %p507 = pneg %p345
        %p508 = pneg %p342
        %p509 = pneg %p366
        %p510 = pneg %p363
        %p511 = pneg %p392
        %p512 = pneg %p389
        %s513 = sand.u32 %s379, 1
        %s514 = scalar_lea.sflag [#allocation4], %s513
        %s515 = sand.u32 %s379, 1
        %s516 = smul.addr %s515, 32
        %s517 = scalar_lea.vmem [#allocation3], %s516
        %s518 = smul.u32 2, %s30
        %p519 = scmp.lt.s32.totalorder %s518, 3
        %s520 = scalar_select %p519, %s518, 3
        %s521 = smul.addr %s520, 2
        %s522 = smul.addr %s521, 8
        %s523 = scalar_lea.vmem %s0, %s522
        %s524 = smul.u32 2, %s30
        %s525 = smul.u32 2, %s30
        %526 = vst [vmem:[#allocation2] sm:$0xff] 0.0
        %527 = vst [vmem:[#allocation2 + $0x20] sm:$0xff] 0.0
        %528 = vst [vmem:[#allocation2 + $0x40] sm:$0xff] 0.0
        %529 = vst [vmem:[#allocation2 + $0x60] sm:$0xff] 0.0
        %530 = vst [vmem:[#allocation2 + $0x18] sm:$0xff] 0.0
        %531 = vst [vmem:[#allocation2 + $0x38] sm:$0xff] 0.0
        %532 = vst [vmem:[#allocation2 + $0x58] sm:$0xff] 0.0
        %533 = vst [vmem:[#allocation2 + $0x78] sm:$0xff] 0.0
        %v534 = vld [vmem:[%s1] sm:$0xff]
        %v535 = vld [vmem:[%s1 + $0x8] sm:$0xff]
        %v536 = vld [vmem:[%s1 + $0x10] sm:$0xff]
        %v537 = vld [vmem:[%s1 + $0x18] sm:$0xff]
        %v538 = vld [vmem:[%s2] sm:$0xff]
        %v539 = vld [vmem:[%s2 + $0x8] sm:$0xff]
        %v540 = vld [vmem:[%s2 + $0x10] sm:$0xff]
        %v541 = vld [vmem:[%s2 + $0x18] sm:$0xff]
        %v542 = vld [vmem:[%s3] sm:$0xff]
        %v543 = vld [vmem:[%s3 + $0x8] sm:$0xff]
        %v544 = vld [vmem:[%s3 + $0x10] sm:$0xff]
        %v545 = vld [vmem:[%s3 + $0x18] sm:$0xff]
        %v546 = vld [vmem:[%s5] sm:$0xff]
        %v547 = vld [vmem:[%s5 + $0x8] sm:$0xff]
        %v548 = vld [vmem:[%s5 + $0x10] sm:$0xff]
        %v549 = vld [vmem:[%s5 + $0x18] sm:$0xff]
        %v550 = vld [vmem:[%s6] sm:$0xff]
        %v551 = vld [vmem:[%s6 + $0x8] sm:$0xff]
        %v552 = vld [vmem:[%s6 + $0x10] sm:$0xff]
        %v553 = vld [vmem:[%s6 + $0x18] sm:$0xff]
        %v554 = vld [vmem:[%s12] sm:$0xff]
        %v555 = vld [vmem:[%s13] sm:$0xff]
        %v556 = vld [vmem:[%s7] sm:$0x3]
        %v557 = vld [vmem:[%s8] sm:$0x3]
        %v558 = vld [vmem:[%s9] sm:$0xff]
        %v559 = vld [vmem:[%s9 + $0x8] sm:$0xff]
        %v560 = vld [vmem:[%s9 + $0x10] sm:$0xff]
        %v561 = vld [vmem:[%s9 + $0x18] sm:$0xff]
        %v562 = vld [vmem:[%s10] sm:$0xff]
        %v563 = vld [vmem:[%s10 + $0x8] sm:$0xff]
        %v564 = vld [vmem:[%s10 + $0x10] sm:$0xff]
        %v565 = vld [vmem:[%s10 + $0x18] sm:$0xff]
        %v566 = vld [vmem:[%s11] sm:$0xff]
        %v567 = vld [vmem:[%s4] sm:$0xff]
        %v568 = vld [vmem:[%s4 + $0x8] sm:$0xff]
        %v569 = vld [vmem:[%s4 + $0x10] sm:$0xff]
        %v570 = vld [vmem:[%s4 + $0x18] sm:$0xff]
        %v571 = vld [vmem:[%s14] ss:$4 sm:$0x3]
        %s572 = scalar_lea.vmem %s14, 2
        %v573 = vld [vmem:[%s572] ss:$4 sm:$0x3]
        %v574 = vld [vmem:[%s523] sm:$0xff]
        %v575 = vld [vmem:[%s523 + $0x8] sm:$0xff]
        %vm576 = vcmask 64512
        %v578 = vsel %vm576, %v534, 0
        %v581 = vsel %vm576, %v535, 0
        %v584 = vsel %vm576, %v536, 0
        %v587 = vsel %vm576, %v537, 0
        %589 = vmatpush.msra.mxu0 0.0
        %590 = vmatpush.msra.mxu0 0.0
        %591 = vmatpush.msra.mxu0 0.0
        %592 = vmatpush.msra.mxu0 0.0
        %593 = vmatpush.msra.mxu0 0.0
        %594 = vmatpush.msra.mxu0 0.0
        %595 = vmatpush.msra.mxu0 0.0
        %596 = vmatpush.msra.mxu0 0.0
        %597 = vmatpush.msra.mxu0 0.0
        %598 = vmatpush.msra.mxu0 0.0
        %599 = vmatpush.msra.mxu0 0.0
        %600 = vmatpush.msra.mxu0 0.0
        %601 = vmatpush.msra.mxu0 0.0
        %602 = vmatpush.msra.mxu0 0.0
        %603 = vmatpush.msra.mxu0 0.0
        %604 = vmatpush.msra.mxu0 %v574
        %605 = vmatmul.f32.gmra.mxu0 %v578
        %v606 = vpop.f32.mrf.mxu0
        %v607 = vadd.f32 0.0, %v606
        %608 = vmatmul.f32.gmra.mxu0 %v581
        %v609 = vpop.f32.mrf.mxu0
        %v610 = vadd.f32 0.0, %v609
        %611 = vmatmul.f32.gmra.mxu0 %v584
        %v612 = vpop.f32.mrf.mxu0
        %v613 = vadd.f32 0.0, %v612
        %614 = vmatmul.f32.gmra.mxu0 %v587
        %v615 = vpop.f32.mrf.mxu0
        %v616 = vadd.f32 0.0, %v615
        %617 = vdwg.mxu0
        %618 = vmatpush.msra.mxu0 0.0
        %619 = vmatpush.msra.mxu0 0.0
        %620 = vmatpush.msra.mxu0 0.0
        %621 = vmatpush.msra.mxu0 0.0
        %622 = vmatpush.msra.mxu0 0.0
        %623 = vmatpush.msra.mxu0 0.0
        %624 = vmatpush.msra.mxu0 0.0
        %625 = vmatpush.msra.mxu0 0.0
        %626 = vmatpush.msra.mxu0 0.0
        %627 = vmatpush.msra.mxu0 0.0
        %628 = vmatpush.msra.mxu0 0.0
        %629 = vmatpush.msra.mxu0 0.0
        %630 = vmatpush.msra.mxu0 0.0
        %631 = vmatpush.msra.mxu0 0.0
        %632 = vmatpush.msra.mxu0 0.0
        %633 = vmatpush.msra.mxu0 %v575
        %634 = vmatmul.f32.gmra.mxu0 %v578
        %v635 = vpop.f32.mrf.mxu0
        %v636 = vadd.f32 0.0, %v635
        %637 = vmatmul.f32.gmra.mxu0 %v581
        %v638 = vpop.f32.mrf.mxu0
        %v639 = vadd.f32 0.0, %v638
        %640 = vmatmul.f32.gmra.mxu0 %v584
        %v641 = vpop.f32.mrf.mxu0
        %v642 = vadd.f32 0.0, %v641
        %643 = vmatmul.f32.gmra.mxu0 %v587
        %v644 = vpop.f32.mrf.mxu0
        %v645 = vadd.f32 0.0, %v644
        %646 = vdwg.mxu0
        %648 = vset.pattern.permute.xlu0 0
        %649 = vperm.xlu0 %648, %v538
        %v650 = vpop.permute.xlu0 %649
        %653 = vset.pattern.permute.xlu0 0
        %654 = vperm.xlu0 %653, %v539
        %v655 = vpop.permute.xlu0 %654
        %658 = vset.pattern.permute.xlu0 0
        %659 = vperm.xlu0 %658, %v540
        %v660 = vpop.permute.xlu0 %659
        %663 = vset.pattern.permute.xlu0 0
        %664 = vperm.xlu0 %663, %v541
        %v665 = vpop.permute.xlu0 %664
        %v667 = vmul.f32 %v607, %v650
        %v668 = vmul.f32 %v636, %v650
        %v669 = vmul.f32 %v610, %v655
        %v670 = vmul.f32 %v639, %v655
        %v671 = vmul.f32 %v613, %v660
        %v672 = vmul.f32 %v642, %v660
        %v673 = vmul.f32 %v616, %v665
        %v674 = vmul.f32 %v645, %v665
        %676 = vset.pattern.permute.xlu0 0
        %677 = vperm.xlu0 %676, %v542
        %v678 = vpop.permute.xlu0 %677
        %681 = vset.pattern.permute.xlu0 0
        %682 = vperm.xlu0 %681, %v543
        %v683 = vpop.permute.xlu0 %682
        %686 = vset.pattern.permute.xlu0 0
        %687 = vperm.xlu0 %686, %v544
        %v688 = vpop.permute.xlu0 %687
        %691 = vset.pattern.permute.xlu0 0
        %692 = vperm.xlu0 %691, %v545
        %v693 = vpop.permute.xlu0 %692
        %v695 = vadd.f32 %v667, %v678
        %v696 = vadd.f32 %v668, %v678
        %v697 = vadd.f32 %v669, %v683
        %v698 = vadd.f32 %v670, %v683
        %v699 = vadd.f32 %v671, %v688
        %v700 = vadd.f32 %v672, %v688
        %v701 = vadd.f32 %v673, %v693
        %v702 = vadd.f32 %v674, %v693
        %v703 = vmax.f32 %v695, 0.0
        %v704 = vmax.f32 %v696, 0.0
        %v705 = vmax.f32 %v697, 0.0
        %v706 = vmax.f32 %v698, 0.0
        %v707 = vmax.f32 %v699, 0.0
        %v708 = vmax.f32 %v700, 0.0
        %v709 = vmax.f32 %v701, 0.0
        %v710 = vmax.f32 %v702, 0.0
        %711 = vst [vmem:[#allocation2 + $0x8] sm:$0xff] %v703
        %712 = vst [vmem:[#allocation2 + $0x10] sm:$0xff] %v704
        %713 = vst [vmem:[#allocation2 + $0x28] sm:$0xff] %v705
        %714 = vst [vmem:[#allocation2 + $0x30] sm:$0xff] %v706
        %715 = vst [vmem:[#allocation2 + $0x48] sm:$0xff] %v707
        %716 = vst [vmem:[#allocation2 + $0x50] sm:$0xff] %v708
        %717 = vst [vmem:[#allocation2 + $0x68] sm:$0xff] %v709
        %718 = vst [vmem:[#allocation2 + $0x70] sm:$0xff] %v710
        %v719 = vld [vmem:[#allocation2] sm:$0xff]
        %v720 = vld [vmem:[#allocation2 + $0x8] sm:$0xff]
        %v721 = vld [vmem:[#allocation2 + $0x10] sm:$0xff]
        %v722 = vld [vmem:[#allocation2 + $0x20] sm:$0xff]
        %v723 = vld [vmem:[#allocation2 + $0x28] sm:$0xff]
        %v724 = vld [vmem:[#allocation2 + $0x30] sm:$0xff]
        %v725 = vld [vmem:[#allocation2 + $0x40] sm:$0xff]
        %v726 = vld [vmem:[#allocation2 + $0x48] sm:$0xff]
        %v727 = vld [vmem:[#allocation2 + $0x50] sm:$0xff]
        %v728 = vld [vmem:[#allocation2 + $0x60] sm:$0xff]
        %v729 = vld [vmem:[#allocation2 + $0x68] sm:$0xff]
        %v730 = vld [vmem:[#allocation2 + $0x70] sm:$0xff]
        %v732 = vperm.slane %v571, 0
        %v733 = vperm.slane %v571, 1
        %734 = vrot.lane.b32.xlu0 %v732, 111
        %v735 = vpop.permute.xlu0 %734
        %736 = vrot.lane.b32.xlu0 %v733, 111
        %v737 = vpop.permute.xlu0 %736
        %vm738 = vcmask 908288
        %v739 = vsel %vm738, %v735, %v737
        %v743 = vmul.f32 %v719, %v735
        %v744 = vmul.f32 %v720, %v739
        %v745 = vmul.f32 %v721, %v737
        %v746 = vmul.f32 %v722, %v735
        %v747 = vmul.f32 %v723, %v739
        %v748 = vmul.f32 %v724, %v737
        %v749 = vmul.f32 %v725, %v735
        %v750 = vmul.f32 %v726, %v739
        %v751 = vmul.f32 %v727, %v737
        %v752 = vmul.f32 %v728, %v735
        %v753 = vmul.f32 %v729, %v739
        %v754 = vmul.f32 %v730, %v737
        %756 = vset.pattern.permute.xlu0 0
        %757 = vperm.xlu0 %756, %v567
        %v758 = vpop.permute.xlu0 %757
        %761 = vset.pattern.permute.xlu0 0
        %762 = vperm.xlu0 %761, %v568
        %v763 = vpop.permute.xlu0 %762
        %766 = vset.pattern.permute.xlu0 0
        %767 = vperm.xlu0 %766, %v569
        %v768 = vpop.permute.xlu0 %767
        %771 = vset.pattern.permute.xlu0 0
        %772 = vperm.xlu0 %771, %v570
        %v773 = vpop.permute.xlu0 %772
        %v775 = vmul.f32 %v758, %v743
        %v776 = vmul.f32 %v758, %v744
        %v777 = vmul.f32 %v758, %v745
        %v778 = vmul.f32 %v763, %v746
        %v779 = vmul.f32 %v763, %v747
        %v780 = vmul.f32 %v763, %v748
        %v781 = vmul.f32 %v768, %v749
        %v782 = vmul.f32 %v768, %v750
        %v783 = vmul.f32 %v768, %v751
        %v784 = vmul.f32 %v773, %v752
        %v785 = vmul.f32 %v773, %v753
        %v786 = vmul.f32 %v773, %v754
        %v787 = vadd.f32 %v775, 0.0
        %v788 = vadd.f32 %v776, 0.0
        %v789 = vadd.f32 %v777, 0.0
        %v790 = vadd.f32 %v778, 0.0
        %v791 = vadd.f32 %v779, 0.0
        %v792 = vadd.f32 %v780, 0.0
        %v793 = vadd.f32 %v781, 0.0
        %v794 = vadd.f32 %v782, 0.0
        %v795 = vadd.f32 %v783, 0.0
        %v796 = vadd.f32 %v784, 0.0
        %v797 = vadd.f32 %v785, 0.0
        %v798 = vadd.f32 %v786, 0.0
        %799 = vset.pattern.permute.xlu0 1
        %800 = vperm.xlu0 %799, %v567
        %v801 = vpop.permute.xlu0 %800
        %803 = vset.pattern.permute.xlu0 1
        %804 = vperm.xlu0 %803, %v568
        %v805 = vpop.permute.xlu0 %804
        %807 = vset.pattern.permute.xlu0 1
        %808 = vperm.xlu0 %807, %v569
        %v809 = vpop.permute.xlu0 %808
        %811 = vset.pattern.permute.xlu0 1
        %812 = vperm.xlu0 %811, %v570
        %v813 = vpop.permute.xlu0 %812
        %v815 = vmul.f32 %v801, %v719
        %v816 = vmul.f32 %v801, %v720
        %v817 = vmul.f32 %v801, %v721
        %v818 = vmul.f32 %v805, %v722
        %v819 = vmul.f32 %v805, %v723
        %v820 = vmul.f32 %v805, %v724
        %v821 = vmul.f32 %v809, %v725
        %v822 = vmul.f32 %v809, %v726
        %v823 = vmul.f32 %v809, %v727
        %v824 = vmul.f32 %v813, %v728
        %v825 = vmul.f32 %v813, %v729
        %v826 = vmul.f32 %v813, %v730
        %839 = vrot.lane.b32.xlu0 %v815, 127
        %v840 = vpop.permute.xlu0 %839
        %841 = vrot.lane.b32.xlu0 %v816, 127
        %v842 = vpop.permute.xlu0 %841
        %843 = vrot.lane.b32.xlu0 %v817, 127
        %v844 = vpop.permute.xlu0 %843
        %845 = vrot.lane.b32.xlu0 %v818, 127
        %v846 = vpop.permute.xlu0 %845
        %847 = vrot.lane.b32.xlu0 %v819, 127
        %v848 = vpop.permute.xlu0 %847
        %849 = vrot.lane.b32.xlu0 %v820, 127
        %v850 = vpop.permute.xlu0 %849
        %851 = vrot.lane.b32.xlu0 %v821, 127
        %v852 = vpop.permute.xlu0 %851
        %853 = vrot.lane.b32.xlu0 %v822, 127
        %v854 = vpop.permute.xlu0 %853
        %855 = vrot.lane.b32.xlu0 %v823, 127
        %v856 = vpop.permute.xlu0 %855
        %857 = vrot.lane.b32.xlu0 %v824, 127
        %v858 = vpop.permute.xlu0 %857
        %859 = vrot.lane.b32.xlu0 %v825, 127
        %v860 = vpop.permute.xlu0 %859
        %861 = vrot.lane.b32.xlu0 %v826, 127
        %v862 = vpop.permute.xlu0 %861
        %vm863 = vcmask 1039360
        %v864 = vsel %vm863, %v840, %v842
        %v865 = vsel %vm863, %v842, %v844
        %v866 = vsel %vm863, %v846, %v848
        %v867 = vsel %vm863, %v848, %v850
        %v868 = vsel %vm863, %v852, %v854
        %v869 = vsel %vm863, %v854, %v856
        %v870 = vsel %vm863, %v858, %v860
        %v871 = vsel %vm863, %v860, %v862
        %v884 = vadd.f32 %v787, %v864
        %v885 = vadd.f32 %v788, %v865
        %v886 = vadd.f32 %v789, %v844
        %v887 = vadd.f32 %v790, %v866
        %v888 = vadd.f32 %v791, %v867
        %v889 = vadd.f32 %v792, %v850
        %v890 = vadd.f32 %v793, %v868
        %v891 = vadd.f32 %v794, %v869
        %v892 = vadd.f32 %v795, %v856
        %v893 = vadd.f32 %v796, %v870
        %v894 = vadd.f32 %v797, %v871
        %v895 = vadd.f32 %v798, %v862
        %v897 = vperm.slane %v573, 0
        %v898 = vperm.slane %v573, 1
        %899 = vrot.lane.b32.xlu0 %v897, 113
        %v900 = vpop.permute.xlu0 %899
        %901 = vrot.lane.b32.xlu0 %v898, 113
        %v902 = vpop.permute.xlu0 %901
        %vm903 = vcmask 924672
        %v904 = vsel %vm903, %v900, %v902
        %v908 = vmul.f32 %v719, %v900
        %v909 = vmul.f32 %v720, %v904
        %v910 = vmul.f32 %v721, %v902
        %v911 = vmul.f32 %v722, %v900
        %v912 = vmul.f32 %v723, %v904
        %v913 = vmul.f32 %v724, %v902
        %v914 = vmul.f32 %v725, %v900
        %v915 = vmul.f32 %v726, %v904
        %v916 = vmul.f32 %v727, %v902
        %v917 = vmul.f32 %v728, %v900
        %v918 = vmul.f32 %v729, %v904
        %v919 = vmul.f32 %v730, %v902
        %920 = vset.pattern.permute.xlu0 2
        %921 = vperm.xlu0 %920, %v567
        %v922 = vpop.permute.xlu0 %921
        %924 = vset.pattern.permute.xlu0 2
        %925 = vperm.xlu0 %924, %v568
        %v926 = vpop.permute.xlu0 %925
        %928 = vset.pattern.permute.xlu0 2
        %929 = vperm.xlu0 %928, %v569
        %v930 = vpop.permute.xlu0 %929
        %932 = vset.pattern.permute.xlu0 2
        %933 = vperm.xlu0 %932, %v570
        %v934 = vpop.permute.xlu0 %933
        %v936 = vmul.f32 %v922, %v908
        %v937 = vmul.f32 %v922, %v909
        %v938 = vmul.f32 %v922, %v910
        %v939 = vmul.f32 %v926, %v911
        %v940 = vmul.f32 %v926, %v912
        %v941 = vmul.f32 %v926, %v913
        %v942 = vmul.f32 %v930, %v914
        %v943 = vmul.f32 %v930, %v915
        %v944 = vmul.f32 %v930, %v916
        %v945 = vmul.f32 %v934, %v917
        %v946 = vmul.f32 %v934, %v918
        %v947 = vmul.f32 %v934, %v919
        %960 = vrot.lane.b32.xlu0 %v936, 126
        %v961 = vpop.permute.xlu0 %960
        %962 = vrot.lane.b32.xlu0 %v937, 126
        %v963 = vpop.permute.xlu0 %962
        %964 = vrot.lane.b32.xlu0 %v938, 126
        %v965 = vpop.permute.xlu0 %964
        %966 = vrot.lane.b32.xlu0 %v939, 126
        %v967 = vpop.permute.xlu0 %966
        %968 = vrot.lane.b32.xlu0 %v940, 126
        %v969 = vpop.permute.xlu0 %968
        %970 = vrot.lane.b32.xlu0 %v941, 126
        %v971 = vpop.permute.xlu0 %970
        %972 = vrot.lane.b32.xlu0 %v942, 126
        %v973 = vpop.permute.xlu0 %972
        %974 = vrot.lane.b32.xlu0 %v943, 126
        %v975 = vpop.permute.xlu0 %974
        %976 = vrot.lane.b32.xlu0 %v944, 126
        %v977 = vpop.permute.xlu0 %976
        %978 = vrot.lane.b32.xlu0 %v945, 126
        %v979 = vpop.permute.xlu0 %978
        %980 = vrot.lane.b32.xlu0 %v946, 126
        %v981 = vpop.permute.xlu0 %980
        %982 = vrot.lane.b32.xlu0 %v947, 126
        %v983 = vpop.permute.xlu0 %982
        %vm984 = vcmask 1031168
        %v985 = vsel %vm984, %v961, %v963
        %v986 = vsel %vm984, %v963, %v965
        %v987 = vsel %vm984, %v967, %v969
        %v988 = vsel %vm984, %v969, %v971
        %v989 = vsel %vm984, %v973, %v975
        %v990 = vsel %vm984, %v975, %v977
        %v991 = vsel %vm984, %v979, %v981
        %v992 = vsel %vm984, %v981, %v983
        %v1005 = vadd.f32 %v884, %v985
        %v1006 = vadd.f32 %v885, %v986
        %v1007 = vadd.f32 %v886, %v965
        %v1008 = vadd.f32 %v887, %v987
        %v1009 = vadd.f32 %v888, %v988
        %v1010 = vadd.f32 %v889, %v971
        %v1011 = vadd.f32 %v890, %v989
        %v1012 = vadd.f32 %v891, %v990
        %v1013 = vadd.f32 %v892, %v977
        %v1014 = vadd.f32 %v893, %v991
        %v1015 = vadd.f32 %v894, %v992
        %v1016 = vadd.f32 %v895, %v983
        %1017 = vrot.lane.b32.xlu0 %v732, 127
        %v1018 = vpop.permute.xlu0 %1017
        %1019 = vrot.lane.b32.xlu0 %v733, 127
        %v1020 = vpop.permute.xlu0 %1019
        %v1021 = vsel %vm863, %v1018, %v1020
        %v1025 = vmul.f32 %v719, %v1018
        %v1026 = vmul.f32 %v720, %v1021
        %v1027 = vmul.f32 %v721, %v1020
        %v1028 = vmul.f32 %v722, %v1018
        %v1029 = vmul.f32 %v723, %v1021
        %v1030 = vmul.f32 %v724, %v1020
        %v1031 = vmul.f32 %v725, %v1018
        %v1032 = vmul.f32 %v726, %v1021
        %v1033 = vmul.f32 %v727, %v1020
        %v1034 = vmul.f32 %v728, %v1018
        %v1035 = vmul.f32 %v729, %v1021
        %v1036 = vmul.f32 %v730, %v1020
        %1037 = vset.pattern.permute.xlu0 3
        %1038 = vperm.xlu0 %1037, %v567
        %v1039 = vpop.permute.xlu0 %1038
        %1041 = vset.pattern.permute.xlu0 3
        %1042 = vperm.xlu0 %1041, %v568
        %v1043 = vpop.permute.xlu0 %1042
        %1045 = vset.pattern.permute.xlu0 3
        %1046 = vperm.xlu0 %1045, %v569
        %v1047 = vpop.permute.xlu0 %1046
        %1049 = vset.pattern.permute.xlu0 3
        %1050 = vperm.xlu0 %1049, %v570
        %v1051 = vpop.permute.xlu0 %1050
        %v1053 = vmul.f32 %v1039, %v1025
        %v1054 = vmul.f32 %v1039, %v1026
        %v1055 = vmul.f32 %v1039, %v1027
        %v1056 = vmul.f32 %v1043, %v1028
        %v1057 = vmul.f32 %v1043, %v1029
        %v1058 = vmul.f32 %v1043, %v1030
        %v1059 = vmul.f32 %v1047, %v1031
        %v1060 = vmul.f32 %v1047, %v1032
        %v1061 = vmul.f32 %v1047, %v1033
        %v1062 = vmul.f32 %v1051, %v1034
        %v1063 = vmul.f32 %v1051, %v1035
        %v1064 = vmul.f32 %v1051, %v1036
        %1077 = vrot.lane.b32.xlu0 %v1053, 112
        %v1078 = vpop.permute.xlu0 %1077
        %1079 = vrot.lane.b32.xlu0 %v1054, 112
        %v1080 = vpop.permute.xlu0 %1079
        %1081 = vrot.lane.b32.xlu0 %v1055, 112
        %v1082 = vpop.permute.xlu0 %1081
        %1083 = vrot.lane.b32.xlu0 %v1056, 112
        %v1084 = vpop.permute.xlu0 %1083
        %1085 = vrot.lane.b32.xlu0 %v1057, 112
        %v1086 = vpop.permute.xlu0 %1085
        %1087 = vrot.lane.b32.xlu0 %v1058, 112
        %v1088 = vpop.permute.xlu0 %1087
        %1089 = vrot.lane.b32.xlu0 %v1059, 112
        %v1090 = vpop.permute.xlu0 %1089
        %1091 = vrot.lane.b32.xlu0 %v1060, 112
        %v1092 = vpop.permute.xlu0 %1091
        %1093 = vrot.lane.b32.xlu0 %v1061, 112
        %v1094 = vpop.permute.xlu0 %1093
        %1095 = vrot.lane.b32.xlu0 %v1062, 112
        %v1096 = vpop.permute.xlu0 %1095
        %1097 = vrot.lane.b32.xlu0 %v1063, 112
        %v1098 = vpop.permute.xlu0 %1097
        %1099 = vrot.lane.b32.xlu0 %v1064, 112
        %v1100 = vpop.permute.xlu0 %1099
        %vm1101 = vcmask 916480
        %v1102 = vsel %vm1101, %v1078, %v1080
        %v1103 = vsel %vm1101, %v1080, %v1082
        %v1104 = vsel %vm1101, %v1084, %v1086
        %v1105 = vsel %vm1101, %v1086, %v1088
        %v1106 = vsel %vm1101, %v1090, %v1092
        %v1107 = vsel %vm1101, %v1092, %v1094
        %v1108 = vsel %vm1101, %v1096, %v1098
        %v1109 = vsel %vm1101, %v1098, %v1100
        %v1122 = vadd.f32 %v1005, %v1102
        %v1123 = vadd.f32 %v1006, %v1103
        %v1124 = vadd.f32 %v1007, %v1082
        %v1125 = vadd.f32 %v1008, %v1104
        %v1126 = vadd.f32 %v1009, %v1105
        %v1127 = vadd.f32 %v1010, %v1088
        %v1128 = vadd.f32 %v1011, %v1106
        %v1129 = vadd.f32 %v1012, %v1107
        %v1130 = vadd.f32 %v1013, %v1094
        %v1131 = vadd.f32 %v1014, %v1108
        %v1132 = vadd.f32 %v1015, %v1109
        %v1133 = vadd.f32 %v1016, %v1100
        %1134 = vset.pattern.permute.xlu0 4
        %1135 = vperm.xlu0 %1134, %v567
        %v1136 = vpop.permute.xlu0 %1135
        %1138 = vset.pattern.permute.xlu0 4
        %1139 = vperm.xlu0 %1138, %v568
        %v1140 = vpop.permute.xlu0 %1139
        %1142 = vset.pattern.permute.xlu0 4
        %1143 = vperm.xlu0 %1142, %v569
        %v1144 = vpop.permute.xlu0 %1143
        %1146 = vset.pattern.permute.xlu0 4
        %1147 = vperm.xlu0 %1146, %v570
        %v1148 = vpop.permute.xlu0 %1147
        %v1150 = vmul.f32 %v1136, %v720
        %v1151 = vmul.f32 %v1136, %v721
        %v1152 = vmul.f32 %v1140, %v723
        %v1153 = vmul.f32 %v1140, %v724
        %v1154 = vmul.f32 %v1144, %v726
        %v1155 = vmul.f32 %v1144, %v727
        %v1156 = vmul.f32 %v1148, %v729
        %v1157 = vmul.f32 %v1148, %v730
        %1166 = vrot.lane.b32.xlu0 %v1150, 111
        %v1167 = vpop.permute.xlu0 %1166
        %1168 = vrot.lane.b32.xlu0 %v1151, 111
        %v1169 = vpop.permute.xlu0 %1168
        %1170 = vrot.lane.b32.xlu0 %v1152, 111
        %v1171 = vpop.permute.xlu0 %1170
        %1172 = vrot.lane.b32.xlu0 %v1153, 111
        %v1173 = vpop.permute.xlu0 %1172
        %1174 = vrot.lane.b32.xlu0 %v1154, 111
        %v1175 = vpop.permute.xlu0 %1174
        %1176 = vrot.lane.b32.xlu0 %v1155, 111
        %v1177 = vpop.permute.xlu0 %1176
        %1178 = vrot.lane.b32.xlu0 %v1156, 111
        %v1179 = vpop.permute.xlu0 %1178
        %1180 = vrot.lane.b32.xlu0 %v1157, 111
        %v1181 = vpop.permute.xlu0 %1180
        %v1182 = vsel %vm738, %v1167, %v1169
        %v1183 = vsel %vm738, %v1171, %v1173
        %v1184 = vsel %vm738, %v1175, %v1177
        %v1185 = vsel %vm738, %v1179, %v1181
        %v1198 = vadd.f32 %v1122, %v1167
        %v1199 = vadd.f32 %v1123, %v1182
        %v1200 = vadd.f32 %v1124, %v1169
        %v1201 = vadd.f32 %v1125, %v1171
        %v1202 = vadd.f32 %v1126, %v1183
        %v1203 = vadd.f32 %v1127, %v1173
        %v1204 = vadd.f32 %v1128, %v1175
        %v1205 = vadd.f32 %v1129, %v1184
        %v1206 = vadd.f32 %v1130, %v1177
        %v1207 = vadd.f32 %v1131, %v1179
        %v1208 = vadd.f32 %v1132, %v1185
        %v1209 = vadd.f32 %v1133, %v1181
        %v1210 = vld [vmem:[#allocation2 + $0x8] sm:$0xff]
        %v1211 = vld [vmem:[#allocation2 + $0x10] sm:$0xff]
        %v1212 = vld [vmem:[#allocation2 + $0x18] sm:$0xff]
        %v1213 = vld [vmem:[#allocation2 + $0x28] sm:$0xff]
        %v1214 = vld [vmem:[#allocation2 + $0x30] sm:$0xff]
        %v1215 = vld [vmem:[#allocation2 + $0x38] sm:$0xff]
        %v1216 = vld [vmem:[#allocation2 + $0x48] sm:$0xff]
        %v1217 = vld [vmem:[#allocation2 + $0x50] sm:$0xff]
        %v1218 = vld [vmem:[#allocation2 + $0x58] sm:$0xff]
        %v1219 = vld [vmem:[#allocation2 + $0x68] sm:$0xff]
        %v1220 = vld [vmem:[#allocation2 + $0x70] sm:$0xff]
        %v1221 = vld [vmem:[#allocation2 + $0x78] sm:$0xff]
        %1222 = vrot.lane.b32.xlu0 %v897, 1
        %v1223 = vpop.permute.xlu0 %1222
        %1224 = vrot.lane.b32.xlu0 %v898, 1
        %v1225 = vpop.permute.xlu0 %1224
        %vm1226 = vcmask 7168
        %v1227 = vsel %vm1226, %v1223, %v1225
        %v1231 = vmul.f32 %v1210, %v1223
        %v1232 = vmul.f32 %v1211, %v1227
        %v1233 = vmul.f32 %v1212, %v1225
        %v1234 = vmul.f32 %v1213, %v1223
        %v1235 = vmul.f32 %v1214, %v1227
        %v1236 = vmul.f32 %v1215, %v1225
        %v1237 = vmul.f32 %v1216, %v1223
        %v1238 = vmul.f32 %v1217, %v1227
        %v1239 = vmul.f32 %v1218, %v1225
        %v1240 = vmul.f32 %v1219, %v1223
        %v1241 = vmul.f32 %v1220, %v1227
        %v1242 = vmul.f32 %v1221, %v1225
        %1243 = vset.pattern.permute.xlu0 5
        %1244 = vperm.xlu0 %1243, %v567
        %v1245 = vpop.permute.xlu0 %1244
        %1247 = vset.pattern.permute.xlu0 5
        %1248 = vperm.xlu0 %1247, %v568
        %v1249 = vpop.permute.xlu0 %1248
        %1251 = vset.pattern.permute.xlu0 5
        %1252 = vperm.xlu0 %1251, %v569
        %v1253 = vpop.permute.xlu0 %1252
        %1255 = vset.pattern.permute.xlu0 5
        %1256 = vperm.xlu0 %1255, %v570
        %v1257 = vpop.permute.xlu0 %1256
        %v1259 = vmul.f32 %v1245, %v1231
        %v1260 = vmul.f32 %v1245, %v1232
        %v1261 = vmul.f32 %v1245, %v1233
        %v1262 = vmul.f32 %v1249, %v1234
        %v1263 = vmul.f32 %v1249, %v1235
        %v1264 = vmul.f32 %v1249, %v1236
        %v1265 = vmul.f32 %v1253, %v1237
        %v1266 = vmul.f32 %v1253, %v1238
        %v1267 = vmul.f32 %v1253, %v1239
        %v1268 = vmul.f32 %v1257, %v1240
        %v1269 = vmul.f32 %v1257, %v1241
        %v1270 = vmul.f32 %v1257, %v1242
        %1283 = vrot.lane.b32.xlu0 %v1259, 110
        %v1284 = vpop.permute.xlu0 %1283
        %1285 = vrot.lane.b32.xlu0 %v1260, 110
        %v1286 = vpop.permute.xlu0 %1285
        %1287 = vrot.lane.b32.xlu0 %v1261, 110
        %v1288 = vpop.permute.xlu0 %1287
        %1289 = vrot.lane.b32.xlu0 %v1262, 110
        %v1290 = vpop.permute.xlu0 %1289
        %1291 = vrot.lane.b32.xlu0 %v1263, 110
        %v1292 = vpop.permute.xlu0 %1291
        %1293 = vrot.lane.b32.xlu0 %v1264, 110
        %v1294 = vpop.permute.xlu0 %1293
        %1295 = vrot.lane.b32.xlu0 %v1265, 110
        %v1296 = vpop.permute.xlu0 %1295
        %1297 = vrot.lane.b32.xlu0 %v1266, 110
        %v1298 = vpop.permute.xlu0 %1297
        %1299 = vrot.lane.b32.xlu0 %v1267, 110
        %v1300 = vpop.permute.xlu0 %1299
        %1301 = vrot.lane.b32.xlu0 %v1268, 110
        %v1302 = vpop.permute.xlu0 %1301
        %1303 = vrot.lane.b32.xlu0 %v1269, 110
        %v1304 = vpop.permute.xlu0 %1303
        %1305 = vrot.lane.b32.xlu0 %v1270, 110
        %v1306 = vpop.permute.xlu0 %1305
        %vm1307 = vcmask 900096
        %v1308 = vsel %vm1307, %v1284, %v1286
        %v1309 = vsel %vm1307, %v1286, %v1288
        %v1310 = vsel %vm1307, %v1290, %v1292
        %v1311 = vsel %vm1307, %v1292, %v1294
        %v1312 = vsel %vm1307, %v1296, %v1298
        %v1313 = vsel %vm1307, %v1298, %v1300
        %v1314 = vsel %vm1307, %v1302, %v1304
        %v1315 = vsel %vm1307, %v1304, %v1306
        %v1328 = vadd.f32 %v1198, %v1284
        %v1329 = vadd.f32 %v1199, %v1308
        %v1330 = vadd.f32 %v1200, %v1309
        %v1331 = vadd.f32 %v1201, %v1290
        %v1332 = vadd.f32 %v1202, %v1310
        %v1333 = vadd.f32 %v1203, %v1311
        %v1334 = vadd.f32 %v1204, %v1296
        %v1335 = vadd.f32 %v1205, %v1312
        %v1336 = vadd.f32 %v1206, %v1313
        %v1337 = vadd.f32 %v1207, %v1302
        %v1338 = vadd.f32 %v1208, %v1314
        %v1339 = vadd.f32 %v1209, %v1315
        %1340 = vrot.lane.b32.xlu0 %v732, 15
        %v1341 = vpop.permute.xlu0 %1340
        %1342 = vrot.lane.b32.xlu0 %v733, 15
        %v1343 = vpop.permute.xlu0 %1342
        %vm1344 = vcmask 121856
        %v1345 = vsel %vm1344, %v1341, %v1343
        %v1349 = vmul.f32 %v1210, %v1341
        %v1350 = vmul.f32 %v1211, %v1345
        %v1351 = vmul.f32 %v1212, %v1343
        %v1352 = vmul.f32 %v1213, %v1341
        %v1353 = vmul.f32 %v1214, %v1345
        %v1354 = vmul.f32 %v1215, %v1343
        %v1355 = vmul.f32 %v1216, %v1341
        %v1356 = vmul.f32 %v1217, %v1345
        %v1357 = vmul.f32 %v1218, %v1343
        %v1358 = vmul.f32 %v1219, %v1341
        %v1359 = vmul.f32 %v1220, %v1345
        %v1360 = vmul.f32 %v1221, %v1343
        %1361 = vset.pattern.permute.xlu0 6
        %1362 = vperm.xlu0 %1361, %v567
        %v1363 = vpop.permute.xlu0 %1362
        %1365 = vset.pattern.permute.xlu0 6
        %1366 = vperm.xlu0 %1365, %v568
        %v1367 = vpop.permute.xlu0 %1366
        %1369 = vset.pattern.permute.xlu0 6
        %1370 = vperm.xlu0 %1369, %v569
        %v1371 = vpop.permute.xlu0 %1370
        %1373 = vset.pattern.permute.xlu0 6
        %1374 = vperm.xlu0 %1373, %v570
        %v1375 = vpop.permute.xlu0 %1374
        %v1377 = vmul.f32 %v1363, %v1349
        %v1378 = vmul.f32 %v1363, %v1350
        %v1379 = vmul.f32 %v1363, %v1351
        %v1380 = vmul.f32 %v1367, %v1352
        %v1381 = vmul.f32 %v1367, %v1353
        %v1382 = vmul.f32 %v1367, %v1354
        %v1383 = vmul.f32 %v1371, %v1355
        %v1384 = vmul.f32 %v1371, %v1356
        %v1385 = vmul.f32 %v1371, %v1357
        %v1386 = vmul.f32 %v1375, %v1358
        %v1387 = vmul.f32 %v1375, %v1359
        %v1388 = vmul.f32 %v1375, %v1360
        %1401 = vrot.lane.b32.xlu0 %v1377, 96
        %v1402 = vpop.permute.xlu0 %1401
        %1403 = vrot.lane.b32.xlu0 %v1378, 96
        %v1404 = vpop.permute.xlu0 %1403
        %1405 = vrot.lane.b32.xlu0 %v1379, 96
        %v1406 = vpop.permute.xlu0 %1405
        %1407 = vrot.lane.b32.xlu0 %v1380, 96
        %v1408 = vpop.permute.xlu0 %1407
        %1409 = vrot.lane.b32.xlu0 %v1381, 96
        %v1410 = vpop.permute.xlu0 %1409
        %1411 = vrot.lane.b32.xlu0 %v1382, 96
        %v1412 = vpop.permute.xlu0 %1411
        %1413 = vrot.lane.b32.xlu0 %v1383, 96
        %v1414 = vpop.permute.xlu0 %1413
        %1415 = vrot.lane.b32.xlu0 %v1384, 96
        %v1416 = vpop.permute.xlu0 %1415
        %1417 = vrot.lane.b32.xlu0 %v1385, 96
        %v1418 = vpop.permute.xlu0 %1417
        %1419 = vrot.lane.b32.xlu0 %v1386, 96
        %v1420 = vpop.permute.xlu0 %1419
        %1421 = vrot.lane.b32.xlu0 %v1387, 96
        %v1422 = vpop.permute.xlu0 %1421
        %1423 = vrot.lane.b32.xlu0 %v1388, 96
        %v1424 = vpop.permute.xlu0 %1423
        %vm1425 = vcmask 785408
        %v1426 = vsel %vm1425, %v1402, %v1404
        %v1427 = vsel %vm1425, %v1404, %v1406
        %v1428 = vsel %vm1425, %v1408, %v1410
        %v1429 = vsel %vm1425, %v1410, %v1412
        %v1430 = vsel %vm1425, %v1414, %v1416
        %v1431 = vsel %vm1425, %v1416, %v1418
        %v1432 = vsel %vm1425, %v1420, %v1422
        %v1433 = vsel %vm1425, %v1422, %v1424
        %v1446 = vadd.f32 %v1328, %v1402
        %v1447 = vadd.f32 %v1329, %v1426
        %v1448 = vadd.f32 %v1330, %v1427
        %v1449 = vadd.f32 %v1331, %v1408
        %v1450 = vadd.f32 %v1332, %v1428
        %v1451 = vadd.f32 %v1333, %v1429
        %v1452 = vadd.f32 %v1334, %v1414
        %v1453 = vadd.f32 %v1335, %v1430
        %v1454 = vadd.f32 %v1336, %v1431
        %v1455 = vadd.f32 %v1337, %v1420
        %v1456 = vadd.f32 %v1338, %v1432
        %v1457 = vadd.f32 %v1339, %v1433
        %1458 = vset.pattern.permute.xlu0 7
        %1459 = vperm.xlu0 %1458, %v567
        %v1460 = vpop.permute.xlu0 %1459
        %1462 = vset.pattern.permute.xlu0 7
        %1463 = vperm.xlu0 %1462, %v568
        %v1464 = vpop.permute.xlu0 %1463
        %1466 = vset.pattern.permute.xlu0 7
        %1467 = vperm.xlu0 %1466, %v569
        %v1468 = vpop.permute.xlu0 %1467
        %1470 = vset.pattern.permute.xlu0 7
        %1471 = vperm.xlu0 %1470, %v570
        %v1472 = vpop.permute.xlu0 %1471
        %v1474 = vmul.f32 %v1460, %v1210
        %v1475 = vmul.f32 %v1460, %v1211
        %v1476 = vmul.f32 %v1460, %v1212
        %v1477 = vmul.f32 %v1464, %v1213
        %v1478 = vmul.f32 %v1464, %v1214
        %v1479 = vmul.f32 %v1464, %v1215
        %v1480 = vmul.f32 %v1468, %v1216
        %v1481 = vmul.f32 %v1468, %v1217
        %v1482 = vmul.f32 %v1468, %v1218
        %v1483 = vmul.f32 %v1472, %v1219
        %v1484 = vmul.f32 %v1472, %v1220
        %v1485 = vmul.f32 %v1472, %v1221
        %1498 = vrot.lane.b32.xlu0 %v1474, 95
        %v1499 = vpop.permute.xlu0 %1498
        %1500 = vrot.lane.b32.xlu0 %v1475, 95
        %v1501 = vpop.permute.xlu0 %1500
        %1502 = vrot.lane.b32.xlu0 %v1476, 95
        %v1503 = vpop.permute.xlu0 %1502
        %1504 = vrot.lane.b32.xlu0 %v1477, 95
        %v1505 = vpop.permute.xlu0 %1504
        %1506 = vrot.lane.b32.xlu0 %v1478, 95
        %v1507 = vpop.permute.xlu0 %1506
        %1508 = vrot.lane.b32.xlu0 %v1479, 95
        %v1509 = vpop.permute.xlu0 %1508
        %1510 = vrot.lane.b32.xlu0 %v1480, 95
        %v1511 = vpop.permute.xlu0 %1510
        %1512 = vrot.lane.b32.xlu0 %v1481, 95
        %v1513 = vpop.permute.xlu0 %1512
        %1514 = vrot.lane.b32.xlu0 %v1482, 95
        %v1515 = vpop.permute.xlu0 %1514
        %1516 = vrot.lane.b32.xlu0 %v1483, 95
        %v1517 = vpop.permute.xlu0 %1516
        %1518 = vrot.lane.b32.xlu0 %v1484, 95
        %v1519 = vpop.permute.xlu0 %1518
        %1520 = vrot.lane.b32.xlu0 %v1485, 95
        %v1521 = vpop.permute.xlu0 %1520
        %vm1522 = vcmask 777216
        %v1523 = vsel %vm1522, %v1499, %v1501
        %v1524 = vsel %vm1522, %v1501, %v1503
        %v1525 = vsel %vm1522, %v1505, %v1507
        %v1526 = vsel %vm1522, %v1507, %v1509
        %v1527 = vsel %vm1522, %v1511, %v1513
        %v1528 = vsel %vm1522, %v1513, %v1515
        %v1529 = vsel %vm1522, %v1517, %v1519
        %v1530 = vsel %vm1522, %v1519, %v1521
        %v1543 = vadd.f32 %v1446, %v1499
        %v1544 = vadd.f32 %v1447, %v1523
        %v1545 = vadd.f32 %v1448, %v1524
        %v1546 = vadd.f32 %v1449, %v1505
        %v1547 = vadd.f32 %v1450, %v1525
        %v1548 = vadd.f32 %v1451, %v1526
        %v1549 = vadd.f32 %v1452, %v1511
        %v1550 = vadd.f32 %v1453, %v1527
        %v1551 = vadd.f32 %v1454, %v1528
        %v1552 = vadd.f32 %v1455, %v1517
        %v1553 = vadd.f32 %v1456, %v1529
        %v1554 = vadd.f32 %v1457, %v1530
        %1555 = vrot.lane.b32.xlu0 %v897, 17
        %v1556 = vpop.permute.xlu0 %1555
        %1557 = vrot.lane.b32.xlu0 %v898, 17
        %v1558 = vpop.permute.xlu0 %1557
        %vm1559 = vcmask 138240
        %v1560 = vsel %vm1559, %v1556, %v1558
        %v1564 = vmul.f32 %v1210, %v1556
        %v1565 = vmul.f32 %v1211, %v1560
        %v1566 = vmul.f32 %v1212, %v1558
        %v1567 = vmul.f32 %v1213, %v1556
        %v1568 = vmul.f32 %v1214, %v1560
        %v1569 = vmul.f32 %v1215, %v1558
        %v1570 = vmul.f32 %v1216, %v1556
        %v1571 = vmul.f32 %v1217, %v1560
        %v1572 = vmul.f32 %v1218, %v1558
        %v1573 = vmul.f32 %v1219, %v1556
        %v1574 = vmul.f32 %v1220, %v1560
        %v1575 = vmul.f32 %v1221, %v1558
        %1576 = vset.pattern.permute.xlu0 8
        %1577 = vperm.xlu0 %1576, %v567
        %v1578 = vpop.permute.xlu0 %1577
        %1580 = vset.pattern.permute.xlu0 8
        %1581 = vperm.xlu0 %1580, %v568
        %v1582 = vpop.permute.xlu0 %1581
        %1584 = vset.pattern.permute.xlu0 8
        %1585 = vperm.xlu0 %1584, %v569
        %v1586 = vpop.permute.xlu0 %1585
        %1588 = vset.pattern.permute.xlu0 8
        %1589 = vperm.xlu0 %1588, %v570
        %v1590 = vpop.permute.xlu0 %1589
        %v1592 = vmul.f32 %v1578, %v1564
        %v1593 = vmul.f32 %v1578, %v1565
        %v1594 = vmul.f32 %v1578, %v1566
        %v1595 = vmul.f32 %v1582, %v1567
        %v1596 = vmul.f32 %v1582, %v1568
        %v1597 = vmul.f32 %v1582, %v1569
        %v1598 = vmul.f32 %v1586, %v1570
        %v1599 = vmul.f32 %v1586, %v1571
        %v1600 = vmul.f32 %v1586, %v1572
        %v1601 = vmul.f32 %v1590, %v1573
        %v1602 = vmul.f32 %v1590, %v1574
        %v1603 = vmul.f32 %v1590, %v1575
        %1616 = vrot.lane.b32.xlu0 %v1592, 94
        %v1617 = vpop.permute.xlu0 %1616
        %1618 = vrot.lane.b32.xlu0 %v1593, 94
        %v1619 = vpop.permute.xlu0 %1618
        %1620 = vrot.lane.b32.xlu0 %v1594, 94
        %v1621 = vpop.permute.xlu0 %1620
        %1622 = vrot.lane.b32.xlu0 %v1595, 94
        %v1623 = vpop.permute.xlu0 %1622
        %1624 = vrot.lane.b32.xlu0 %v1596, 94
        %v1625 = vpop.permute.xlu0 %1624
        %1626 = vrot.lane.b32.xlu0 %v1597, 94
        %v1627 = vpop.permute.xlu0 %1626
        %1628 = vrot.lane.b32.xlu0 %v1598, 94
        %v1629 = vpop.permute.xlu0 %1628
        %1630 = vrot.lane.b32.xlu0 %v1599, 94
        %v1631 = vpop.permute.xlu0 %1630
        %1632 = vrot.lane.b32.xlu0 %v1600, 94
        %v1633 = vpop.permute.xlu0 %1632
        %1634 = vrot.lane.b32.xlu0 %v1601, 94
        %v1635 = vpop.permute.xlu0 %1634
        %1636 = vrot.lane.b32.xlu0 %v1602, 94
        %v1637 = vpop.permute.xlu0 %1636
        %1638 = vrot.lane.b32.xlu0 %v1603, 94
        %v1639 = vpop.permute.xlu0 %1638
        %vm1640 = vcmask 769024
        %v1641 = vsel %vm1640, %v1617, %v1619
        %v1642 = vsel %vm1640, %v1619, %v1621
        %v1643 = vsel %vm1640, %v1623, %v1625
        %v1644 = vsel %vm1640, %v1625, %v1627
        %v1645 = vsel %vm1640, %v1629, %v1631
        %v1646 = vsel %vm1640, %v1631, %v1633
        %v1647 = vsel %vm1640, %v1635, %v1637
        %v1648 = vsel %vm1640, %v1637, %v1639
        %v1661 = vadd.f32 %v1543, %v1617
        %v1662 = vadd.f32 %v1544, %v1641
        %v1663 = vadd.f32 %v1545, %v1642
        %v1664 = vadd.f32 %v1546, %v1623
        %v1665 = vadd.f32 %v1547, %v1643
        %v1666 = vadd.f32 %v1548, %v1644
        %v1667 = vadd.f32 %v1549, %v1629
        %v1668 = vadd.f32 %v1550, %v1645
        %v1669 = vadd.f32 %v1551, %v1646
        %v1670 = vadd.f32 %v1552, %v1635
        %v1671 = vadd.f32 %v1553, %v1647
        %v1672 = vadd.f32 %v1554, %v1648
        %1674 = vset.pattern.permute.xlu0 0
        %1675 = vperm.xlu0 %1674, %v546
        %v1676 = vpop.permute.xlu0 %1675
        %1679 = vset.pattern.permute.xlu0 0
        %1680 = vperm.xlu0 %1679, %v547
        %v1681 = vpop.permute.xlu0 %1680
        %1684 = vset.pattern.permute.xlu0 0
        %1685 = vperm.xlu0 %1684, %v548
        %v1686 = vpop.permute.xlu0 %1685
        %1689 = vset.pattern.permute.xlu0 0
        %1690 = vperm.xlu0 %1689, %v549
        %v1691 = vpop.permute.xlu0 %1690
        %v1693 = vmul.f32 %v1661, %v1676
        %v1694 = vmul.f32 %v1662, %v1676
        %v1695 = vmul.f32 %v1663, %v1676
        %v1696 = vmul.f32 %v1664, %v1681
        %v1697 = vmul.f32 %v1665, %v1681
        %v1698 = vmul.f32 %v1666, %v1681
        %v1699 = vmul.f32 %v1667, %v1686
        %v1700 = vmul.f32 %v1668, %v1686
        %v1701 = vmul.f32 %v1669, %v1686
        %v1702 = vmul.f32 %v1670, %v1691
        %v1703 = vmul.f32 %v1671, %v1691
        %v1704 = vmul.f32 %v1672, %v1691
        %1706 = vset.pattern.permute.xlu0 0
        %1707 = vperm.xlu0 %1706, %v550
        %v1708 = vpop.permute.xlu0 %1707
        %1711 = vset.pattern.permute.xlu0 0
        %1712 = vperm.xlu0 %1711, %v551
        %v1713 = vpop.permute.xlu0 %1712
        %1716 = vset.pattern.permute.xlu0 0
        %1717 = vperm.xlu0 %1716, %v552
        %v1718 = vpop.permute.xlu0 %1717
        %1721 = vset.pattern.permute.xlu0 0
        %1722 = vperm.xlu0 %1721, %v553
        %v1723 = vpop.permute.xlu0 %1722
        %v1725 = vadd.f32 %v1693, %v1708
        %v1726 = vadd.f32 %v1694, %v1708
        %v1727 = vadd.f32 %v1695, %v1708
        %v1728 = vadd.f32 %v1696, %v1713
        %v1729 = vadd.f32 %v1697, %v1713
        %v1730 = vadd.f32 %v1698, %v1713
        %v1731 = vadd.f32 %v1699, %v1718
        %v1732 = vadd.f32 %v1700, %v1718
        %v1733 = vadd.f32 %v1701, %v1718
        %v1734 = vadd.f32 %v1702, %v1723
        %v1735 = vadd.f32 %v1703, %v1723
        %v1736 = vadd.f32 %v1704, %v1723
        %v1737 = vmax.f32 %v1725, 0.0
        %v1738 = vmax.f32 %v1726, 0.0
        %v1739 = vmax.f32 %v1727, 0.0
        %v1740 = vmax.f32 %v1728, 0.0
        %v1741 = vmax.f32 %v1729, 0.0
        %v1742 = vmax.f32 %v1730, 0.0
        %v1743 = vmax.f32 %v1731, 0.0
        %v1744 = vmax.f32 %v1732, 0.0
        %v1745 = vmax.f32 %v1733, 0.0
        %v1746 = vmax.f32 %v1734, 0.0
        %v1747 = vmax.f32 %v1735, 0.0
        %v1748 = vmax.f32 %v1736, 0.0
        %1761 = vrot.lane.b32.xlu0 %v1737, 17
        %v1762 = vpop.permute.xlu0 %1761
        %1763 = vrot.lane.b32.xlu0 %v1738, 17
        %v1764 = vpop.permute.xlu0 %1763
        %1765 = vrot.lane.b32.xlu0 %v1739, 17
        %v1766 = vpop.permute.xlu0 %1765
        %1767 = vrot.lane.b32.xlu0 %v1740, 17
        %v1768 = vpop.permute.xlu0 %1767
        %1769 = vrot.lane.b32.xlu0 %v1741, 17
        %v1770 = vpop.permute.xlu0 %1769
        %1771 = vrot.lane.b32.xlu0 %v1742, 17
        %v1772 = vpop.permute.xlu0 %1771
        %1773 = vrot.lane.b32.xlu0 %v1743, 17
        %v1774 = vpop.permute.xlu0 %1773
        %1775 = vrot.lane.b32.xlu0 %v1744, 17
        %v1776 = vpop.permute.xlu0 %1775
        %1777 = vrot.lane.b32.xlu0 %v1745, 17
        %v1778 = vpop.permute.xlu0 %1777
        %1779 = vrot.lane.b32.xlu0 %v1746, 17
        %v1780 = vpop.permute.xlu0 %1779
        %1781 = vrot.lane.b32.xlu0 %v1747, 17
        %v1782 = vpop.permute.xlu0 %1781
        %1783 = vrot.lane.b32.xlu0 %v1748, 17
        %v1784 = vpop.permute.xlu0 %1783
        %v1785 = vsel %vm1559, %v1762, %v1764
        %v1786 = vsel %vm1559, %v1764, %v1766
        %v1787 = vsel %vm1559, %v1768, %v1770
        %v1788 = vsel %vm1559, %v1770, %v1772
        %v1789 = vsel %vm1559, %v1774, %v1776
        %v1790 = vsel %vm1559, %v1776, %v1778
        %v1791 = vsel %vm1559, %v1780, %v1782
        %v1792 = vsel %vm1559, %v1782, %v1784
        %v1801 = vadd.f32 %v1785, %v1786
        %1802 = vadd.xlane.f32.xlu0 %v1801
        %v1803 = vpop.xlane.xlu0 %1802
        %v1804 = vadd.f32 %v1787, %v1788
        %1805 = vadd.xlane.f32.xlu0 %v1804
        %v1806 = vpop.xlane.xlu0 %1805
        %v1807 = vadd.f32 %v1789, %v1790
        %1808 = vadd.xlane.f32.xlu0 %v1807
        %v1809 = vpop.xlane.xlu0 %1808
        %v1810 = vadd.f32 %v1791, %v1792
        %1811 = vadd.xlane.f32.xlu0 %v1810
        %v1812 = vpop.xlane.xlu0 %1811
        %v1813 = vmul.f32 %v1803, 0.00390625
        %v1814 = vmul.f32 %v1806, 0.00390625
        %v1815 = vmul.f32 %v1809, 0.00390625
        %v1816 = vmul.f32 %v1812, 0.00390625
        %vm1817 = vcmask 261120
        %v1819 = vsel %vm1817, %v556, 0
        %1821 = vmatpush.msra.mxu0 0.0
        %1822 = vmatpush.msra.mxu0 0.0
        %1823 = vmatpush.msra.mxu0 0.0
        %1824 = vmatpush.msra.mxu0 0.0
        %1825 = vmatpush.msra.mxu0 0.0
        %1826 = vmatpush.msra.mxu0 0.0
        %1827 = vmatpush.msra.mxu0 0.0
        %1828 = vmatpush.msra.mxu0 0.0
        %1829 = vmatpush.msra.mxu0 0.0
        %1830 = vmatpush.msra.mxu0 0.0
        %1831 = vmatpush.msra.mxu0 0.0
        %1832 = vmatpush.msra.mxu0 0.0
        %1833 = vmatpush.msra.mxu0 %v1816
        %1834 = vmatpush.msra.mxu0 %v1815
        %1835 = vmatpush.msra.mxu0 %v1814
        %1836 = vmatpush.msra.mxu0 %v1813
        %1837 = vmatmul.f32.gmra.mxu0 %v1819
        %v1838 = vpop.f32.mrf.mxu0
        %v1839 = vadd.f32 %v557, %v1838
        %1840 = vdwg.mxu0
        %v1841 = vmax.f32 %v1839, 0.0
        %vm1842 = vcmask 15360
        %v1844 = vsel %vm1842, %v558, 0
        %v1847 = vsel %vm1842, %v559, 0
        %v1850 = vsel %vm1842, %v560, 0
        %v1853 = vsel %vm1842, %v561, 0
        %vm1855 = vcmask 1041408
        %v1857 = vsel %vm1855, %v1841, 0
        %1859 = vmatpush.msra.mxu0 0.0
        %1860 = vmatpush.msra.mxu0 0.0
        %1861 = vmatpush.msra.mxu0 0.0
        %1862 = vmatpush.msra.mxu0 0.0
        %1863 = vmatpush.msra.mxu0 0.0
        %1864 = vmatpush.msra.mxu0 0.0
        %1865 = vmatpush.msra.mxu0 0.0
        %1866 = vmatpush.msra.mxu0 0.0
        %1867 = vmatpush.msra.mxu0 0.0
        %1868 = vmatpush.msra.mxu0 0.0
        %1869 = vmatpush.msra.mxu0 0.0
        %1870 = vmatpush.msra.mxu0 0.0
        %1871 = vmatpush.msra.mxu0 0.0
        %1872 = vmatpush.msra.mxu0 0.0
        %1873 = vmatpush.msra.mxu0 0.0
        %1874 = vmatpush.msra.mxu0 %v1857
        %1875 = vmatmul.f32.gmra.mxu0 %v1844
        %v1876 = vpop.f32.mrf.mxu0
        %v1877 = vadd.f32 %v562, %v1876
        %1878 = vmatmul.f32.gmra.mxu0 %v1847
        %v1879 = vpop.f32.mrf.mxu0
        %v1880 = vadd.f32 %v563, %v1879
        %1881 = vmatmul.f32.gmra.mxu0 %v1850
        %v1882 = vpop.f32.mrf.mxu0
        %v1883 = vadd.f32 %v564, %v1882
        %1884 = vmatmul.f32.gmra.mxu0 %v1853
        %v1885 = vpop.f32.mrf.mxu0
        %v1886 = vadd.f32 %v565, %v1885
        %1887 = vdwg.mxu0
        %v1888 = vxor.u32 %v1877, 2147483648
        %v1889 = vxor.u32 %v1880, 2147483648
        %v1890 = vxor.u32 %v1883, 2147483648
        %v1891 = vxor.u32 %v1886, 2147483648
        %v1892 = vmul.f32 %v1888, 1.442695
        %v1893 = vpow.pop %v1892
        %v1894 = vmul.f32 %v1889, 1.442695
        %v1895 = vpow.pop %v1894
        %v1896 = vmul.f32 %v1890, 1.442695
        %v1897 = vpow.pop %v1896
        %v1898 = vmul.f32 %v1891, 1.442695
        %v1899 = vpow.pop %v1898
        %v1900 = vadd.f32 %v1893, 1.0
        %v1901 = vadd.f32 %v1895, 1.0
        %v1902 = vadd.f32 %v1897, 1.0
        %v1903 = vadd.f32 %v1899, 1.0
        %v1904 = vrcp.pop %v1900
        %v1905 = vmul.f32 %v1900, %v1904
        %v1906 = vsub.f32 1.0, %v1905
        %v1907 = vmul.f32 %v1904, %v1906
        %v1908 = vadd.f32 %v1904, %v1907
        %vm1909 = vweird.f32 %v1900
        %vm1910 = vweird.f32 %v1904
        %vm1911 = vmor %vm1909, %vm1910
        %v1912 = vsel %vm1911, %v1904, %v1908
        %v1913 = vand.u32 2147483647, %v1900
        %vm1914 = vcmp.eq.f32.partialorder %v1913, 8.507059e+37
        %v1915 = vand.u32 %v1900, 2147483648
        %v1916 = vor.u32 1.1754944e-38, %v1915
        %v1917 = vsel %vm1914, %v1916, %v1912
        %v1918 = vmul.f32 1.0, %v1917
        %v1919 = vrcp.pop %v1901
        %v1920 = vmul.f32 %v1901, %v1919
        %v1921 = vsub.f32 1.0, %v1920
        %v1922 = vmul.f32 %v1919, %v1921
        %v1923 = vadd.f32 %v1919, %v1922
        %vm1924 = vweird.f32 %v1901
        %vm1925 = vweird.f32 %v1919
        %vm1926 = vmor %vm1924, %vm1925
        %v1927 = vsel %vm1926, %v1919, %v1923
        %v1928 = vand.u32 2147483647, %v1901
        %vm1929 = vcmp.eq.f32.partialorder %v1928, 8.507059e+37
        %v1930 = vand.u32 %v1901, 2147483648
        %v1931 = vor.u32 1.1754944e-38, %v1930
        %v1932 = vsel %vm1929, %v1931, %v1927
        %v1933 = vmul.f32 1.0, %v1932
        %v1934 = vrcp.pop %v1902
        %v1935 = vmul.f32 %v1902, %v1934
        %v1936 = vsub.f32 1.0, %v1935
        %v1937 = vmul.f32 %v1934, %v1936
        %v1938 = vadd.f32 %v1934, %v1937
        %vm1939 = vweird.f32 %v1902
        %vm1940 = vweird.f32 %v1934
        %vm1941 = vmor %vm1939, %vm1940
        %v1942 = vsel %vm1941, %v1934, %v1938
        %v1943 = vand.u32 2147483647, %v1902
        %vm1944 = vcmp.eq.f32.partialorder %v1943, 8.507059e+37
        %v1945 = vand.u32 %v1902, 2147483648
        %v1946 = vor.u32 1.1754944e-38, %v1945
        %v1947 = vsel %vm1944, %v1946, %v1942
        %v1948 = vmul.f32 1.0, %v1947
        %v1949 = vrcp.pop %v1903
        %v1950 = vmul.f32 %v1903, %v1949
        %v1951 = vsub.f32 1.0, %v1950
        %v1952 = vmul.f32 %v1949, %v1951
        %v1953 = vadd.f32 %v1949, %v1952
        %vm1954 = vweird.f32 %v1903
        %vm1955 = vweird.f32 %v1949
        %vm1956 = vmor %vm1954, %vm1955
        %v1957 = vsel %vm1956, %v1949, %v1953
        %v1958 = vand.u32 2147483647, %v1903
        %vm1959 = vcmp.eq.f32.partialorder %v1958, 8.507059e+37
        %v1960 = vand.u32 %v1903, 2147483648
        %v1961 = vor.u32 1.1754944e-38, %v1960
        %v1962 = vsel %vm1959, %v1961, %v1957
        %v1963 = vmul.f32 1.0, %v1962
        %1965 = vset.pattern.permute.xlu0 0
        %1966 = vperm.xlu0 %1965, %v1918
        %v1967 = vpop.permute.xlu0 %1966
        %1970 = vset.pattern.permute.xlu0 0
        %1971 = vperm.xlu0 %1970, %v1933
        %v1972 = vpop.permute.xlu0 %1971
        %1975 = vset.pattern.permute.xlu0 0
        %1976 = vperm.xlu0 %1975, %v1948
        %v1977 = vpop.permute.xlu0 %1976
        %1980 = vset.pattern.permute.xlu0 0
        %1981 = vperm.xlu0 %1980, %v1963
        %v1982 = vpop.permute.xlu0 %1981
        %v1984 = vmul.f32 %v1737, %v1967
        %v1985 = vmul.f32 %v1738, %v1967
        %v1986 = vmul.f32 %v1739, %v1967
        %v1987 = vmul.f32 %v1740, %v1972
        %v1988 = vmul.f32 %v1741, %v1972
        %v1989 = vmul.f32 %v1742, %v1972
        %v1990 = vmul.f32 %v1743, %v1977
        %v1991 = vmul.f32 %v1744, %v1977
        %v1992 = vmul.f32 %v1745, %v1977
        %v1993 = vmul.f32 %v1746, %v1982
        %v1994 = vmul.f32 %v1747, %v1982
        %v1995 = vmul.f32 %v1748, %v1982
        %2008 = vrot.lane.b32.xlu0 %v1984, 17
        %v2009 = vpop.permute.xlu0 %2008
        %2010 = vrot.lane.b32.xlu0 %v1985, 17
        %v2011 = vpop.permute.xlu0 %2010
        %2012 = vrot.lane.b32.xlu0 %v1986, 17
        %v2013 = vpop.permute.xlu0 %2012
        %2014 = vrot.lane.b32.xlu0 %v1987, 17
        %v2015 = vpop.permute.xlu0 %2014
        %2016 = vrot.lane.b32.xlu0 %v1988, 17
        %v2017 = vpop.permute.xlu0 %2016
        %2018 = vrot.lane.b32.xlu0 %v1989, 17
        %v2019 = vpop.permute.xlu0 %2018
        %2020 = vrot.lane.b32.xlu0 %v1990, 17
        %v2021 = vpop.permute.xlu0 %2020
        %2022 = vrot.lane.b32.xlu0 %v1991, 17
        %v2023 = vpop.permute.xlu0 %2022
        %2024 = vrot.lane.b32.xlu0 %v1992, 17
        %v2025 = vpop.permute.xlu0 %2024
        %2026 = vrot.lane.b32.xlu0 %v1993, 17
        %v2027 = vpop.permute.xlu0 %2026
        %2028 = vrot.lane.b32.xlu0 %v1994, 17
        %v2029 = vpop.permute.xlu0 %2028
        %2030 = vrot.lane.b32.xlu0 %v1995, 17
        %v2031 = vpop.permute.xlu0 %2030
        %v2032 = vsel %vm1559, %v2009, %v2011
        %v2033 = vsel %vm1559, %v2011, %v2013
        %v2034 = vsel %vm1559, %v2015, %v2017
        %v2035 = vsel %vm1559, %v2017, %v2019
        %v2036 = vsel %vm1559, %v2021, %v2023
        %v2037 = vsel %vm1559, %v2023, %v2025
        %v2038 = vsel %vm1559, %v2027, %v2029
        %v2039 = vsel %vm1559, %v2029, %v2031
        %v2049 = vsel %vm1817, %v566, 0
        %2051 = vmatpush.msra.mxu0 0.0
        %2052 = vmatpush.msra.mxu0 0.0
        %2053 = vmatpush.msra.mxu0 0.0
        %2054 = vmatpush.msra.mxu0 0.0
        %2055 = vmatpush.msra.mxu0 0.0
        %2056 = vmatpush.msra.mxu0 0.0
        %2057 = vmatpush.msra.mxu0 0.0
        %2058 = vmatpush.msra.mxu0 0.0
        %2059 = vmatpush.msra.mxu0 0.0
        %2060 = vmatpush.msra.mxu0 0.0
        %2061 = vmatpush.msra.mxu0 0.0
        %2062 = vmatpush.msra.mxu0 0.0
        %2063 = vmatpush.msra.mxu0 %v2038
        %2064 = vmatpush.msra.mxu0 %v2036
        %2065 = vmatpush.msra.mxu0 %v2034
        %2066 = vmatpush.msra.mxu0 %v2032
        %2067 = vmatmul.f32.gmra.mxu0 %v2049
        %v2068 = vpop.f32.mrf.mxu0
        %v2069 = vadd.f32 0.0, %v2068
        %2070 = vdwg.mxu0
        %2071 = vmatpush.msra.mxu0 0.0
        %2072 = vmatpush.msra.mxu0 0.0
        %2073 = vmatpush.msra.mxu0 0.0
        %2074 = vmatpush.msra.mxu0 0.0
        %2075 = vmatpush.msra.mxu0 0.0
        %2076 = vmatpush.msra.mxu0 0.0
        %2077 = vmatpush.msra.mxu0 0.0
        %2078 = vmatpush.msra.mxu0 0.0
        %2079 = vmatpush.msra.mxu0 0.0
        %2080 = vmatpush.msra.mxu0 0.0
        %2081 = vmatpush.msra.mxu0 0.0
        %2082 = vmatpush.msra.mxu0 0.0
        %2083 = vmatpush.msra.mxu0 %v2039
        %2084 = vmatpush.msra.mxu0 %v2037
        %2085 = vmatpush.msra.mxu0 %v2035
        %2086 = vmatpush.msra.mxu0 %v2033
        %2087 = vmatmul.f32.gmra.mxu0 %v2049
        %v2088 = vpop.f32.mrf.mxu0
        %v2089 = vadd.f32 0.0, %v2088
        %2090 = vdwg.mxu0
        %2092 = vset.pattern.permute.xlu0 0
        %2093 = vperm.xlu0 %2092, %v554
        %v2094 = vpop.permute.xlu0 %2093
        %v2096 = vmul.f32 %v2069, %v2094
        %v2097 = vmul.f32 %v2089, %v2094
        %2099 = vset.pattern.permute.xlu0 0
        %2100 = vperm.xlu0 %2099, %v555
        %v2101 = vpop.permute.xlu0 %2100
        %v2103 = vadd.f32 %v2096, %v2101
        %v2104 = vadd.f32 %v2097, %v2101
        %v2105 = vadd.f32 %v2103, %v574
        %v2106 = vadd.f32 %v2104, %v575
        %2107 = vst [vmem:[%s517] sm:$0xff] %v2105
        %2108 = vst [vmem:[%s517 + $0x8] sm:$0xff] %v2106
        %s2109 = scalar_lea.vmem %s523, 16
        %v2110 = vld [vmem:[%s2109] sm:$0xff]
        %v2111 = vld [vmem:[%s2109 + $0x8] sm:$0xff]
        %2112 = vmatpush.msra.mxu0 0.0
        %2113 = vmatpush.msra.mxu0 0.0
        %2114 = vmatpush.msra.mxu0 0.0
        %2115 = vmatpush.msra.mxu0 0.0
        %2116 = vmatpush.msra.mxu0 0.0
        %2117 = vmatpush.msra.mxu0 0.0
        %2118 = vmatpush.msra.mxu0 0.0
        %2119 = vmatpush.msra.mxu0 0.0
        %2120 = vmatpush.msra.mxu0 0.0
        %2121 = vmatpush.msra.mxu0 0.0
        %2122 = vmatpush.msra.mxu0 0.0
        %2123 = vmatpush.msra.mxu0 0.0
        %2124 = vmatpush.msra.mxu0 0.0
        %2125 = vmatpush.msra.mxu0 0.0
        %2126 = vmatpush.msra.mxu0 0.0
        %2127 = vmatpush.msra.mxu0 %v2110
        %2128 = vmatmul.f32.gmra.mxu0 %v578
        %v2129 = vpop.f32.mrf.mxu0
        %v2130 = vadd.f32 0.0, %v2129
        %2131 = vmatmul.f32.gmra.mxu0 %v581
        %v2132 = vpop.f32.mrf.mxu0
        %v2133 = vadd.f32 0.0, %v2132
        %2134 = vmatmul.f32.gmra.mxu0 %v584
        %v2135 = vpop.f32.mrf.mxu0
        %v2136 = vadd.f32 0.0, %v2135
        %2137 = vmatmul.f32.gmra.mxu0 %v587
        %v2138 = vpop.f32.mrf.mxu0
        %v2139 = vadd.f32 0.0, %v2138
        %2140 = vdwg.mxu0
        %2141 = vmatpush.msra.mxu0 0.0
        %2142 = vmatpush.msra.mxu0 0.0
        %2143 = vmatpush.msra.mxu0 0.0
        %2144 = vmatpush.msra.mxu0 0.0
        %2145 = vmatpush.msra.mxu0 0.0
        %2146 = vmatpush.msra.mxu0 0.0
        %2147 = vmatpush.msra.mxu0 0.0
        %2148 = vmatpush.msra.mxu0 0.0
        %2149 = vmatpush.msra.mxu0 0.0
        %2150 = vmatpush.msra.mxu0 0.0
        %2151 = vmatpush.msra.mxu0 0.0
        %2152 = vmatpush.msra.mxu0 0.0
        %2153 = vmatpush.msra.mxu0 0.0
        %2154 = vmatpush.msra.mxu0 0.0
        %2155 = vmatpush.msra.mxu0 0.0
        %2156 = vmatpush.msra.mxu0 %v2111
        %2157 = vmatmul.f32.gmra.mxu0 %v578
        %v2158 = vpop.f32.mrf.mxu0
        %v2159 = vadd.f32 0.0, %v2158
        %2160 = vmatmul.f32.gmra.mxu0 %v581
        %v2161 = vpop.f32.mrf.mxu0
        %v2162 = vadd.f32 0.0, %v2161
        %2163 = vmatmul.f32.gmra.mxu0 %v584
        %v2164 = vpop.f32.mrf.mxu0
        %v2165 = vadd.f32 0.0, %v2164
        %2166 = vmatmul.f32.gmra.mxu0 %v587
        %v2167 = vpop.f32.mrf.mxu0
        %v2168 = vadd.f32 0.0, %v2167
        %2169 = vdwg.mxu0
        %v2170 = vmul.f32 %v2130, %v650
        %v2171 = vmul.f32 %v2159, %v650
        %v2172 = vmul.f32 %v2133, %v655
        %v2173 = vmul.f32 %v2162, %v655
        %v2174 = vmul.f32 %v2136, %v660
        %v2175 = vmul.f32 %v2165, %v660
        %v2176 = vmul.f32 %v2139, %v665
        %v2177 = vmul.f32 %v2168, %v665
        %v2178 = vadd.f32 %v2170, %v678
        %v2179 = vadd.f32 %v2171, %v678
        %v2180 = vadd.f32 %v2172, %v683
        %v2181 = vadd.f32 %v2173, %v683
        %v2182 = vadd.f32 %v2174, %v688
        %v2183 = vadd.f32 %v2175, %v688
        %v2184 = vadd.f32 %v2176, %v693
        %v2185 = vadd.f32 %v2177, %v693
        %v2186 = vmax.f32 %v2178, 0.0
        %v2187 = vmax.f32 %v2179, 0.0
        %v2188 = vmax.f32 %v2180, 0.0
        %v2189 = vmax.f32 %v2181, 0.0
        %v2190 = vmax.f32 %v2182, 0.0
        %v2191 = vmax.f32 %v2183, 0.0
        %v2192 = vmax.f32 %v2184, 0.0
        %v2193 = vmax.f32 %v2185, 0.0
        %2194 = vst [vmem:[#allocation2 + $0x8] sm:$0xff] %v2186
        %2195 = vst [vmem:[#allocation2 + $0x10] sm:$0xff] %v2187
        %2196 = vst [vmem:[#allocation2 + $0x28] sm:$0xff] %v2188
        %2197 = vst [vmem:[#allocation2 + $0x30] sm:$0xff] %v2189
        %2198 = vst [vmem:[#allocation2 + $0x48] sm:$0xff] %v2190
        %2199 = vst [vmem:[#allocation2 + $0x50] sm:$0xff] %v2191
        %2200 = vst [vmem:[#allocation2 + $0x68] sm:$0xff] %v2192
        %2201 = vst [vmem:[#allocation2 + $0x70] sm:$0xff] %v2193
        %v2202 = vld [vmem:[#allocation2] sm:$0xff]
        %v2203 = vld [vmem:[#allocation2 + $0x8] sm:$0xff]
        %v2204 = vld [vmem:[#allocation2 + $0x10] sm:$0xff]
        %v2205 = vld [vmem:[#allocation2 + $0x20] sm:$0xff]
        %v2206 = vld [vmem:[#allocation2 + $0x28] sm:$0xff]
        %v2207 = vld [vmem:[#allocation2 + $0x30] sm:$0xff]
        %v2208 = vld [vmem:[#allocation2 + $0x40] sm:$0xff]
        %v2209 = vld [vmem:[#allocation2 + $0x48] sm:$0xff]
        %v2210 = vld [vmem:[#allocation2 + $0x50] sm:$0xff]
        %v2211 = vld [vmem:[#allocation2 + $0x60] sm:$0xff]
        %v2212 = vld [vmem:[#allocation2 + $0x68] sm:$0xff]
        %v2213 = vld [vmem:[#allocation2 + $0x70] sm:$0xff]
        %v2214 = vmul.f32 %v2202, %v735
        %v2215 = vmul.f32 %v2203, %v739
        %v2216 = vmul.f32 %v2204, %v737
        %v2217 = vmul.f32 %v2205, %v735
        %v2218 = vmul.f32 %v2206, %v739
        %v2219 = vmul.f32 %v2207, %v737
        %v2220 = vmul.f32 %v2208, %v735
        %v2221 = vmul.f32 %v2209, %v739
        %v2222 = vmul.f32 %v2210, %v737
        %v2223 = vmul.f32 %v2211, %v735
        %v2224 = vmul.f32 %v2212, %v739
        %v2225 = vmul.f32 %v2213, %v737
        %v2226 = vmul.f32 %v758, %v2214
        %v2227 = vmul.f32 %v758, %v2215
        %v2228 = vmul.f32 %v758, %v2216
        %v2229 = vmul.f32 %v763, %v2217
        %v2230 = vmul.f32 %v763, %v2218
        %v2231 = vmul.f32 %v763, %v2219
        %v2232 = vmul.f32 %v768, %v2220
        %v2233 = vmul.f32 %v768, %v2221
        %v2234 = vmul.f32 %v768, %v2222
        %v2235 = vmul.f32 %v773, %v2223
        %v2236 = vmul.f32 %v773, %v2224
        %v2237 = vmul.f32 %v773, %v2225
        %v2238 = vadd.f32 %v2226, 0.0
        %v2239 = vadd.f32 %v2227, 0.0
        %v2240 = vadd.f32 %v2228, 0.0
        %v2241 = vadd.f32 %v2229, 0.0
        %v2242 = vadd.f32 %v2230, 0.0
        %v2243 = vadd.f32 %v2231, 0.0
        %v2244 = vadd.f32 %v2232, 0.0
        %v2245 = vadd.f32 %v2233, 0.0
        %v2246 = vadd.f32 %v2234, 0.0
        %v2247 = vadd.f32 %v2235, 0.0
        %v2248 = vadd.f32 %v2236, 0.0
        %v2249 = vadd.f32 %v2237, 0.0
        %v2250 = vmul.f32 %v801, %v2202
        %v2251 = vmul.f32 %v801, %v2203
        %v2252 = vmul.f32 %v801, %v2204
        %v2253 = vmul.f32 %v805, %v2205
        %v2254 = vmul.f32 %v805, %v2206
        %v2255 = vmul.f32 %v805, %v2207
        %v2256 = vmul.f32 %v809, %v2208
        %v2257 = vmul.f32 %v809, %v2209
        %v2258 = vmul.f32 %v809, %v2210
        %v2259 = vmul.f32 %v813, %v2211
        %v2260 = vmul.f32 %v813, %v2212
        %v2261 = vmul.f32 %v813, %v2213
        %2274 = vrot.lane.b32.xlu0 %v2250, 127
        %v2275 = vpop.permute.xlu0 %2274
        %2276 = vrot.lane.b32.xlu0 %v2251, 127
        %v2277 = vpop.permute.xlu0 %2276
        %2278 = vrot.lane.b32.xlu0 %v2252, 127
        %v2279 = vpop.permute.xlu0 %2278
        %2280 = vrot.lane.b32.xlu0 %v2253, 127
        %v2281 = vpop.permute.xlu0 %2280
        %2282 = vrot.lane.b32.xlu0 %v2254, 127
        %v2283 = vpop.permute.xlu0 %2282
        %2284 = vrot.lane.b32.xlu0 %v2255, 127
        %v2285 = vpop.permute.xlu0 %2284
        %2286 = vrot.lane.b32.xlu0 %v2256, 127
        %v2287 = vpop.permute.xlu0 %2286
        %2288 = vrot.lane.b32.xlu0 %v2257, 127
        %v2289 = vpop.permute.xlu0 %2288
        %2290 = vrot.lane.b32.xlu0 %v2258, 127
        %v2291 = vpop.permute.xlu0 %2290
        %2292 = vrot.lane.b32.xlu0 %v2259, 127
        %v2293 = vpop.permute.xlu0 %2292
        %2294 = vrot.lane.b32.xlu0 %v2260, 127
        %v2295 = vpop.permute.xlu0 %2294
        %2296 = vrot.lane.b32.xlu0 %v2261, 127
        %v2297 = vpop.permute.xlu0 %2296
        %v2298 = vsel %vm863, %v2275, %v2277
        %v2299 = vsel %vm863, %v2277, %v2279
        %v2300 = vsel %vm863, %v2281, %v2283
        %v2301 = vsel %vm863, %v2283, %v2285
        %v2302 = vsel %vm863, %v2287, %v2289
        %v2303 = vsel %vm863, %v2289, %v2291
        %v2304 = vsel %vm863, %v2293, %v2295
        %v2305 = vsel %vm863, %v2295, %v2297
        %v2318 = vadd.f32 %v2238, %v2298
        %v2319 = vadd.f32 %v2239, %v2299
        %v2320 = vadd.f32 %v2240, %v2279
        %v2321 = vadd.f32 %v2241, %v2300
        %v2322 = vadd.f32 %v2242, %v2301
        %v2323 = vadd.f32 %v2243, %v2285
        %v2324 = vadd.f32 %v2244, %v2302
        %v2325 = vadd.f32 %v2245, %v2303
        %v2326 = vadd.f32 %v2246, %v2291
        %v2327 = vadd.f32 %v2247, %v2304
        %v2328 = vadd.f32 %v2248, %v2305
        %v2329 = vadd.f32 %v2249, %v2297
        %v2330 = vmul.f32 %v2202, %v900
        %v2331 = vmul.f32 %v2203, %v904
        %v2332 = vmul.f32 %v2204, %v902
        %v2333 = vmul.f32 %v2205, %v900
        %v2334 = vmul.f32 %v2206, %v904
        %v2335 = vmul.f32 %v2207, %v902
        %v2336 = vmul.f32 %v2208, %v900
        %v2337 = vmul.f32 %v2209, %v904
        %v2338 = vmul.f32 %v2210, %v902
        %v2339 = vmul.f32 %v2211, %v900
        %v2340 = vmul.f32 %v2212, %v904
        %v2341 = vmul.f32 %v2213, %v902
        %v2342 = vmul.f32 %v922, %v2330
        %v2343 = vmul.f32 %v922, %v2331
        %v2344 = vmul.f32 %v922, %v2332
        %v2345 = vmul.f32 %v926, %v2333
        %v2346 = vmul.f32 %v926, %v2334
        %v2347 = vmul.f32 %v926, %v2335
        %v2348 = vmul.f32 %v930, %v2336
        %v2349 = vmul.f32 %v930, %v2337
        %v2350 = vmul.f32 %v930, %v2338
        %v2351 = vmul.f32 %v934, %v2339
        %v2352 = vmul.f32 %v934, %v2340
        %v2353 = vmul.f32 %v934, %v2341
        %2366 = vrot.lane.b32.xlu0 %v2342, 126
        %v2367 = vpop.permute.xlu0 %2366
        %2368 = vrot.lane.b32.xlu0 %v2343, 126
        %v2369 = vpop.permute.xlu0 %2368
        %2370 = vrot.lane.b32.xlu0 %v2344, 126
        %v2371 = vpop.permute.xlu0 %2370
        %2372 = vrot.lane.b32.xlu0 %v2345, 126
        %v2373 = vpop.permute.xlu0 %2372
        %2374 = vrot.lane.b32.xlu0 %v2346, 126
        %v2375 = vpop.permute.xlu0 %2374
        %2376 = vrot.lane.b32.xlu0 %v2347, 126
        %v2377 = vpop.permute.xlu0 %2376
        %2378 = vrot.lane.b32.xlu0 %v2348, 126
        %v2379 = vpop.permute.xlu0 %2378
        %2380 = vrot.lane.b32.xlu0 %v2349, 126
        %v2381 = vpop.permute.xlu0 %2380
        %2382 = vrot.lane.b32.xlu0 %v2350, 126
        %v2383 = vpop.permute.xlu0 %2382
        %2384 = vrot.lane.b32.xlu0 %v2351, 126
        %v2385 = vpop.permute.xlu0 %2384
        %2386 = vrot.lane.b32.xlu0 %v2352, 126
        %v2387 = vpop.permute.xlu0 %2386
        %2388 = vrot.lane.b32.xlu0 %v2353, 126
        %v2389 = vpop.permute.xlu0 %2388
        %v2390 = vsel %vm984, %v2367, %v2369
        %v2391 = vsel %vm984, %v2369, %v2371
        %v2392 = vsel %vm984, %v2373, %v2375
        %v2393 = vsel %vm984, %v2375, %v2377
        %v2394 = vsel %vm984, %v2379, %v2381
        %v2395 = vsel %vm984, %v2381, %v2383
        %v2396 = vsel %vm984, %v2385, %v2387
        %v2397 = vsel %vm984, %v2387, %v2389
        %v2410 = vadd.f32 %v2318, %v2390
        %v2411 = vadd.f32 %v2319, %v2391
        %v2412 = vadd.f32 %v2320, %v2371
        %v2413 = vadd.f32 %v2321, %v2392
        %v2414 = vadd.f32 %v2322, %v2393
        %v2415 = vadd.f32 %v2323, %v2377
        %v2416 = vadd.f32 %v2324, %v2394
        %v2417 = vadd.f32 %v2325, %v2395
        %v2418 = vadd.f32 %v2326, %v2383
        %v2419 = vadd.f32 %v2327, %v2396
        %v2420 = vadd.f32 %v2328, %v2397
        %v2421 = vadd.f32 %v2329, %v2389
        %v2422 = vmul.f32 %v2202, %v1018
        %v2423 = vmul.f32 %v2203, %v1021
        %v2424 = vmul.f32 %v2204, %v1020
        %v2425 = vmul.f32 %v2205, %v1018
        %v2426 = vmul.f32 %v2206, %v1021
        %v2427 = vmul.f32 %v2207, %v1020
        %v2428 = vmul.f32 %v2208, %v1018
        %v2429 = vmul.f32 %v2209, %v1021
        %v2430 = vmul.f32 %v2210, %v1020
        %v2431 = vmul.f32 %v2211, %v1018
        %v2432 = vmul.f32 %v2212, %v1021
        %v2433 = vmul.f32 %v2213, %v1020
        %v2434 = vmul.f32 %v1039, %v2422
        %v2435 = vmul.f32 %v1039, %v2423
        %v2436 = vmul.f32 %v1039, %v2424
        %v2437 = vmul.f32 %v1043, %v2425
        %v2438 = vmul.f32 %v1043, %v2426
        %v2439 = vmul.f32 %v1043, %v2427
        %v2440 = vmul.f32 %v1047, %v2428
        %v2441 = vmul.f32 %v1047, %v2429
        %v2442 = vmul.f32 %v1047, %v2430
        %v2443 = vmul.f32 %v1051, %v2431
        %v2444 = vmul.f32 %v1051, %v2432
        %v2445 = vmul.f32 %v1051, %v2433
        %2458 = vrot.lane.b32.xlu0 %v2434, 112
        %v2459 = vpop.permute.xlu0 %2458
        %2460 = vrot.lane.b32.xlu0 %v2435, 112
        %v2461 = vpop.permute.xlu0 %2460
        %2462 = vrot.lane.b32.xlu0 %v2436, 112
        %v2463 = vpop.permute.xlu0 %2462
        %2464 = vrot.lane.b32.xlu0 %v2437, 112
        %v2465 = vpop.permute.xlu0 %2464
        %2466 = vrot.lane.b32.xlu0 %v2438, 112
        %v2467 = vpop.permute.xlu0 %2466
        %2468 = vrot.lane.b32.xlu0 %v2439, 112
        %v2469 = vpop.permute.xlu0 %2468
        %2470 = vrot.lane.b32.xlu0 %v2440, 112
        %v2471 = vpop.permute.xlu0 %2470
        %2472 = vrot.lane.b32.xlu0 %v2441, 112
        %v2473 = vpop.permute.xlu0 %2472
        %2474 = vrot.lane.b32.xlu0 %v2442, 112
        %v2475 = vpop.permute.xlu0 %2474
        %2476 = vrot.lane.b32.xlu0 %v2443, 112
        %v2477 = vpop.permute.xlu0 %2476
        %2478 = vrot.lane.b32.xlu0 %v2444, 112
        %v2479 = vpop.permute.xlu0 %2478
        %2480 = vrot.lane.b32.xlu0 %v2445, 112
        %v2481 = vpop.permute.xlu0 %2480
        %v2482 = vsel %vm1101, %v2459, %v2461
        %v2483 = vsel %vm1101, %v2461, %v2463
        %v2484 = vsel %vm1101, %v2465, %v2467
        %v2485 = vsel %vm1101, %v2467, %v2469
        %v2486 = vsel %vm1101, %v2471, %v2473
        %v2487 = vsel %vm1101, %v2473, %v2475
        %v2488 = vsel %vm1101, %v2477, %v2479
        %v2489 = vsel %vm1101, %v2479, %v2481
        %v2502 = vadd.f32 %v2410, %v2482
        %v2503 = vadd.f32 %v2411, %v2483
        %v2504 = vadd.f32 %v2412, %v2463
        %v2505 = vadd.f32 %v2413, %v2484
        %v2506 = vadd.f32 %v2414, %v2485
        %v2507 = vadd.f32 %v2415, %v2469
        %v2508 = vadd.f32 %v2416, %v2486
        %v2509 = vadd.f32 %v2417, %v2487
        %v2510 = vadd.f32 %v2418, %v2475
        %v2511 = vadd.f32 %v2419, %v2488
        %v2512 = vadd.f32 %v2420, %v2489
        %v2513 = vadd.f32 %v2421, %v2481
        %v2514 = vmul.f32 %v1136, %v2203
        %v2515 = vmul.f32 %v1136, %v2204
        %v2516 = vmul.f32 %v1140, %v2206
        %v2517 = vmul.f32 %v1140, %v2207
        %v2518 = vmul.f32 %v1144, %v2209
        %v2519 = vmul.f32 %v1144, %v2210
        %v2520 = vmul.f32 %v1148, %v2212
        %v2521 = vmul.f32 %v1148, %v2213
        %2530 = vrot.lane.b32.xlu0 %v2514, 111
        %v2531 = vpop.permute.xlu0 %2530
        %2532 = vrot.lane.b32.xlu0 %v2515, 111
        %v2533 = vpop.permute.xlu0 %2532
        %2534 = vrot.lane.b32.xlu0 %v2516, 111
        %v2535 = vpop.permute.xlu0 %2534
        %2536 = vrot.lane.b32.xlu0 %v2517, 111
        %v2537 = vpop.permute.xlu0 %2536
        %2538 = vrot.lane.b32.xlu0 %v2518, 111
        %v2539 = vpop.permute.xlu0 %2538
        %2540 = vrot.lane.b32.xlu0 %v2519, 111
        %v2541 = vpop.permute.xlu0 %2540
        %2542 = vrot.lane.b32.xlu0 %v2520, 111
        %v2543 = vpop.permute.xlu0 %2542
        %2544 = vrot.lane.b32.xlu0 %v2521, 111
        %v2545 = vpop.permute.xlu0 %2544
        %v2546 = vsel %vm738, %v2531, %v2533
        %v2547 = vsel %vm738, %v2535, %v2537
        %v2548 = vsel %vm738, %v2539, %v2541
        %v2549 = vsel %vm738, %v2543, %v2545
        %v2562 = vadd.f32 %v2502, %v2531
        %v2563 = vadd.f32 %v2503, %v2546
        %v2564 = vadd.f32 %v2504, %v2533
        %v2565 = vadd.f32 %v2505, %v2535
        %v2566 = vadd.f32 %v2506, %v2547
        %v2567 = vadd.f32 %v2507, %v2537
        %v2568 = vadd.f32 %v2508, %v2539
        %v2569 = vadd.f32 %v2509, %v2548
        %v2570 = vadd.f32 %v2510, %v2541
        %v2571 = vadd.f32 %v2511, %v2543
        %v2572 = vadd.f32 %v2512, %v2549
        %v2573 = vadd.f32 %v2513, %v2545
        %v2574 = vld [vmem:[#allocation2 + $0x8] sm:$0xff]
        %v2575 = vld [vmem:[#allocation2 + $0x10] sm:$0xff]
        %v2576 = vld [vmem:[#allocation2 + $0x18] sm:$0xff]
        %v2577 = vld [vmem:[#allocation2 + $0x28] sm:$0xff]
        %v2578 = vld [vmem:[#allocation2 + $0x30] sm:$0xff]
        %v2579 = vld [vmem:[#allocation2 + $0x38] sm:$0xff]
        %v2580 = vld [vmem:[#allocation2 + $0x48] sm:$0xff]
        %v2581 = vld [vmem:[#allocation2 + $0x50] sm:$0xff]
        %v2582 = vld [vmem:[#allocation2 + $0x58] sm:$0xff]
        %v2583 = vld [vmem:[#allocation2 + $0x68] sm:$0xff]
        %v2584 = vld [vmem:[#allocation2 + $0x70] sm:$0xff]
        %v2585 = vld [vmem:[#allocation2 + $0x78] sm:$0xff]
        %v2586 = vmul.f32 %v2574, %v1223
        %v2587 = vmul.f32 %v2575, %v1227
        %v2588 = vmul.f32 %v2576, %v1225
        %v2589 = vmul.f32 %v2577, %v1223
        %v2590 = vmul.f32 %v2578, %v1227
        %v2591 = vmul.f32 %v2579, %v1225
        %v2592 = vmul.f32 %v2580, %v1223
        %v2593 = vmul.f32 %v2581, %v1227
        %v2594 = vmul.f32 %v2582, %v1225
        %v2595 = vmul.f32 %v2583, %v1223
        %v2596 = vmul.f32 %v2584, %v1227
        %v2597 = vmul.f32 %v2585, %v1225
        %v2598 = vmul.f32 %v1245, %v2586
        %v2599 = vmul.f32 %v1245, %v2587
        %v2600 = vmul.f32 %v1245, %v2588
        %v2601 = vmul.f32 %v1249, %v2589
        %v2602 = vmul.f32 %v1249, %v2590
        %v2603 = vmul.f32 %v1249, %v2591
        %v2604 = vmul.f32 %v1253, %v2592
        %v2605 = vmul.f32 %v1253, %v2593
        %v2606 = vmul.f32 %v1253, %v2594
        %v2607 = vmul.f32 %v1257, %v2595
        %v2608 = vmul.f32 %v1257, %v2596
        %v2609 = vmul.f32 %v1257, %v2597
        %2622 = vrot.lane.b32.xlu0 %v2598, 110
        %v2623 = vpop.permute.xlu0 %2622
        %2624 = vrot.lane.b32.xlu0 %v2599, 110
        %v2625 = vpop.permute.xlu0 %2624
        %2626 = vrot.lane.b32.xlu0 %v2600, 110
        %v2627 = vpop.permute.xlu0 %2626
        %2628 = vrot.lane.b32.xlu0 %v2601, 110
        %v2629 = vpop.permute.xlu0 %2628
        %2630 = vrot.lane.b32.xlu0 %v2602, 110
        %v2631 = vpop.permute.xlu0 %2630
        %2632 = vrot.lane.b32.xlu0 %v2603, 110
        %v2633 = vpop.permute.xlu0 %2632
        %2634 = vrot.lane.b32.xlu0 %v2604, 110
        %v2635 = vpop.permute.xlu0 %2634
        %2636 = vrot.lane.b32.xlu0 %v2605, 110
        %v2637 = vpop.permute.xlu0 %2636
        %2638 = vrot.lane.b32.xlu0 %v2606, 110
        %v2639 = vpop.permute.xlu0 %2638
        %2640 = vrot.lane.b32.xlu0 %v2607, 110
        %v2641 = vpop.permute.xlu0 %2640
        %2642 = vrot.lane.b32.xlu0 %v2608, 110
        %v2643 = vpop.permute.xlu0 %2642
        %2644 = vrot.lane.b32.xlu0 %v2609, 110
        %v2645 = vpop.permute.xlu0 %2644
        %v2646 = vsel %vm1307, %v2623, %v2625
        %v2647 = vsel %vm1307, %v2625, %v2627
        %v2648 = vsel %vm1307, %v2629, %v2631
        %v2649 = vsel %vm1307, %v2631, %v2633
        %v2650 = vsel %vm1307, %v2635, %v2637
        %v2651 = vsel %vm1307, %v2637, %v2639
        %v2652 = vsel %vm1307, %v2641, %v2643
        %v2653 = vsel %vm1307, %v2643, %v2645
        %v2666 = vadd.f32 %v2562, %v2623
        %v2667 = vadd.f32 %v2563, %v2646
        %v2668 = vadd.f32 %v2564, %v2647
        %v2669 = vadd.f32 %v2565, %v2629
        %v2670 = vadd.f32 %v2566, %v2648
        %v2671 = vadd.f32 %v2567, %v2649
        %v2672 = vadd.f32 %v2568, %v2635
        %v2673 = vadd.f32 %v2569, %v2650
        %v2674 = vadd.f32 %v2570, %v2651
        %v2675 = vadd.f32 %v2571, %v2641
        %v2676 = vadd.f32 %v2572, %v2652
        %v2677 = vadd.f32 %v2573, %v2653
        %v2678 = vmul.f32 %v2574, %v1341
        %v2679 = vmul.f32 %v2575, %v1345
        %v2680 = vmul.f32 %v2576, %v1343
        %v2681 = vmul.f32 %v2577, %v1341
        %v2682 = vmul.f32 %v2578, %v1345
        %v2683 = vmul.f32 %v2579, %v1343
        %v2684 = vmul.f32 %v2580, %v1341
        %v2685 = vmul.f32 %v2581, %v1345
        %v2686 = vmul.f32 %v2582, %v1343
        %v2687 = vmul.f32 %v2583, %v1341
        %v2688 = vmul.f32 %v2584, %v1345
        %v2689 = vmul.f32 %v2585, %v1343
        %v2690 = vmul.f32 %v1363, %v2678
        %v2691 = vmul.f32 %v1363, %v2679
        %v2692 = vmul.f32 %v1363, %v2680
        %v2693 = vmul.f32 %v1367, %v2681
        %v2694 = vmul.f32 %v1367, %v2682
        %v2695 = vmul.f32 %v1367, %v2683
        %v2696 = vmul.f32 %v1371, %v2684
        %v2697 = vmul.f32 %v1371, %v2685
        %v2698 = vmul.f32 %v1371, %v2686
        %v2699 = vmul.f32 %v1375, %v2687
        %v2700 = vmul.f32 %v1375, %v2688
        %v2701 = vmul.f32 %v1375, %v2689
        %2714 = vrot.lane.b32.xlu0 %v2690, 96
        %v2715 = vpop.permute.xlu0 %2714
        %2716 = vrot.lane.b32.xlu0 %v2691, 96
        %v2717 = vpop.permute.xlu0 %2716
        %2718 = vrot.lane.b32.xlu0 %v2692, 96
        %v2719 = vpop.permute.xlu0 %2718
        %2720 = vrot.lane.b32.xlu0 %v2693, 96
        %v2721 = vpop.permute.xlu0 %2720
        %2722 = vrot.lane.b32.xlu0 %v2694, 96
        %v2723 = vpop.permute.xlu0 %2722
        %2724 = vrot.lane.b32.xlu0 %v2695, 96
        %v2725 = vpop.permute.xlu0 %2724
        %2726 = vrot.lane.b32.xlu0 %v2696, 96
        %v2727 = vpop.permute.xlu0 %2726
        %2728 = vrot.lane.b32.xlu0 %v2697, 96
        %v2729 = vpop.permute.xlu0 %2728
        %2730 = vrot.lane.b32.xlu0 %v2698, 96
        %v2731 = vpop.permute.xlu0 %2730
        %2732 = vrot.lane.b32.xlu0 %v2699, 96
        %v2733 = vpop.permute.xlu0 %2732
        %2734 = vrot.lane.b32.xlu0 %v2700, 96
        %v2735 = vpop.permute.xlu0 %2734
        %2736 = vrot.lane.b32.xlu0 %v2701, 96
        %v2737 = vpop.permute.xlu0 %2736
        %v2738 = vsel %vm1425, %v2715, %v2717
        %v2739 = vsel %vm1425, %v2717, %v2719
        %v2740 = vsel %vm1425, %v2721, %v2723
        %v2741 = vsel %vm1425, %v2723, %v2725
        %v2742 = vsel %vm1425, %v2727, %v2729
        %v2743 = vsel %vm1425, %v2729, %v2731
        %v2744 = vsel %vm1425, %v2733, %v2735
        %v2745 = vsel %vm1425, %v2735, %v2737
        %v2758 = vadd.f32 %v2666, %v2715
        %v2759 = vadd.f32 %v2667, %v2738
        %v2760 = vadd.f32 %v2668, %v2739
        %v2761 = vadd.f32 %v2669, %v2721
        %v2762 = vadd.f32 %v2670, %v2740
        %v2763 = vadd.f32 %v2671, %v2741
        %v2764 = vadd.f32 %v2672, %v2727
        %v2765 = vadd.f32 %v2673, %v2742
        %v2766 = vadd.f32 %v2674, %v2743
        %v2767 = vadd.f32 %v2675, %v2733
        %v2768 = vadd.f32 %v2676, %v2744
        %v2769 = vadd.f32 %v2677, %v2745
        %v2770 = vmul.f32 %v1460, %v2574
        %v2771 = vmul.f32 %v1460, %v2575
        %v2772 = vmul.f32 %v1460, %v2576
        %v2773 = vmul.f32 %v1464, %v2577
        %v2774 = vmul.f32 %v1464, %v2578
        %v2775 = vmul.f32 %v1464, %v2579
        %v2776 = vmul.f32 %v1468, %v2580
        %v2777 = vmul.f32 %v1468, %v2581
        %v2778 = vmul.f32 %v1468, %v2582
        %v2779 = vmul.f32 %v1472, %v2583
        %v2780 = vmul.f32 %v1472, %v2584
        %v2781 = vmul.f32 %v1472, %v2585
        %2794 = vrot.lane.b32.xlu0 %v2770, 95
        %v2795 = vpop.permute.xlu0 %2794
        %2796 = vrot.lane.b32.xlu0 %v2771, 95
        %v2797 = vpop.permute.xlu0 %2796
        %2798 = vrot.lane.b32.xlu0 %v2772, 95
        %v2799 = vpop.permute.xlu0 %2798
        %2800 = vrot.lane.b32.xlu0 %v2773, 95
        %v2801 = vpop.permute.xlu0 %2800
        %2802 = vrot.lane.b32.xlu0 %v2774, 95
        %v2803 = vpop.permute.xlu0 %2802
        %2804 = vrot.lane.b32.xlu0 %v2775, 95
        %v2805 = vpop.permute.xlu0 %2804
        %2806 = vrot.lane.b32.xlu0 %v2776, 95
        %v2807 = vpop.permute.xlu0 %2806
        %2808 = vrot.lane.b32.xlu0 %v2777, 95
        %v2809 = vpop.permute.xlu0 %2808
        %2810 = vrot.lane.b32.xlu0 %v2778, 95
        %v2811 = vpop.permute.xlu0 %2810
        %2812 = vrot.lane.b32.xlu0 %v2779, 95
        %v2813 = vpop.permute.xlu0 %2812
        %2814 = vrot.lane.b32.xlu0 %v2780, 95
        %v2815 = vpop.permute.xlu0 %2814
        %2816 = vrot.lane.b32.xlu0 %v2781, 95
        %v2817 = vpop.permute.xlu0 %2816
        %v2818 = vsel %vm1522, %v2795, %v2797
        %v2819 = vsel %vm1522, %v2797, %v2799
        %v2820 = vsel %vm1522, %v2801, %v2803
        %v2821 = vsel %vm1522, %v2803, %v2805
        %v2822 = vsel %vm1522, %v2807, %v2809
        %v2823 = vsel %vm1522, %v2809, %v2811
        %v2824 = vsel %vm1522, %v2813, %v2815
        %v2825 = vsel %vm1522, %v2815, %v2817
        %v2838 = vadd.f32 %v2758, %v2795
        %v2839 = vadd.f32 %v2759, %v2818
        %v2840 = vadd.f32 %v2760, %v2819
        %v2841 = vadd.f32 %v2761, %v2801
        %v2842 = vadd.f32 %v2762, %v2820
        %v2843 = vadd.f32 %v2763, %v2821
        %v2844 = vadd.f32 %v2764, %v2807
        %v2845 = vadd.f32 %v2765, %v2822
        %v2846 = vadd.f32 %v2766, %v2823
        %v2847 = vadd.f32 %v2767, %v2813
        %v2848 = vadd.f32 %v2768, %v2824
        %v2849 = vadd.f32 %v2769, %v2825
        %v2850 = vmul.f32 %v2574, %v1556
        %v2851 = vmul.f32 %v2575, %v1560
        %v2852 = vmul.f32 %v2576, %v1558
        %v2853 = vmul.f32 %v2577, %v1556
        %v2854 = vmul.f32 %v2578, %v1560
        %v2855 = vmul.f32 %v2579, %v1558
        %v2856 = vmul.f32 %v2580, %v1556
        %v2857 = vmul.f32 %v2581, %v1560
        %v2858 = vmul.f32 %v2582, %v1558
        %v2859 = vmul.f32 %v2583, %v1556
        %v2860 = vmul.f32 %v2584, %v1560
        %v2861 = vmul.f32 %v2585, %v1558
        %v2862 = vmul.f32 %v1578, %v2850
        %v2863 = vmul.f32 %v1578, %v2851
        %v2864 = vmul.f32 %v1578, %v2852
        %v2865 = vmul.f32 %v1582, %v2853
        %v2866 = vmul.f32 %v1582, %v2854
        %v2867 = vmul.f32 %v1582, %v2855
        %v2868 = vmul.f32 %v1586, %v2856
        %v2869 = vmul.f32 %v1586, %v2857
        %v2870 = vmul.f32 %v1586, %v2858
        %v2871 = vmul.f32 %v1590, %v2859
        %v2872 = vmul.f32 %v1590, %v2860
        %v2873 = vmul.f32 %v1590, %v2861
        %2886 = vrot.lane.b32.xlu0 %v2862, 94
        %v2887 = vpop.permute.xlu0 %2886
        %2888 = vrot.lane.b32.xlu0 %v2863, 94
        %v2889 = vpop.permute.xlu0 %2888
        %2890 = vrot.lane.b32.xlu0 %v2864, 94
        %v2891 = vpop.permute.xlu0 %2890
        %2892 = vrot.lane.b32.xlu0 %v2865, 94
        %v2893 = vpop.permute.xlu0 %2892
        %2894 = vrot.lane.b32.xlu0 %v2866, 94
        %v2895 = vpop.permute.xlu0 %2894
        %2896 = vrot.lane.b32.xlu0 %v2867, 94
        %v2897 = vpop.permute.xlu0 %2896
        %2898 = vrot.lane.b32.xlu0 %v2868, 94
        %v2899 = vpop.permute.xlu0 %2898
        %2900 = vrot.lane.b32.xlu0 %v2869, 94
        %v2901 = vpop.permute.xlu0 %2900
        %2902 = vrot.lane.b32.xlu0 %v2870, 94
        %v2903 = vpop.permute.xlu0 %2902
        %2904 = vrot.lane.b32.xlu0 %v2871, 94
        %v2905 = vpop.permute.xlu0 %2904
        %2906 = vrot.lane.b32.xlu0 %v2872, 94
        %v2907 = vpop.permute.xlu0 %2906
        %2908 = vrot.lane.b32.xlu0 %v2873, 94
        %v2909 = vpop.permute.xlu0 %2908
        %v2910 = vsel %vm1640, %v2887, %v2889
        %v2911 = vsel %vm1640, %v2889, %v2891
        %v2912 = vsel %vm1640, %v2893, %v2895
        %v2913 = vsel %vm1640, %v2895, %v2897
        %v2914 = vsel %vm1640, %v2899, %v2901
        %v2915 = vsel %vm1640, %v2901, %v2903
        %v2916 = vsel %vm1640, %v2905, %v2907
        %v2917 = vsel %vm1640, %v2907, %v2909
        %v2930 = vadd.f32 %v2838, %v2887
        %v2931 = vadd.f32 %v2839, %v2910
        %v2932 = vadd.f32 %v2840, %v2911
        %v2933 = vadd.f32 %v2841, %v2893
        %v2934 = vadd.f32 %v2842, %v2912
        %v2935 = vadd.f32 %v2843, %v2913
        %v2936 = vadd.f32 %v2844, %v2899
        %v2937 = vadd.f32 %v2845, %v2914
        %v2938 = vadd.f32 %v2846, %v2915
        %v2939 = vadd.f32 %v2847, %v2905
        %v2940 = vadd.f32 %v2848, %v2916
        %v2941 = vadd.f32 %v2849, %v2917
        %v2942 = vmul.f32 %v2930, %v1676
        %v2943 = vmul.f32 %v2931, %v1676
        %v2944 = vmul.f32 %v2932, %v1676
        %v2945 = vmul.f32 %v2933, %v1681
        %v2946 = vmul.f32 %v2934, %v1681
        %v2947 = vmul.f32 %v2935, %v1681
        %v2948 = vmul.f32 %v2936, %v1686
        %v2949 = vmul.f32 %v2937, %v1686
        %v2950 = vmul.f32 %v2938, %v1686
        %v2951 = vmul.f32 %v2939, %v1691
        %v2952 = vmul.f32 %v2940, %v1691
        %v2953 = vmul.f32 %v2941, %v1691
        %v2954 = vadd.f32 %v2942, %v1708
        %v2955 = vadd.f32 %v2943, %v1708
        %v2956 = vadd.f32 %v2944, %v1708
        %v2957 = vadd.f32 %v2945, %v1713
        %v2958 = vadd.f32 %v2946, %v1713
        %v2959 = vadd.f32 %v2947, %v1713
        %v2960 = vadd.f32 %v2948, %v1718
        %v2961 = vadd.f32 %v2949, %v1718
        %v2962 = vadd.f32 %v2950, %v1718
        %v2963 = vadd.f32 %v2951, %v1723
        %v2964 = vadd.f32 %v2952, %v1723
        %v2965 = vadd.f32 %v2953, %v1723
        %v2966 = vmax.f32 %v2954, 0.0
        %v2967 = vmax.f32 %v2955, 0.0
        %v2968 = vmax.f32 %v2956, 0.0
        %v2969 = vmax.f32 %v2957, 0.0
        %v2970 = vmax.f32 %v2958, 0.0
        %v2971 = vmax.f32 %v2959, 0.0
        %v2972 = vmax.f32 %v2960, 0.0
        %v2973 = vmax.f32 %v2961, 0.0
        %v2974 = vmax.f32 %v2962, 0.0
        %v2975 = vmax.f32 %v2963, 0.0
        %v2976 = vmax.f32 %v2964, 0.0
        %v2977 = vmax.f32 %v2965, 0.0
        %2990 = vrot.lane.b32.xlu0 %v2966, 17
        %v2991 = vpop.permute.xlu0 %2990
        %2992 = vrot.lane.b32.xlu0 %v2967, 17
        %v2993 = vpop.permute.xlu0 %2992
        %2994 = vrot.lane.b32.xlu0 %v2968, 17
        %v2995 = vpop.permute.xlu0 %2994
        %2996 = vrot.lane.b32.xlu0 %v2969, 17
        %v2997 = vpop.permute.xlu0 %2996
        %2998 = vrot.lane.b32.xlu0 %v2970, 17
        %v2999 = vpop.permute.xlu0 %2998
        %3000 = vrot.lane.b32.xlu0 %v2971, 17
        %v3001 = vpop.permute.xlu0 %3000
        %3002 = vrot.lane.b32.xlu0 %v2972, 17
        %v3003 = vpop.permute.xlu0 %3002
        %3004 = vrot.lane.b32.xlu0 %v2973, 17
        %v3005 = vpop.permute.xlu0 %3004
        %3006 = vrot.lane.b32.xlu0 %v2974, 17
        %v3007 = vpop.permute.xlu0 %3006
        %3008 = vrot.lane.b32.xlu0 %v2975, 17
        %v3009 = vpop.permute.xlu0 %3008
        %3010 = vrot.lane.b32.xlu0 %v2976, 17
        %v3011 = vpop.permute.xlu0 %3010
        %3012 = vrot.lane.b32.xlu0 %v2977, 17
        %v3013 = vpop.permute.xlu0 %3012
        %v3014 = vsel %vm1559, %v2991, %v2993
        %v3015 = vsel %vm1559, %v2993, %v2995
        %v3016 = vsel %vm1559, %v2997, %v2999
        %v3017 = vsel %vm1559, %v2999, %v3001
        %v3018 = vsel %vm1559, %v3003, %v3005
        %v3019 = vsel %vm1559, %v3005, %v3007
        %v3020 = vsel %vm1559, %v3009, %v3011
        %v3021 = vsel %vm1559, %v3011, %v3013
        %v3030 = vadd.f32 %v3014, %v3015
        %3031 = vadd.xlane.f32.xlu0 %v3030
        %v3032 = vpop.xlane.xlu0 %3031
        %v3033 = vadd.f32 %v3016, %v3017
        %3034 = vadd.xlane.f32.xlu0 %v3033
        %v3035 = vpop.xlane.xlu0 %3034
        %v3036 = vadd.f32 %v3018, %v3019
        %3037 = vadd.xlane.f32.xlu0 %v3036
        %v3038 = vpop.xlane.xlu0 %3037
        %v3039 = vadd.f32 %v3020, %v3021
        %3040 = vadd.xlane.f32.xlu0 %v3039
        %v3041 = vpop.xlane.xlu0 %3040
        %v3042 = vmul.f32 %v3032, 0.00390625
        %v3043 = vmul.f32 %v3035, 0.00390625
        %v3044 = vmul.f32 %v3038, 0.00390625
        %v3045 = vmul.f32 %v3041, 0.00390625
        %3046 = vmatpush.msra.mxu0 0.0
        %3047 = vmatpush.msra.mxu0 0.0
        %3048 = vmatpush.msra.mxu0 0.0
        %3049 = vmatpush.msra.mxu0 0.0
        %3050 = vmatpush.msra.mxu0 0.0
        %3051 = vmatpush.msra.mxu0 0.0
        %3052 = vmatpush.msra.mxu0 0.0
        %3053 = vmatpush.msra.mxu0 0.0
        %3054 = vmatpush.msra.mxu0 0.0
        %3055 = vmatpush.msra.mxu0 0.0
        %3056 = vmatpush.msra.mxu0 0.0
        %3057 = vmatpush.msra.mxu0 0.0
        %3058 = vmatpush.msra.mxu0 %v3045
        %3059 = vmatpush.msra.mxu0 %v3044
        %3060 = vmatpush.msra.mxu0 %v3043
        %3061 = vmatpush.msra.mxu0 %v3042
        %3062 = vmatmul.f32.gmra.mxu0 %v1819
        %v3063 = vpop.f32.mrf.mxu0
        %v3064 = vadd.f32 %v557, %v3063
        %3065 = vdwg.mxu0
        %v3066 = vmax.f32 %v3064, 0.0
        %v3068 = vsel %vm1855, %v3066, 0
        %3070 = vmatpush.msra.mxu0 0.0
        %3071 = vmatpush.msra.mxu0 0.0
        %3072 = vmatpush.msra.mxu0 0.0
        %3073 = vmatpush.msra.mxu0 0.0
        %3074 = vmatpush.msra.mxu0 0.0
        %3075 = vmatpush.msra.mxu0 0.0
        %3076 = vmatpush.msra.mxu0 0.0
        %3077 = vmatpush.msra.mxu0 0.0
        %3078 = vmatpush.msra.mxu0 0.0
        %3079 = vmatpush.msra.mxu0 0.0
        %3080 = vmatpush.msra.mxu0 0.0
        %3081 = vmatpush.msra.mxu0 0.0
        %3082 = vmatpush.msra.mxu0 0.0
        %3083 = vmatpush.msra.mxu0 0.0
        %3084 = vmatpush.msra.mxu0 0.0
        %3085 = vmatpush.msra.mxu0 %v3068
        %3086 = vmatmul.f32.gmra.mxu0 %v1844
        %v3087 = vpop.f32.mrf.mxu0
        %v3088 = vadd.f32 %v562, %v3087
        %3089 = vmatmul.f32.gmra.mxu0 %v1847
        %v3090 = vpop.f32.mrf.mxu0
        %v3091 = vadd.f32 %v563, %v3090
        %3092 = vmatmul.f32.gmra.mxu0 %v1850
        %v3093 = vpop.f32.mrf.mxu0
        %v3094 = vadd.f32 %v564, %v3093
        %3095 = vmatmul.f32.gmra.mxu0 %v1853
        %v3096 = vpop.f32.mrf.mxu0
        %v3097 = vadd.f32 %v565, %v3096
        %3098 = vdwg.mxu0
        %v3099 = vxor.u32 %v3088, 2147483648
        %v3100 = vxor.u32 %v3091, 2147483648
        %v3101 = vxor.u32 %v3094, 2147483648
        %v3102 = vxor.u32 %v3097, 2147483648
        %v3103 = vmul.f32 %v3099, 1.442695
        %v3104 = vpow.pop %v3103
        %v3105 = vmul.f32 %v3100, 1.442695
        %v3106 = vpow.pop %v3105
        %v3107 = vmul.f32 %v3101, 1.442695
        %v3108 = vpow.pop %v3107
        %v3109 = vmul.f32 %v3102, 1.442695
        %v3110 = vpow.pop %v3109
        %v3111 = vadd.f32 %v3104, 1.0
        %v3112 = vadd.f32 %v3106, 1.0
        %v3113 = vadd.f32 %v3108, 1.0
        %v3114 = vadd.f32 %v3110, 1.0
        %v3115 = vrcp.pop %v3111
        %v3116 = vmul.f32 %v3111, %v3115
        %v3117 = vsub.f32 1.0, %v3116
        %v3118 = vmul.f32 %v3115, %v3117
        %v3119 = vadd.f32 %v3115, %v3118
        %vm3120 = vweird.f32 %v3111
        %vm3121 = vweird.f32 %v3115
        %vm3122 = vmor %vm3120, %vm3121
        %v3123 = vsel %vm3122, %v3115, %v3119
        %v3124 = vand.u32 2147483647, %v3111
        %vm3125 = vcmp.eq.f32.partialorder %v3124, 8.507059e+37
        %v3126 = vand.u32 %v3111, 2147483648
        %v3127 = vor.u32 1.1754944e-38, %v3126
        %v3128 = vsel %vm3125, %v3127, %v3123
        %v3129 = vmul.f32 1.0, %v3128
        %v3130 = vrcp.pop %v3112
        %v3131 = vmul.f32 %v3112, %v3130
        %v3132 = vsub.f32 1.0, %v3131
        %v3133 = vmul.f32 %v3130, %v3132
        %v3134 = vadd.f32 %v3130, %v3133
        %vm3135 = vweird.f32 %v3112
        %vm3136 = vweird.f32 %v3130
        %vm3137 = vmor %vm3135, %vm3136
        %v3138 = vsel %vm3137, %v3130, %v3134
        %v3139 = vand.u32 2147483647, %v3112
        %vm3140 = vcmp.eq.f32.partialorder %v3139, 8.507059e+37
        %v3141 = vand.u32 %v3112, 2147483648
        %v3142 = vor.u32 1.1754944e-38, %v3141
        %v3143 = vsel %vm3140, %v3142, %v3138
        %v3144 = vmul.f32 1.0, %v3143
        %v3145 = vrcp.pop %v3113
        %v3146 = vmul.f32 %v3113, %v3145
        %v3147 = vsub.f32 1.0, %v3146
        %v3148 = vmul.f32 %v3145, %v3147
        %v3149 = vadd.f32 %v3145, %v3148
        %vm3150 = vweird.f32 %v3113
        %vm3151 = vweird.f32 %v3145
        %vm3152 = vmor %vm3150, %vm3151
        %v3153 = vsel %vm3152, %v3145, %v3149
        %v3154 = vand.u32 2147483647, %v3113
        %vm3155 = vcmp.eq.f32.partialorder %v3154, 8.507059e+37
        %v3156 = vand.u32 %v3113, 2147483648
        %v3157 = vor.u32 1.1754944e-38, %v3156
        %v3158 = vsel %vm3155, %v3157, %v3153
        %v3159 = vmul.f32 1.0, %v3158
        %v3160 = vrcp.pop %v3114
        %v3161 = vmul.f32 %v3114, %v3160
        %v3162 = vsub.f32 1.0, %v3161
        %v3163 = vmul.f32 %v3160, %v3162
        %v3164 = vadd.f32 %v3160, %v3163
        %vm3165 = vweird.f32 %v3114
        %vm3166 = vweird.f32 %v3160
        %vm3167 = vmor %vm3165, %vm3166
        %v3168 = vsel %vm3167, %v3160, %v3164
        %v3169 = vand.u32 2147483647, %v3114
        %vm3170 = vcmp.eq.f32.partialorder %v3169, 8.507059e+37
        %v3171 = vand.u32 %v3114, 2147483648
        %v3172 = vor.u32 1.1754944e-38, %v3171
        %v3173 = vsel %vm3170, %v3172, %v3168
        %v3174 = vmul.f32 1.0, %v3173
        %3176 = vset.pattern.permute.xlu0 0
        %3177 = vperm.xlu0 %3176, %v3129
        %v3178 = vpop.permute.xlu0 %3177
        %3181 = vset.pattern.permute.xlu0 0
        %3182 = vperm.xlu0 %3181, %v3144
        %v3183 = vpop.permute.xlu0 %3182
        %3186 = vset.pattern.permute.xlu0 0
        %3187 = vperm.xlu0 %3186, %v3159
        %v3188 = vpop.permute.xlu0 %3187
        %3191 = vset.pattern.permute.xlu0 0
        %3192 = vperm.xlu0 %3191, %v3174
        %v3193 = vpop.permute.xlu0 %3192
        %v3195 = vmul.f32 %v2966, %v3178
        %v3196 = vmul.f32 %v2967, %v3178
        %v3197 = vmul.f32 %v2968, %v3178
        %v3198 = vmul.f32 %v2969, %v3183
        %v3199 = vmul.f32 %v2970, %v3183
        %v3200 = vmul.f32 %v2971, %v3183
        %v3201 = vmul.f32 %v2972, %v3188
        %v3202 = vmul.f32 %v2973, %v3188
        %v3203 = vmul.f32 %v2974, %v3188
        %v3204 = vmul.f32 %v2975, %v3193
        %v3205 = vmul.f32 %v2976, %v3193
        %v3206 = vmul.f32 %v2977, %v3193
        %3219 = vrot.lane.b32.xlu0 %v3195, 17
        %v3220 = vpop.permute.xlu0 %3219
        %3221 = vrot.lane.b32.xlu0 %v3196, 17
        %v3222 = vpop.permute.xlu0 %3221
        %3223 = vrot.lane.b32.xlu0 %v3197, 17
        %v3224 = vpop.permute.xlu0 %3223
        %3225 = vrot.lane.b32.xlu0 %v3198, 17
        %v3226 = vpop.permute.xlu0 %3225
        %3227 = vrot.lane.b32.xlu0 %v3199, 17
        %v3228 = vpop.permute.xlu0 %3227
        %3229 = vrot.lane.b32.xlu0 %v3200, 17
        %v3230 = vpop.permute.xlu0 %3229
        %3231 = vrot.lane.b32.xlu0 %v3201, 17
        %v3232 = vpop.permute.xlu0 %3231
        %3233 = vrot.lane.b32.xlu0 %v3202, 17
        %v3234 = vpop.permute.xlu0 %3233
        %3235 = vrot.lane.b32.xlu0 %v3203, 17
        %v3236 = vpop.permute.xlu0 %3235
        %3237 = vrot.lane.b32.xlu0 %v3204, 17
        %v3238 = vpop.permute.xlu0 %3237
        %3239 = vrot.lane.b32.xlu0 %v3205, 17
        %v3240 = vpop.permute.xlu0 %3239
        %3241 = vrot.lane.b32.xlu0 %v3206, 17
        %v3242 = vpop.permute.xlu0 %3241
        %v3243 = vsel %vm1559, %v3220, %v3222
        %v3244 = vsel %vm1559, %v3222, %v3224
        %v3245 = vsel %vm1559, %v3226, %v3228
        %v3246 = vsel %vm1559, %v3228, %v3230
        %v3247 = vsel %vm1559, %v3232, %v3234
        %v3248 = vsel %vm1559, %v3234, %v3236
        %v3249 = vsel %vm1559, %v3238, %v3240
        %v3250 = vsel %vm1559, %v3240, %v3242
        %3259 = vmatpush.msra.mxu0 0.0
        %3260 = vmatpush.msra.mxu0 0.0
        %3261 = vmatpush.msra.mxu0 0.0
        %3262 = vmatpush.msra.mxu0 0.0
        %3263 = vmatpush.msra.mxu0 0.0
        %3264 = vmatpush.msra.mxu0 0.0
        %3265 = vmatpush.msra.mxu0 0.0
        %3266 = vmatpush.msra.mxu0 0.0
        %3267 = vmatpush.msra.mxu0 0.0
        %3268 = vmatpush.msra.mxu0 0.0
        %3269 = vmatpush.msra.mxu0 0.0
        %3270 = vmatpush.msra.mxu0 0.0
        %3271 = vmatpush.msra.mxu0 %v3249
        %3272 = vmatpush.msra.mxu0 %v3247
        %3273 = vmatpush.msra.mxu0 %v3245
        %3274 = vmatpush.msra.mxu0 %v3243
        %3275 = vmatmul.f32.gmra.mxu0 %v2049
        %v3276 = vpop.f32.mrf.mxu0
        %v3277 = vadd.f32 0.0, %v3276
        %3278 = vdwg.mxu0
        %3279 = vmatpush.msra.mxu0 0.0
        %3280 = vmatpush.msra.mxu0 0.0
        %3281 = vmatpush.msra.mxu0 0.0
        %3282 = vmatpush.msra.mxu0 0.0
        %3283 = vmatpush.msra.mxu0 0.0
        %3284 = vmatpush.msra.mxu0 0.0
        %3285 = vmatpush.msra.mxu0 0.0
        %3286 = vmatpush.msra.mxu0 0.0
        %3287 = vmatpush.msra.mxu0 0.0
        %3288 = vmatpush.msra.mxu0 0.0
        %3289 = vmatpush.msra.mxu0 0.0
        %3290 = vmatpush.msra.mxu0 0.0
        %3291 = vmatpush.msra.mxu0 %v3250
        %3292 = vmatpush.msra.mxu0 %v3248
        %3293 = vmatpush.msra.mxu0 %v3246
        %3294 = vmatpush.msra.mxu0 %v3244
        %3295 = vmatmul.f32.gmra.mxu0 %v2049
        %v3296 = vpop.f32.mrf.mxu0
        %v3297 = vadd.f32 0.0, %v3296
        %3298 = vdwg.mxu0
        %v3299 = vmul.f32 %v3277, %v2094
        %v3300 = vmul.f32 %v3297, %v2094
        %v3301 = vadd.f32 %v3299, %v2101
        %v3302 = vadd.f32 %v3300, %v2101
        %v3303 = vadd.f32 %v3301, %v2110
        %v3304 = vadd.f32 %v3302, %v2111
        %s3305 = scalar_lea.vmem %s517, 16 [#allocation3]
        %3306 = vst [vmem:[%s3305] sm:$0xff] %v3303
        %3307 = vst [vmem:[%s3305 + $0x8] sm:$0xff] %v3304
        %s3308 = sand.u32 %s379, 1
        %s3309 = scalar_lea.sflag [#allocation4], %s3308
        %s3310 = sand.u32 %s379, 1
        %s3311 = smul.addr %s3310, 32
        %s3312 = scalar_lea.vmem [#allocation3], %s3311
        // Predicated region
        $region85: #{tpu_custom_call.1} parent=83 // pred_check
          %p3313 = pneg %p389
        $region86: #{tpu_custom_call.1} parent=83 // pred_check_branch
          %3315 = sbr.rel (%p3313) target = $region88
        $region87: #{tpu_custom_call.1} parent=83 // pred_region
          %s3316 = smul.u32 2, %s30
          %3318 = vsyncadd %s3309, 0
          %s3319 = smul.addr %s3316, 2
          %s3320 = smul.addr %s3319, 8
          %s3321 = scalar_lea.hbm %s16, %s3320
          %s3322 = sshll.u32 %s3312, 4
          %s3323 = int_to_ptr.vmem [resolvable:$true] %s3322
          %s3324 = sshll.u32 %s3321, 4
          %s3325 = int_to_ptr.hbm [resolvable:$true] %s3324
          %3330 = dma.vmem_to_hbm [thread:$0]  %s3323, 512, %s3325, %s3309, 256, 256, 16
        $region88: #{tpu_custom_call.1} parent=83 // pred_fallthru
          _
      $region84: #{tpu_custom_call.1} parent=5 // pred_fallthru
        _
      %p3331 = scmp.le.s32.totalorder 2, %s25
      // Predicated region
      $region89: #{tpu_custom_call.1} parent=5 // pred_check
        %p3332 = pneg %p3331
      $region90: #{tpu_custom_call.1} parent=5 // pred_check_branch
        %3334 = sbr.rel (%p3332) target = $region92
      $region91: #{tpu_custom_call.1} parent=5 // pred_region
        %s3335 = ssub.s32 %s25, 2
        // Predicated region
        $region93: #{tpu_custom_call.1} parent=91 // pred_check
          %p3336 = pneg %p395
        $region94: #{tpu_custom_call.1} parent=91 // pred_check_branch
          %3338 = sbr.rel (%p3336) target = $region96
        $region95: #{tpu_custom_call.1} parent=91 // pred_region
          %s3339 = sand.u32 %s380, 1
          %s3340 = scalar_lea.sflag [#allocation4], %s3339
          %s3341 = sand.u32 %s380, 1
          %s3342 = smul.addr %s3341, 32
          %s3343 = scalar_lea.vmem [#allocation3], %s3342
          %3345 = dma.done %s3340, 512
        $region96: #{tpu_custom_call.1} parent=91 // pred_fallthru
          _
      $region92: #{tpu_custom_call.1} parent=5 // pred_fallthru
        _
    $region6: #{tpu_custom_call.1} parent=1 // loop_footer
      %s29 = sadd.s32 1, %s25
    $region7: #{tpu_custom_call.1} parent=1 // loop_footer_branch
      %24 = sbr.rel target = $region3
    $region8: #{tpu_custom_call.1} parent=1 // loop_exit
      _
    %3346 = vsyncpa [#allocation4], 1
    %s3347 = scalar_lea.sflag [#allocation4], 1
    %3348 = vsyncpa %s3347, 1

</llo_original>
